<compile_context>
chip_gen: v6e
topology: v6e:2x2x1
jax: 0.10.0
libtpu: 0.0.40
codegen_flags: <defaults>
</compile_context>

<pallas_src>
import jax
import jax.numpy as jnp
from jax.experimental import pallas as pl
from jax.experimental.pallas import tpu as pltpu

NEG_SLOPE = 0.2
BN_EPS = 1e-5
VMEM_BUDGET = 24 * 1024 * 1024   # per-call working-set cap (safe inside v7x's 32 MiB scoped VMEM)


def _leaky_f32(x):
    return jnp.where(x > 0, x, NEG_SLOPE * x)


# ----------------------------------------------------------------------------
# tiling helpers
# ----------------------------------------------------------------------------
def _pick_tile_m(m, pref):
    """Lane-dim (M) tile: multiple of 128 (or the full small dim); guarantee >=2
    tiles when m >= 256 so the 'parallel' grid axis can use both v7x cores."""
    if m <= 128:
        return m
    cap = max(((m // 2) // 128) * 128, 128)
    return max((min(pref, cap) // 128) * 128, 128)


# ----------------------------------------------------------------------------
# Pallas conv-as-GEMM kernel (fused BN/LeakyReLU prologue + stats epilogue)
# ----------------------------------------------------------------------------
def _make_conv_kernel(tm, m_total, fuse, with_stats, out_leaky):
    def kernel(*refs):
        i = 0
        w_ref = refs[i]; i += 1          # (Cout, K) bf16, VMEM-resident
        a_ref = refs[i]; i += 1          # (K, tm)  bf16
        s_ref = None
        if fuse == "scale_leaky":
            s_ref = refs[i]; i += 1      # (K, 1) f32 (fallback path only)
        o_ref = refs[i]; i += 1          # (Cout, tm) out dtype
        st_ref = refs[i] if with_stats else None   # (1, Cout, 2) f32 partial stats

        a = a_ref[...]
        if fuse == "leaky":
            # BN scale already folded into W columns (scale > 0); cheap bf16 leaky.
            a = jnp.where(a > 0, a, NEG_SLOPE * a)
        elif fuse == "scale_leaky":
            # general fallback (scale may be <= 0): f32 scale-then-leaky prologue
            a = _leaky_f32(a.astype(jnp.float32) * s_ref[...]).astype(jnp.bfloat16)

        r = jnp.dot(w_ref[...], a, preferred_element_type=jnp.float32)   # (Cout, tm) f32

        if with_stats:
            rs = r
            if m_total % tm != 0:   # mask garbage lanes of the boundary M tile
                col = (jax.lax.broadcasted_iota(jnp.int32, r.shape, 1)
                       + pl.program_id(0) * tm)
                rs = jnp.where(col < m_total, r, 0.0)
            st = jnp.concatenate(
                [jnp.sum(rs, axis=1, keepdims=True),
                 jnp.sum(rs * rs, axis=1, keepdims=True)], axis=1)
            st_ref[...] = st[None]

        if out_leaky:
            r = _leaky_f32(r)
        o_ref[...] = r.astype(o_ref.dtype)

    return kernel


def pallas_conv_matmul(w_mat, a_t, s_col, *, fuse, out_leaky, with_stats,
                       out_dtype, tm_pref=1024):
    """(Cout, K) @ (K, M) with optional fused prologue / stats epilogue."""
    cout, k_dim = w_mat.shape
    k2, m_dim = a_t.shape
    assert k2 == k_dim
    out_bytes = jnp.dtype(out_dtype).itemsize

    tm = _pick_tile_m(m_dim, tm_pref)

    def ws_bytes(tm_):
        w_b = 2 * cout * k_dim * 2                     # resident W (count both buffers)
        a_b = 2 * k_dim * tm_ * 2                      # double-buffered bf16 A tile
        o_b = 2 * cout * tm_ * out_bytes               # double-buffered output tile
        s_b = 2 * k_dim * 128 * 4 if fuse == "scale_leaky" else 0   # (K,1) pads to (K,128)
        st_b = 2 * max(cout, 8) * 128 * 4 if with_stats else 0
        return w_b + a_b + o_b + s_b + st_b

    while ws_bytes(tm) > VMEM_BUDGET and tm > 128:
        tm = max(((tm // 2) // 128) * 128, 128)
    nm = pl.cdiv(m_dim, tm)

    kernel = _make_conv_kernel(tm=tm, m_total=m_dim, fuse=fuse,
                               with_stats=with_stats, out_leaky=out_leaky)

    in_specs = [
        pl.BlockSpec((cout, k_dim), lambda mi: (0, 0)),   # whole W, fetched once
        pl.BlockSpec((k_dim, tm), lambda mi: (0, mi)),    # lane-dense M tile of patches
    ]
    args = [w_mat, a_t]
    if fuse == "scale_leaky":
        in_specs.append(pl.BlockSpec((k_dim, 1), lambda mi: (0, 0)))
        args.append(s_col)

    out_shape = [jax.ShapeDtypeStruct((cout, m_dim), out_dtype)]
    out_specs = [pl.BlockSpec((cout, tm), lambda mi: (0, mi))]
    if with_stats:
        out_shape.append(jax.ShapeDtypeStruct((nm, cout, 2), jnp.float32))
        out_specs.append(pl.BlockSpec((1, cout, 2), lambda mi: (mi, 0, 0)))

    bytes_accessed = (cout * k_dim * 2 + k_dim * m_dim * 2 + cout * m_dim * out_bytes
                      + (nm * cout * 2 * 4 if with_stats else 0))
    cost = pl.CostEstimate(flops=2 * cout * k_dim * m_dim, transcendentals=0,
                           bytes_accessed=bytes_accessed)
    vmem_limit = int(min(max(ws_bytes(tm) + 8 * 2**20, 16 * 2**20), 40 * 2**20))

    return pl.pallas_call(
        kernel,
        out_shape=tuple(out_shape) if with_stats else out_shape[0],
        grid=(nm,),
        in_specs=in_specs,
        out_specs=tuple(out_specs) if with_stats else out_specs[0],
        compiler_params=pltpu.CompilerParams(
            dimension_semantics=("parallel",),
            vmem_limit_bytes=vmem_limit,
        ),
        cost_estimate=cost,
    )(*args)


# ----------------------------------------------------------------------------
# patch gathers (XLA glue) -- space-to-depth for the stride-2 convs
# ----------------------------------------------------------------------------
def _s2d_patches_t(y):
    """4x4 / stride-2 / pad-1 conv patches of y (C,N,H,W) bf16 via space-to-depth.
    Returns A_T of shape (16C, N*Ho*Wo); K ordering is (a,b,p,q,c)."""
    c, n, h, w = y.shape
    ho, wo = h // 2, w // 2
    hs, ws = ho + 1, wo + 1
    yp = jnp.pad(y, ((0, 0), (0, 0), (1, 1), (1, 1)))
    # (c,n,2hs,2ws) -> (c,n,hs,p,ws,q) -> (p,q,c,n,hs,ws)
    y6 = yp.reshape(c, n, hs, 2, ws, 2).transpose(3, 5, 0, 1, 2, 4)
    taps = []
    for a in range(2):
        for b in range(2):
            taps.append(y6[:, :, :, :, a:a + ho, b:b + wo])
    a_t = jnp.stack(taps, axis=0).reshape(16 * c, n * ho * wo)
    return a_t, (n, ho, wo)


def _generic_patches_t(y, kh, kw, stride, pad):
    """Generic im2col (used for the final 4x4 valid conv); K order (kh,kw,c)."""
    c, n, h, w = y.shape
    if pad:
        y = jnp.pad(y, ((0, 0), (0, 0), (pad, pad), (pad, pad)))
    ho = (h + 2 * pad - kh) // stride + 1
    wo = (w + 2 * pad - kw) // stride + 1
    taps = [y[:, :, a:a + stride * ho:stride, b:b + stride * wo:stride]
            for a in range(kh) for b in range(kw)]
    a_t = jnp.stack(taps, axis=0).reshape(kh * kw * c, n * ho * wo)
    return a_t, (n, ho, wo)


# ----------------------------------------------------------------------------
# Conv2d block (optionally with previous layer's BN+LeakyReLU fused in, and
# this layer's BN statistics fused out)
# ----------------------------------------------------------------------------
def conv_block(y, w_oihw, *, stride, pad, in_scale=None, in_center=None,
               out_leaky=False, want_stats=False, out_dtype=jnp.bfloat16,
               fold_scale=True, tm_pref=1024):
    cout, cin, kh, kw = w_oihw.shape
    assert y.shape[0] == cin

    if in_center is not None:   # pre-centre so the zero spatial padding stays exact
        y = y - in_center.reshape(cin, 1, 1, 1)
    y = y.astype(jnp.bfloat16)

    if stride == 2 and pad == 1 and kh == 4 and kw == 4 and y.shape[2] % 2 == 0 \
            and y.shape[3] % 2 == 0:
        a_t, (n, ho, wo) = _s2d_patches_t(y)
        w6 = w_oihw.reshape(cout, cin, 2, 2, 2, 2)          # (o,c,a,p,b,q)
        w_mat = jnp.transpose(w6, (0, 2, 4, 3, 5, 1)).reshape(cout, kh * kw * cin)
    else:
        a_t, (n, ho, wo) = _generic_patches_t(y, kh, kw, stride, pad)
        w_mat = jnp.transpose(w_oihw, (0, 2, 3, 1)).reshape(cout, kh * kw * cin)

    fuse, s_col = None, None
    if in_scale is not None:
        scale_k = jnp.tile(in_scale.astype(jnp.float32), kh * kw)   # channel-minor K order
        if fold_scale:
            # leaky(s*a) == s*leaky(a) for s > 0 (standard BN gamma): fold s into W.
            w_mat = w_mat * scale_k[None, :]
            fuse = "leaky"
        else:
            s_col = scale_k.reshape(kh * kw * cin, 1)
            fuse = "scale_leaky"
    w_mat = w_mat.astype(jnp.bfloat16)

    res = pallas_conv_matmul(w_mat, a_t, s_col, fuse=fuse, out_leaky=out_leaky,
                             with_stats=want_stats, out_dtype=out_dtype,
                             tm_pref=tm_pref)
    if want_stats:
        out2d, partials = res
        stats = jnp.sum(partials, axis=0)                  # (cout, 2): sum, sumsq
        return out2d.reshape(cout, n, ho, wo), stats
    return res.reshape(cout, n, ho, wo)


def bn_affine(stats, gamma, beta, m):
    """Per-channel (scale, center) for training-mode BatchNorm2d from fused stats."""
    mean = stats[:, 0] / m
    var = jnp.maximum(stats[:, 1] / m - mean * mean, 0.0)
    scale = gamma * jax.lax.rsqrt(var + BN_EPS)
    safe = jnp.where(jnp.abs(scale) < 1e-12, 1e-12, scale)   # guard gamma ~ 0
    center = mean - beta / safe
    return scale, center


# ----------------------------------------------------------------------------
# Full forward pass (matches ImageDiscriminator.forward, use_noise=False)
# ----------------------------------------------------------------------------
def image_discriminator(x_nchw, params):
    x = jnp.transpose(x_nchw, (1, 0, 2, 3)).astype(jnp.float32)   # -> (C, N, H, W)

    # conv1 + LeakyReLU (fused epilogue)
    h1 = conv_block(x, params["w1"], stride=2, pad=1, out_leaky=True)

    # conv2 (raw, bf16) with BN2 stats fused into its epilogue
    h2, st2 = conv_block(h1, params["w2"], stride=2, pad=1, want_stats=True)
    s2, c2 = bn_affine(st2, params["g2"], params["b2"], h2.shape[1] * h2.shape[2] * h2.shape[3])

    # BN2 + LeakyReLU fused into conv3's prologue; BN3 stats fused into its epilogue
    h3, st3 = conv_block(h2, params["w3"], stride=2, pad=1, in_scale=s2, in_center=c2,
                         want_stats=True)
    s3, c3 = bn_affine(st3, params["g3"], params["b3"], h3.shape[1] * h3.shape[2] * h3.shape[3])

    h4, st4 = conv_block(h3, params["w4"], stride=2, pad=1, in_scale=s3, in_center=c3,
                         want_stats=True)
    s4, c4 = bn_affine(st4, params["g4"], params["b4"], h4.shape[1] * h4.shape[2] * h4.shape[3])

    # final 4x4 valid conv (BN4 + LeakyReLU fused into its prologue), f32 output
    h5 = conv_block(h4, params["w5"], stride=1, pad=0, in_scale=s4, in_center=c4,
                    out_dtype=jnp.float32)

    h = jnp.transpose(h5, (1, 0, 2, 3))   # (N, 1, 1, 1) NCHW
    return jnp.squeeze(h), None


# ----------------------------------------------------------------------------
# Pure-JAX f32 reference (numerical check only)
# ----------------------------------------------------------------------------
def reference_forward(x, params):
    def conv(h, w, stride, pad):
        return jax.lax.conv_general_dilated(
            h, w, window_strides=(stride, stride),
            padding=((pad, pad), (pad, pad)),
            dimension_numbers=("NCHW", "OIHW", "NCHW"))

    def bn(v, g, b):
        mu = jnp.mean(v, axis=(0, 2, 3), keepdims=True)
        var = jnp.mean(jnp.square(v - mu), axis=(0, 2, 3), keepdims=True)
        return (v - mu) * jax.lax.rsqrt(var + BN_EPS) * g.reshape(1, -1, 1, 1) \
            + b.reshape(1, -1, 1, 1)

    h = _leaky_f32(conv(x, params["w1"], 2, 1))
    h = _leaky_f32(bn(conv(h, params["w2"], 2, 1), params["g2"], params["b2"]))
    h = _leaky_f32(bn(conv(h, params["w3"], 2, 1), params["g3"], params["b3"]))
    h = _leaky_f32(bn(conv(h, params["w4"], 2, 1), params["g4"], params["b4"]))
    h = conv(h, params["w5"], 1, 0)
    return jnp.squeeze(h)


# ----------------------------------------------------------------------------
if __name__ == "__main__":
    n_channels, ndf = 3, 16          # small ndf for a quick synthetic run
    N, H, W = 2, 64, 64              # 64x64 so the final 4x4 valid conv is well-defined

    key = jax.random.PRNGKey(0)
    ks = jax.random.split(key, 12)

    def winit(k, cout, cin):
        fan_in = cin * 4 * 4
        return jax.random.normal(k, (cout, cin, 4, 4), jnp.float32) / jnp.sqrt(fan_in)

    params = {
        "w1": winit(ks[0], ndf, n_channels),
        "w2": winit(ks[1], ndf * 2, ndf),
        "w3": winit(ks[2], ndf * 4, ndf * 2),
        "w4": winit(ks[3], ndf * 8, ndf * 4),
        "w5": winit(ks[4], 1, ndf * 8),
        "g2": 1.0 + 0.1 * jax.random.uniform(ks[5], (ndf * 2,), jnp.float32),
        "b2": 0.1 * jax.random.normal(ks[6], (ndf * 2,), jnp.float32),
        "g3": 1.0 + 0.1 * jax.random.uniform(ks[7], (ndf * 4,), jnp.float32),
        "b3": 0.1 * jax.random.normal(ks[8], (ndf * 4,), jnp.float32),
        "g4": 1.0 + 0.1 * jax.random.uniform(ks[9], (ndf * 8,), jnp.float32),
        "b4": 0.1 * jax.random.normal(ks[10], (ndf * 8,), jnp.float32),
    }

    x = jax.random.normal(ks[11], (N, n_channels, H, W), jnp.float32)

    h, none_out = jax.jit(image_discriminator)(x, params)
    h = jax.block_until_ready(h)

    ref = jax.block_until_ready(reference_forward(x, params))
    assert h.shape == ref.shape, (h.shape, ref.shape)
    assert none_out is None
    # bf16 MXU inputs + bf16 stored activations across 5 layers vs f32 reference
    # (f32 accumulation and f32 BN stats kept) -> moderate tolerance.
    err = float(jnp.max(jnp.abs(h - ref)))
    assert jnp.allclose(h, ref, rtol=5e-2, atol=1e-1), err

    print("KERNEL_OK")
</pallas_src>

<mosaic_0001>
module attributes {stable_mosaic.version = 11 : i64} {
  func.func @kernel(%arg0: i32, %arg1: memref<16x48xbf16, #tpu.memory_space<vmem>>, %arg2: memref<48x1024xbf16, #tpu.memory_space<vmem>>, %arg3: memref<16x1024xbf16, #tpu.memory_space<vmem>>) attributes {dimension_semantics = [#tpu.dimension_semantics<parallel>], iteration_bounds = array<i64: 2>, scalar_prefetch = 0 : i64, scratch_operands = 0 : i64, tpu.core_type = #tpu.core_type<tc>, window_params = [{pipeline_mode = #tpu.pipeline_mode<synchronous>, transform_indices = @transform_0, window_bounds = array<i64: 16, 48>}, {transform_indices = @transform_1, window_bounds = array<i64: 48, 1024>}, {transform_indices = @transform_2, window_bounds = array<i64: 16, 1024>}]} {
    %c0 = arith.constant 0 : index
    %c0_0 = arith.constant 0 : index
    %0 = vector.load %arg2[%c0, %c0_0] : memref<48x1024xbf16, #tpu.memory_space<vmem>>, vector<48x1024xbf16>
    %c0_1 = arith.constant 0 : index
    %c0_2 = arith.constant 0 : index
    %1 = vector.load %arg1[%c0_1, %c0_2] : memref<16x48xbf16, #tpu.memory_space<vmem>>, vector<16x48xbf16>
    %cst = arith.constant dense<0.000000e+00> : vector<16x1024xf32>
    %2 = tpu.matmul %1, %0, %cst {dimension_numbers = #tpu.dot_dimension_numbers<[1], [0], [0], [1], [0, 0, 1, 1], [], []>} : vector<16x48xbf16>, vector<48x1024xbf16>, vector<16x1024xf32> -> vector<16x1024xf32>
    %cst_3 = arith.constant 0.000000e+00 : f32
    %3 = vector.broadcast %cst_3 : f32 to vector<16x1024xf32>
    %4 = arith.cmpf ogt, %2, %3 : vector<16x1024xf32>
    %cst_4 = arith.constant 2.000000e-01 : f32
    %5 = vector.broadcast %cst_4 : f32 to vector<16x1024xf32>
    %6 = arith.mulf %5, %2 : vector<16x1024xf32>
    %7 = arith.select %4, %2, %6 : vector<16x1024xi1>, vector<16x1024xf32>
    %8 = arith.truncf %7 : vector<16x1024xf32> to vector<16x1024xbf16>
    %c0_5 = arith.constant 0 : index
    %c0_6 = arith.constant 0 : index
    %9 = vector.load %arg3[%c0_5, %c0_6] : memref<16x1024xbf16, #tpu.memory_space<vmem>>, vector<16x1024xbf16>
    tpu.vector_store %arg3[%c0_5, %c0_6], %8 {strides = array<i32>} : memref<16x1024xbf16, #tpu.memory_space<vmem>>, vector<16x1024xbf16>,
    return
  }
  func.func @transform_0(%arg0: i32) -> (i32, i32) {
    %c0_i32 = arith.constant 0 : i32
    %c0_i32_0 = arith.constant 0 : i32
    %c0_i32_1 = arith.constant 0 : i32
    return %c0_i32, %c0_i32_0 : i32, i32
  }
  func.func @transform_1(%arg0: i32) -> (i32, i32) {
    %c0_i32 = arith.constant 0 : i32
    %c0_i32_0 = arith.constant 0 : i32
    return %c0_i32, %arg0 : i32, i32
  }
  func.func @transform_2(%arg0: i32) -> (i32, i32) {
    %c0_i32 = arith.constant 0 : i32
    %c0_i32_0 = arith.constant 0 : i32
    return %c0_i32, %arg0 : i32, i32
  }
}

module attributes {stable_mosaic.version = 11 : i64} {
  func.func @kernel(%arg0: i32, %arg1: memref<32x256xbf16, #tpu.memory_space<vmem>>, %arg2: memref<256x256xbf16, #tpu.memory_space<vmem>>, %arg3: memref<32x256xbf16, #tpu.memory_space<vmem>>, %arg4: memref<1x32x2xf32, #tpu.memory_space<vmem>>) attributes {dimension_semantics = [#tpu.dimension_semantics<parallel>], iteration_bounds = array<i64: 2>, scalar_prefetch = 0 : i64, scratch_operands = 0 : i64, tpu.core_type = #tpu.core_type<tc>, window_params = [{pipeline_mode = #tpu.pipeline_mode<synchronous>, transform_indices = @transform_0, window_bounds = array<i64: 32, 256>}, {transform_indices = @transform_1, window_bounds = array<i64: 256, 256>}, {transform_indices = @transform_2, window_bounds = array<i64: 32, 256>}, {transform_indices = @transform_3, window_bounds = array<i64: 1, 32, 2>}]} {
    %c0 = arith.constant 0 : index
    %c0_0 = arith.constant 0 : index
    %0 = vector.load %arg2[%c0, %c0_0] : memref<256x256xbf16, #tpu.memory_space<vmem>>, vector<256x256xbf16>
    %c0_1 = arith.constant 0 : index
    %c0_2 = arith.constant 0 : index
    %1 = vector.load %arg1[%c0_1, %c0_2] : memref<32x256xbf16, #tpu.memory_space<vmem>>, vector<32x256xbf16>
    %cst = arith.constant dense<0.000000e+00> : vector<32x256xf32>
    %2 = tpu.matmul %1, %0, %cst {dimension_numbers = #tpu.dot_dimension_numbers<[1], [0], [0], [1], [0, 0, 1, 1], [], []>} : vector<32x256xbf16>, vector<256x256xbf16>, vector<32x256xf32> -> vector<32x256xf32>
    %cst_3 = arith.constant dense<0.000000e+00> : vector<32xf32>
    %3 = vector.multi_reduction <add>, %2, %cst_3 [1] : vector<32x256xf32> to vector<32xf32>
    %4 = vector.shape_cast %3 : vector<32xf32> to vector<32x1xf32>
    %5 = arith.mulf %2, %2 : vector<32x256xf32>
    %cst_4 = arith.constant dense<0.000000e+00> : vector<32xf32>
    %6 = vector.multi_reduction <add>, %5, %cst_4 [1] : vector<32x256xf32> to vector<32xf32>
    %7 = vector.shape_cast %6 : vector<32xf32> to vector<32x1xf32>
    %8 = tpu.concatenate %4, %7 in 1 : vector<32x1xf32>, vector<32x1xf32> -> vector<32x2xf32>
    %9 = vector.shape_cast %8 : vector<32x2xf32> to vector<1x32x2xf32>
    %c0_5 = arith.constant 0 : index
    %c0_6 = arith.constant 0 : index
    %c0_7 = arith.constant 0 : index
    %10 = vector.load %arg4[%c0_5, %c0_6, %c0_7] : memref<1x32x2xf32, #tpu.memory_space<vmem>>, vector<1x32x2xf32>
    tpu.vector_store %arg4[%c0_5, %c0_6, %c0_7], %9 {strides = array<i32>} : memref<1x32x2xf32, #tpu.memory_space<vmem>>, vector<1x32x2xf32>,
    %11 = arith.truncf %2 : vector<32x256xf32> to vector<32x256xbf16>
    %c0_8 = arith.constant 0 : index
    %c0_9 = arith.constant 0 : index
    %12 = vector.load %arg3[%c0_8, %c0_9] : memref<32x256xbf16, #tpu.memory_space<vmem>>, vector<32x256xbf16>
    tpu.vector_store %arg3[%c0_8, %c0_9], %11 {strides = array<i32>} : memref<32x256xbf16, #tpu.memory_space<vmem>>, vector<32x256xbf16>,
    return
  }
  func.func @transform_0(%arg0: i32) -> (i32, i32) {
    %c0_i32 = arith.constant 0 : i32
    %c0_i32_0 = arith.constant 0 : i32
    %c0_i32_1 = arith.constant 0 : i32
    return %c0_i32, %c0_i32_0 : i32, i32
  }
  func.func @transform_1(%arg0: i32) -> (i32, i32) {
    %c0_i32 = arith.constant 0 : i32
    %c0_i32_0 = arith.constant 0 : i32
    return %c0_i32, %arg0 : i32, i32
  }
  func.func @transform_2(%arg0: i32) -> (i32, i32) {
    %c0_i32 = arith.constant 0 : i32
    %c0_i32_0 = arith.constant 0 : i32
    return %c0_i32, %arg0 : i32, i32
  }
  func.func @transform_3(%arg0: i32) -> (i32, i32, i32) {
    %c0_i32 = arith.constant 0 : i32
    %c0_i32_0 = arith.constant 0 : i32
    %c0_i32_1 = arith.constant 0 : i32
    return %arg0, %c0_i32, %c0_i32_0 : i32, i32, i32
  }
}

module attributes {stable_mosaic.version = 11 : i64} {
  func.func @kernel(%arg0: i32, %arg1: memref<64x512xbf16, #tpu.memory_space<vmem>>, %arg2: memref<512x128xbf16, #tpu.memory_space<vmem>>, %arg3: memref<64x128xbf16, #tpu.memory_space<vmem>>, %arg4: memref<1x64x2xf32, #tpu.memory_space<vmem>>) attributes {dimension_semantics = [#tpu.dimension_semantics<parallel>], iteration_bounds = array<i64: 1>, scalar_prefetch = 0 : i64, scratch_operands = 0 : i64, tpu.core_type = #tpu.core_type<tc>, window_params = [{pipeline_mode = #tpu.pipeline_mode<synchronous>, transform_indices = @transform_0, window_bounds = array<i64: 64, 512>}, {transform_indices = @transform_1, window_bounds = array<i64: 512, 128>}, {transform_indices = @transform_2, window_bounds = array<i64: 64, 128>}, {transform_indices = @transform_3, window_bounds = array<i64: 1, 64, 2>}]} {
    %c0 = arith.constant 0 : index
    %c0_0 = arith.constant 0 : index
    %0 = vector.load %arg2[%c0, %c0_0] : memref<512x128xbf16, #tpu.memory_space<vmem>>, vector<512x128xbf16>
    %cst = arith.constant 0.000000e+00 : bf16
    %1 = vector.broadcast %cst : bf16 to vector<512x128xbf16>
    %2 = arith.cmpf ogt, %0, %1 : vector<512x128xbf16>
    %cst_1 = arith.constant 2.001950e-01 : bf16
    %3 = vector.broadcast %cst_1 : bf16 to vector<512x128xbf16>
    %4 = arith.mulf %3, %0 : vector<512x128xbf16>
    %5 = arith.select %2, %0, %4 : vector<512x128xi1>, vector<512x128xbf16>
    %c0_2 = arith.constant 0 : index
    %c0_3 = arith.constant 0 : index
    %6 = vector.load %arg1[%c0_2, %c0_3] : memref<64x512xbf16, #tpu.memory_space<vmem>>, vector<64x512xbf16>
    %cst_4 = arith.constant dense<0.000000e+00> : vector<64x128xf32>
    %7 = tpu.matmul %6, %5, %cst_4 {dimension_numbers = #tpu.dot_dimension_numbers<[1], [0], [0], [1], [0, 0, 1, 1], [], []>} : vector<64x512xbf16>, vector<512x128xbf16>, vector<64x128xf32> -> vector<64x128xf32>
    %cst_5 = arith.constant dense<0.000000e+00> : vector<64xf32>
    %8 = vector.multi_reduction <add>, %7, %cst_5 [1] : vector<64x128xf32> to vector<64xf32>
    %9 = vector.shape_cast %8 : vector<64xf32> to vector<64x1xf32>
    %10 = arith.mulf %7, %7 : vector<64x128xf32>
    %cst_6 = arith.constant dense<0.000000e+00> : vector<64xf32>
    %11 = vector.multi_reduction <add>, %10, %cst_6 [1] : vector<64x128xf32> to vector<64xf32>
    %12 = vector.shape_cast %11 : vector<64xf32> to vector<64x1xf32>
    %13 = tpu.concatenate %9, %12 in 1 : vector<64x1xf32>, vector<64x1xf32> -> vector<64x2xf32>
    %14 = vector.shape_cast %13 : vector<64x2xf32> to vector<1x64x2xf32>
    %c0_7 = arith.constant 0 : index
    %c0_8 = arith.constant 0 : index
    %c0_9 = arith.constant 0 : index
    %15 = vector.load %arg4[%c0_7, %c0_8, %c0_9] : memref<1x64x2xf32, #tpu.memory_space<vmem>>, vector<1x64x2xf32>
    tpu.vector_store %arg4[%c0_7, %c0_8, %c0_9], %14 {strides = array<i32>} : memref<1x64x2xf32, #tpu.memory_space<vmem>>, vector<1x64x2xf32>,
    %16 = arith.truncf %7 : vector<64x128xf32> to vector<64x128xbf16>
    %c0_10 = arith.constant 0 : index
    %c0_11 = arith.constant 0 : index
    %17 = vector.load %arg3[%c0_10, %c0_11] : memref<64x128xbf16, #tpu.memory_space<vmem>>, vector<64x128xbf16>
    tpu.vector_store %arg3[%c0_10, %c0_11], %16 {strides = array<i32>} : memref<64x128xbf16, #tpu.memory_space<vmem>>, vector<64x128xbf16>,
    return
  }
  func.func @transform_0(%arg0: i32) -> (i32, i32) {
    %c0_i32 = arith.constant 0 : i32
    %c0_i32_0 = arith.constant 0 : i32
    %c0_i32_1 = arith.constant 0 : i32
    return %c0_i32, %c0_i32_0 : i32, i32
  }
  func.func @transform_1(%arg0: i32) -> (i32, i32) {
    %c0_i32 = arith.constant 0 : i32
    %c0_i32_0 = arith.constant 0 : i32
    return %c0_i32, %arg0 : i32, i32
  }
  func.func @transform_2(%arg0: i32) -> (i32, i32) {
    %c0_i32 = arith.constant 0 : i32
    %c0_i32_0 = arith.constant 0 : i32
    return %c0_i32, %arg0 : i32, i32
  }
  func.func @transform_3(%arg0: i32) -> (i32, i32, i32) {
    %c0_i32 = arith.constant 0 : i32
    %c0_i32_0 = arith.constant 0 : i32
    %c0_i32_1 = arith.constant 0 : i32
    return %arg0, %c0_i32, %c0_i32_0 : i32, i32, i32
  }
}

module attributes {stable_mosaic.version = 11 : i64} {
  func.func @kernel(%arg0: i32, %arg1: memref<128x1024xbf16, #tpu.memory_space<vmem>>, %arg2: memref<1024x32xbf16, #tpu.memory_space<vmem>>, %arg3: memref<128x32xbf16, #tpu.memory_space<vmem>>, %arg4: memref<1x128x2xf32, #tpu.memory_space<vmem>>) attributes {dimension_semantics = [#tpu.dimension_semantics<parallel>], iteration_bounds = array<i64: 1>, scalar_prefetch = 0 : i64, scratch_operands = 0 : i64, tpu.core_type = #tpu.core_type<tc>, window_params = [{pipeline_mode = #tpu.pipeline_mode<synchronous>, transform_indices = @transform_0, window_bounds = array<i64: 128, 1024>}, {transform_indices = @transform_1, window_bounds = array<i64: 1024, 32>}, {transform_indices = @transform_2, window_bounds = array<i64: 128, 32>}, {transform_indices = @transform_3, window_bounds = array<i64: 1, 128, 2>}]} {
    %c0 = arith.constant 0 : index
    %c0_0 = arith.constant 0 : index
    %0 = vector.load %arg2[%c0, %c0_0] : memref<1024x32xbf16, #tpu.memory_space<vmem>>, vector<1024x32xbf16>
    %cst = arith.constant 0.000000e+00 : bf16
    %1 = vector.broadcast %cst : bf16 to vector<1024x32xbf16>
    %2 = arith.cmpf ogt, %0, %1 : vector<1024x32xbf16>
    %cst_1 = arith.constant 2.001950e-01 : bf16
    %3 = vector.broadcast %cst_1 : bf16 to vector<1024x32xbf16>
    %4 = arith.mulf %3, %0 : vector<1024x32xbf16>
    %5 = arith.select %2, %0, %4 : vector<1024x32xi1>, vector<1024x32xbf16>
    %c0_2 = arith.constant 0 : index
    %c0_3 = arith.constant 0 : index
    %6 = vector.load %arg1[%c0_2, %c0_3] : memref<128x1024xbf16, #tpu.memory_space<vmem>>, vector<128x1024xbf16>
    %cst_4 = arith.constant dense<0.000000e+00> : vector<128x32xf32>
    %7 = tpu.matmul %6, %5, %cst_4 {dimension_numbers = #tpu.dot_dimension_numbers<[1], [0], [0], [1], [0, 0, 1, 1], [], []>} : vector<128x1024xbf16>, vector<1024x32xbf16>, vector<128x32xf32> -> vector<128x32xf32>
    %cst_5 = arith.constant dense<0.000000e+00> : vector<128xf32>
    %8 = vector.multi_reduction <add>, %7, %cst_5 [1] : vector<128x32xf32> to vector<128xf32>
    %9 = vector.shape_cast %8 : vector<128xf32> to vector<128x1xf32>
    %10 = arith.mulf %7, %7 : vector<128x32xf32>
    %cst_6 = arith.constant dense<0.000000e+00> : vector<128xf32>
    %11 = vector.multi_reduction <add>, %10, %cst_6 [1] : vector<128x32xf32> to vector<128xf32>
    %12 = vector.shape_cast %11 : vector<128xf32> to vector<128x1xf32>
    %13 = tpu.concatenate %9, %12 in 1 : vector<128x1xf32>, vector<128x1xf32> -> vector<128x2xf32>
    %14 = vector.shape_cast %13 : vector<128x2xf32> to vector<1x128x2xf32>
    %c0_7 = arith.constant 0 : index
    %c0_8 = arith.constant 0 : index
    %c0_9 = arith.constant 0 : index
    %15 = vector.load %arg4[%c0_7, %c0_8, %c0_9] : memref<1x128x2xf32, #tpu.memory_space<vmem>>, vector<1x128x2xf32>
    tpu.vector_store %arg4[%c0_7, %c0_8, %c0_9], %14 {strides = array<i32>} : memref<1x128x2xf32, #tpu.memory_space<vmem>>, vector<1x128x2xf32>,
    %16 = arith.truncf %7 : vector<128x32xf32> to vector<128x32xbf16>
    %c0_10 = arith.constant 0 : index
    %c0_11 = arith.constant 0 : index
    %17 = vector.load %arg3[%c0_10, %c0_11] : memref<128x32xbf16, #tpu.memory_space<vmem>>, vector<128x32xbf16>
    tpu.vector_store %arg3[%c0_10, %c0_11], %16 {strides = array<i32>} : memref<128x32xbf16, #tpu.memory_space<vmem>>, vector<128x32xbf16>,
    return
  }
  func.func @transform_0(%arg0: i32) -> (i32, i32) {
    %c0_i32 = arith.constant 0 : i32
    %c0_i32_0 = arith.constant 0 : i32
    %c0_i32_1 = arith.constant 0 : i32
    return %c0_i32, %c0_i32_0 : i32, i32
  }
  func.func @transform_1(%arg0: i32) -> (i32, i32) {
    %c0_i32 = arith.constant 0 : i32
    %c0_i32_0 = arith.constant 0 : i32
    return %c0_i32, %arg0 : i32, i32
  }
  func.func @transform_2(%arg0: i32) -> (i32, i32) {
    %c0_i32 = arith.constant 0 : i32
    %c0_i32_0 = arith.constant 0 : i32
    return %c0_i32, %arg0 : i32, i32
  }
  func.func @transform_3(%arg0: i32) -> (i32, i32, i32) {
    %c0_i32 = arith.constant 0 : i32
    %c0_i32_0 = arith.constant 0 : i32
    %c0_i32_1 = arith.constant 0 : i32
    return %arg0, %c0_i32, %c0_i32_0 : i32, i32, i32
  }
}

module attributes {stable_mosaic.version = 11 : i64} {
  func.func @kernel(%arg0: i32, %arg1: memref<1x2048xbf16, #tpu.memory_space<vmem>>, %arg2: memref<2048x2xbf16, #tpu.memory_space<vmem>>, %arg3: memref<1x2xf32, #tpu.memory_space<vmem>>) attributes {dimension_semantics = [#tpu.dimension_semantics<parallel>], iteration_bounds = array<i64: 1>, scalar_prefetch = 0 : i64, scratch_operands = 0 : i64, tpu.core_type = #tpu.core_type<tc>, window_params = [{pipeline_mode = #tpu.pipeline_mode<synchronous>, transform_indices = @transform_0, window_bounds = array<i64: 1, 2048>}, {transform_indices = @transform_1, window_bounds = array<i64: 2048, 2>}, {transform_indices = @transform_2, window_bounds = array<i64: 1, 2>}]} {
    %c0 = arith.constant 0 : index
    %c0_0 = arith.constant 0 : index
    %0 = vector.load %arg2[%c0, %c0_0] : memref<2048x2xbf16, #tpu.memory_space<vmem>>, vector<2048x2xbf16>
    %cst = arith.constant 0.000000e+00 : bf16
    %1 = vector.broadcast %cst : bf16 to vector<2048x2xbf16>
    %2 = arith.cmpf ogt, %0, %1 : vector<2048x2xbf16>
    %cst_1 = arith.constant 2.001950e-01 : bf16
    %3 = vector.broadcast %cst_1 : bf16 to vector<2048x2xbf16>
    %4 = arith.mulf %3, %0 : vector<2048x2xbf16>
    %5 = arith.select %2, %0, %4 : vector<2048x2xi1>, vector<2048x2xbf16>
    %c0_2 = arith.constant 0 : index
    %c0_3 = arith.constant 0 : index
    %6 = vector.load %arg1[%c0_2, %c0_3] : memref<1x2048xbf16, #tpu.memory_space<vmem>>, vector<1x2048xbf16>
    %cst_4 = arith.constant dense<0.000000e+00> : vector<1x2xf32>
    %7 = tpu.matmul %6, %5, %cst_4 {dimension_numbers = #tpu.dot_dimension_numbers<[1], [0], [0], [1], [0, 0, 1, 1], [], []>} : vector<1x2048xbf16>, vector<2048x2xbf16>, vector<1x2xf32> -> vector<1x2xf32>
    %c0_5 = arith.constant 0 : index
    %c0_6 = arith.constant 0 : index
    %8 = vector.load %arg3[%c0_5, %c0_6] : memref<1x2xf32, #tpu.memory_space<vmem>>, vector<1x2xf32>
    tpu.vector_store %arg3[%c0_5, %c0_6], %7 {strides = array<i32>} : memref<1x2xf32, #tpu.memory_space<vmem>>, vector<1x2xf32>,
    return
  }
  func.func @transform_0(%arg0: i32) -> (i32, i32) {
    %c0_i32 = arith.constant 0 : i32
    %c0_i32_0 = arith.constant 0 : i32
    %c0_i32_1 = arith.constant 0 : i32
    return %c0_i32, %c0_i32_0 : i32, i32
  }
  func.func @transform_1(%arg0: i32) -> (i32, i32) {
    %c0_i32 = arith.constant 0 : i32
    %c0_i32_0 = arith.constant 0 : i32
    return %c0_i32, %arg0 : i32, i32
  }
  func.func @transform_2(%arg0: i32) -> (i32, i32) {
    %c0_i32 = arith.constant 0 : i32
    %c0_i32_0 = arith.constant 0 : i32
    return %c0_i32, %arg0 : i32, i32
  }
}

</mosaic_0001>

<llo_original>
// kernel: image_discriminator.5
$region0: #{image_discriminator.5}
  #allocation0 [shape = 'u32[]', space=smem, size = 0x4, offset = 0x4, fixed_abs, tag = 'smem constant byte address 0x4 - core index']
  #allocation1 [shape = 'u32[144,128]{1,0:T(1,128)}', space=vmem, size = 0x12000, scoped, tag = 'internal scratch']
  %s0 = inlined_call_operand.vmem [shape: bf16[16,48], index: 0, kind: input, shape index: {}]
  %s1 = inlined_call_operand.vmem [shape: bf16[48,2048], index: 1, kind: input, shape index: {}]
  %s2 = inlined_call_operand.vmem [shape: bf16[16,2048], index: 2, kind: output, shape index: {}]
  %s3 = sld [smem:[#allocation0]]
  $region83: #{image_discriminator.5} parent=0
    _
  %s5 = ssub.s32 1, %s3
  %s6 = scalar_select 0, %s5, %s3
  $region1: #{image_discriminator.5} parent=0
    #allocation2 [shape = 'u8[196608]{0}', space=vmem, size = 0x30000, scoped, tag = 'input window, operand 1']
    #allocation3 [shape = 'u8[65536]{0}', space=vmem, size = 0x10000, scoped, tag = 'output window, operand 0']
    loop: start=0, step=1, limit=4
    $region2: #{image_discriminator.5} parent=1 // loop_pre_header
      _
    $region3: #{image_discriminator.5} parent=1 // loop_header
      %s8 = sphi 0, %s12
      %p9 = scmp.ge.s32.totalorder %s8, 4
      %s16 = sphi 0, %s16
      %s18 = sphi 0, %s16
      %s19 = sphi 0, %s18
      %s33 = sphi 0, %s19
      %s39 = sphi 0, %s41
      %s42 = sphi 0, %s39
      %s43 = sphi 0, %s42
      %s59 = sphi 0, %s43
      %s65 = sphi 0, %s67
      %s68 = sphi 0, %s65
      %s69 = sphi 0, %s68
      %s85 = sphi 0, %s69
    $region4: #{image_discriminator.5} parent=1 // loop_header_branch
      %11 = sbr.rel (%p9) target = $region8
    $region5: #{image_discriminator.5} parent=1 // loop_body
      %s13 = ssub.s32 %s8, 1
      %s14 = ssub.s32 %s8, 2
      %s15 = sadd.s32 %s8, 1
      %s17 = sadd.s32 %s16, 1
      %p20 = scmp.eq.s32.totalorder %s8, 1
      %p21 = scmp.ne.s32.totalorder %s16, %s18
      %p22 = scmp.eq.s32.totalorder %s8, 0
      %p23 = por %p21, %p22
      %p24 = scmp.ne.s32.totalorder %s16, %s18
      %p25 = scmp.eq.s32.totalorder %s13, 1
      %p26 = por %p24, %p25
      %p27 = scmp.ne.s32.totalorder %s18, %s19
      %p28 = scmp.eq.s32.totalorder %s13, 0
      %p29 = por %p27, %p28
      %p30 = scmp.ne.s32.totalorder %s18, %s19
      %p31 = scmp.eq.s32.totalorder %s14, 1
      %p32 = por %p30, %p31
      %p34 = scmp.ne.s32.totalorder %s19, %s33
      %p35 = scmp.eq.s32.totalorder %s14, 0
      %p36 = por %p34, %p35
      %s37 = ssub.s32 %s8, %s15
      %p38 = scmp.eq.s32.totalorder %s37, 0
      %s40 = sadd.s32 %s39, 1
      %s41 = scalar_select %p38, %s39, %s40
      %p44 = pneg %p38
      %p45 = scmp.eq.s32.totalorder %s8, 1
      %p46 = por %p44, %p45
      %p47 = scmp.ne.s32.totalorder %s39, %s42
      %p48 = scmp.eq.s32.totalorder %s8, 0
      %p49 = por %p47, %p48
      %p50 = scmp.ne.s32.totalorder %s39, %s42
      %p51 = scmp.eq.s32.totalorder %s13, 1
      %p52 = por %p50, %p51
      %p53 = scmp.ne.s32.totalorder %s42, %s43
      %p54 = scmp.eq.s32.totalorder %s13, 0
      %p55 = por %p53, %p54
      %p56 = scmp.ne.s32.totalorder %s42, %s43
      %p57 = scmp.eq.s32.totalorder %s14, 1
      %p58 = por %p56, %p57
      %p60 = scmp.ne.s32.totalorder %s43, %s59
      %p61 = scmp.eq.s32.totalorder %s14, 0
      %p62 = por %p60, %p61
      %s63 = ssub.s32 %s8, %s15
      %p64 = scmp.eq.s32.totalorder %s63, 0
      %s66 = sadd.s32 %s65, 1
      %s67 = scalar_select %p64, %s65, %s66
      %p70 = pneg %p64
      %p71 = scmp.eq.s32.totalorder %s8, 1
      %p72 = por %p70, %p71
      %p73 = scmp.ne.s32.totalorder %s65, %s68
      %p74 = scmp.eq.s32.totalorder %s8, 0
      %p75 = por %p73, %p74
      %p76 = scmp.ne.s32.totalorder %s65, %s68
      %p77 = scmp.eq.s32.totalorder %s13, 1
      %p78 = por %p76, %p77
      %p79 = scmp.ne.s32.totalorder %s68, %s69
      %p80 = scmp.eq.s32.totalorder %s13, 0
      %p81 = por %p79, %p80
      %p82 = scmp.ne.s32.totalorder %s68, %s69
      %p83 = scmp.eq.s32.totalorder %s14, 1
      %p84 = por %p82, %p83
      %p86 = scmp.ne.s32.totalorder %s69, %s85
      %p87 = scmp.eq.s32.totalorder %s14, 0
      %p88 = por %p86, %p87
      %p89 = scmp.le.s32.totalorder 1, %s8
      %p90 = scmp.lt.s32.totalorder %s8, 3
      %p91 = pnand %p89, %p90
      %p92 = pneg %p91
      // Predicated region
      $region9: #{image_discriminator.5} parent=5 // pred_check
        _
      $region10: #{image_discriminator.5} parent=5 // pred_check_branch
        %94 = sbr.rel (%p91) target = $region12
      $region11: #{image_discriminator.5} parent=5 // pred_region
        %s95 = ssub.s32 %s8, 1
        // Predicated region
        $region13: #{image_discriminator.5} parent=11 // pred_check
          %p96 = pneg %p29
        $region14: #{image_discriminator.5} parent=11 // pred_check_branch
          %98 = sbr.rel (%p96) target = $region16
        $region15: #{image_discriminator.5} parent=11 // pred_region
          _
        $region16: #{image_discriminator.5} parent=11 // pred_fallthru
          _
      $region12: #{image_discriminator.5} parent=5 // pred_fallthru
        _
      %p99 = scmp.lt.s32.totalorder %s8, 2
      // Predicated region
      $region17: #{image_discriminator.5} parent=5 // pred_check
        %p100 = pneg %p99
      $region18: #{image_discriminator.5} parent=5 // pred_check_branch
        %102 = sbr.rel (%p100) target = $region20
      $region19: #{image_discriminator.5} parent=5 // pred_region
        // Predicated region
        $region21: #{image_discriminator.5} parent=19 // pred_check
          %p103 = pneg %p49
        $region22: #{image_discriminator.5} parent=19 // pred_check_branch
          %105 = sbr.rel (%p103) target = $region24
        $region23: #{image_discriminator.5} parent=19 // pred_region
          %s106 = sand.u32 %s39, 1
          %s107 = sand.u32 %s39, 1
          %s108 = smul.addr %s107, 192
          %s109 = scalar_lea.vmem [#allocation2], %s108
          %s110 = smul.u32 8, %s8
          %s111 = smul.addr %s110, 4
          %s112 = scalar_lea.vmem %s1, %s111
          // Predicated region
          $region25: #{image_discriminator.5} parent=23 // pred_check
            _
          $region26: #{image_discriminator.5} parent=23 // pred_check_branch
            %114 = sbr.rel (0) target = $region28
          $region27: #{image_discriminator.5} parent=23 // pred_region
            // Predicated region
            $region29: #{image_discriminator.5} parent=27 // pred_check
              _
            $region30: #{image_discriminator.5} parent=27 // pred_check_branch
              %116 = sbr.rel (0) target = $region32
            $region31: #{image_discriminator.5} parent=27 // pred_region
              loop: start=0, step=1, limit=1
              $region33: #{image_discriminator.5} parent=31 // loop_pre_header
                _
              $region34: #{image_discriminator.5} parent=31 // loop_header
                %s118 = sphi 0, %s122
                %p119 = scmp.ge.s32.totalorder %s118, 1
                %s123 = sphi %s112, %s112
                %s124 = sphi %s109, %s109
              $region35: #{image_discriminator.5} parent=31 // loop_header_branch
                %121 = sbr.rel (%p119) target = $region39
              $region36: #{image_discriminator.5} parent=31 // loop_body
                %v125 = vld [vmem:[%s123] sm:$0xff]
                %126 = vst [vmem:[%s124] sm:$0xff] %v125
                %v127 = vld [vmem:[%s123 + $0x8] sm:$0xff]
                %128 = vst [vmem:[%s124 + $0x8] sm:$0xff] %v127
                %v129 = vld [vmem:[%s123 + $0x10] sm:$0xff]
                %130 = vst [vmem:[%s124 + $0x10] sm:$0xff] %v129
                %v131 = vld [vmem:[%s123 + $0x18] sm:$0xff]
                %132 = vst [vmem:[%s124 + $0x18] sm:$0xff] %v131
                %v133 = vld [vmem:[%s123 + $0x40] sm:$0xff]
                %134 = vst [vmem:[%s124 + $0x20] sm:$0xff] %v133
                %v135 = vld [vmem:[%s123 + $0x48] sm:$0xff]
                %136 = vst [vmem:[%s124 + $0x28] sm:$0xff] %v135
                %v137 = vld [vmem:[%s123 + $0x50] sm:$0xff]
                %138 = vst [vmem:[%s124 + $0x30] sm:$0xff] %v137
                %v139 = vld [vmem:[%s123 + $0x58] sm:$0xff]
                %140 = vst [vmem:[%s124 + $0x38] sm:$0xff] %v139
                %v141 = vld [vmem:[%s123 + $0x80] sm:$0xff]
                %142 = vst [vmem:[%s124 + $0x40] sm:$0xff] %v141
                %v143 = vld [vmem:[%s123 + $0x88] sm:$0xff]
                %144 = vst [vmem:[%s124 + $0x48] sm:$0xff] %v143
                %v145 = vld [vmem:[%s123 + $0x90] sm:$0xff]
                %146 = vst [vmem:[%s124 + $0x50] sm:$0xff] %v145
                %v147 = vld [vmem:[%s123 + $0x98] sm:$0xff]
                %148 = vst [vmem:[%s124 + $0x58] sm:$0xff] %v147
                %v149 = vld [vmem:[%s123 + $0xc0] sm:$0xff]
                %150 = vst [vmem:[%s124 + $0x60] sm:$0xff] %v149
                %v151 = vld [vmem:[%s123 + $0xc8] sm:$0xff]
                %152 = vst [vmem:[%s124 + $0x68] sm:$0xff] %v151
                %v153 = vld [vmem:[%s123 + $0xd0] sm:$0xff]
                %154 = vst [vmem:[%s124 + $0x70] sm:$0xff] %v153
                %v155 = vld [vmem:[%s123 + $0xd8] sm:$0xff]
                %156 = vst [vmem:[%s124 + $0x78] sm:$0xff] %v155
                %v157 = vld [vmem:[%s123 + $0x100] sm:$0xff]
                %158 = vst [vmem:[%s124 + $0x80] sm:$0xff] %v157
                %v159 = vld [vmem:[%s123 + $0x108] sm:$0xff]
                %160 = vst [vmem:[%s124 + $0x88] sm:$0xff] %v159
                %v161 = vld [vmem:[%s123 + $0x110] sm:$0xff]
                %162 = vst [vmem:[%s124 + $0x90] sm:$0xff] %v161
                %v163 = vld [vmem:[%s123 + $0x118] sm:$0xff]
                %164 = vst [vmem:[%s124 + $0x98] sm:$0xff] %v163
                %v165 = vld [vmem:[%s123 + $0x140] sm:$0xff]
                %166 = vst [vmem:[%s124 + $0xa0] sm:$0xff] %v165
                %v167 = vld [vmem:[%s123 + $0x148] sm:$0xff]
                %168 = vst [vmem:[%s124 + $0xa8] sm:$0xff] %v167
                %v169 = vld [vmem:[%s123 + $0x150] sm:$0xff]
                %170 = vst [vmem:[%s124 + $0xb0] sm:$0xff] %v169
                %v171 = vld [vmem:[%s123 + $0x158] sm:$0xff]
                %172 = vst [vmem:[%s124 + $0xb8] sm:$0xff] %v171
              $region37: #{image_discriminator.5} parent=31 // loop_footer
                %s122 = sadd.s32 1, %s118
              $region38: #{image_discriminator.5} parent=31 // loop_footer_branch
                %117 = sbr.rel target = $region34
              $region39: #{image_discriminator.5} parent=31 // loop_exit
                _
            $region32: #{image_discriminator.5} parent=27 // pred_fallthru
              _
            // Predicated region
            $region40: #{image_discriminator.5} parent=27 // pred_check
              _
            $region41: #{image_discriminator.5} parent=27 // pred_check_branch
              %174 = sbr.rel target = $region43
            $region42: #{image_discriminator.5} parent=27 // pred_region
              _
            $region43: #{image_discriminator.5} parent=27 // pred_fallthru
              _
          $region28: #{image_discriminator.5} parent=23 // pred_fallthru
            _
          %175 = vnop
        $region24: #{image_discriminator.5} parent=19 // pred_fallthru
          _
      $region20: #{image_discriminator.5} parent=5 // pred_fallthru
        _
      %p176 = scmp.le.s32.totalorder 1, %s8
      %p177 = scmp.lt.s32.totalorder %s8, 3
      %p178 = pnand %p176, %p177
      %p179 = pneg %p178
      // Predicated region
      $region44: #{image_discriminator.5} parent=5 // pred_check
        _
      $region45: #{image_discriminator.5} parent=5 // pred_check_branch
        %181 = sbr.rel (%p178) target = $region47
      $region46: #{image_discriminator.5} parent=5 // pred_region
        %s182 = ssub.s32 %s8, 1
        %s183 = sand.u32 %s42, 1
        %s184 = sand.u32 %s42, 1
        %s185 = smul.addr %s184, 192
        %s186 = scalar_lea.vmem [#allocation2], %s185
        // Predicated region
        $region48: #{image_discriminator.5} parent=46 // pred_check
          %p187 = pneg %p55
        $region49: #{image_discriminator.5} parent=46 // pred_check_branch
          %189 = sbr.rel (%p187) target = $region51
        $region50: #{image_discriminator.5} parent=46 // pred_region
          _
        $region51: #{image_discriminator.5} parent=46 // pred_fallthru
          _
        %p190 = pneg %p29
        %p191 = pneg %p26
        %s192 = sand.u32 %s42, 1
        %s193 = sand.u32 %s42, 1
        %s194 = smul.addr %s193, 192
        %s195 = scalar_lea.vmem [#allocation2], %s194
        %p196 = pneg %p55
        %p197 = pneg %p52
        %p198 = pneg %p81
        %p199 = pneg %p78
        %s200 = sand.u32 %s68, 1
        %s201 = sand.u32 %s68, 1
        %s202 = smul.addr %s201, 64
        %s203 = scalar_lea.vmem [#allocation3], %s202
        %s204 = smul.u32 8, %s13
        %s205 = smul.u32 8, %s13
        %v207 = vld [vmem:[%s186] sm:$0xff]
        %v208 = vld [vmem:[%s186 + $0x8] sm:$0xff]
        %v209 = vld [vmem:[%s186 + $0x10] sm:$0xff]
        %v210 = vld [vmem:[%s186 + $0x18] sm:$0xff]
        %v211 = vld [vmem:[%s186 + $0x20] sm:$0xff]
        %v212 = vld [vmem:[%s186 + $0x28] sm:$0xff]
        %v213 = vld [vmem:[%s186 + $0x30] sm:$0xff]
        %v214 = vld [vmem:[%s186 + $0x38] sm:$0xff]
        %v215 = vld [vmem:[%s186 + $0x40] sm:$0xff]
        %v216 = vld [vmem:[%s186 + $0x48] sm:$0xff]
        %v217 = vld [vmem:[%s186 + $0x50] sm:$0xff]
        %v218 = vld [vmem:[%s186 + $0x58] sm:$0xff]
        %v219 = vld [vmem:[%s186 + $0x60] sm:$0xff]
        %v220 = vld [vmem:[%s186 + $0x68] sm:$0xff]
        %v221 = vld [vmem:[%s186 + $0x70] sm:$0xff]
        %v222 = vld [vmem:[%s186 + $0x78] sm:$0xff]
        %v223 = vld [vmem:[%s186 + $0x80] sm:$0xff]
        %v224 = vld [vmem:[%s186 + $0x88] sm:$0xff]
        %v225 = vld [vmem:[%s186 + $0x90] sm:$0xff]
        %v226 = vld [vmem:[%s186 + $0x98] sm:$0xff]
        %v227 = vld [vmem:[%s186 + $0xa0] sm:$0xff]
        %v228 = vld [vmem:[%s186 + $0xa8] sm:$0xff]
        %v229 = vld [vmem:[%s186 + $0xb0] sm:$0xff]
        %v230 = vld [vmem:[%s186 + $0xb8] sm:$0xff]
        %v231 = vld [vmem:[%s0] sm:$0xf]
        %v232 = vld [vmem:[%s0 + $0x4] sm:$0xf]
        %v235 = vunpack.c.l.b16 %v231
        %v236 = vunpack.c.l.b16 %v232
        %v237 = vpack.c.b16 %v236, %v235
        %v262 = vunpack.c.l.b16 %v207
        %v263 = vunpack.c.h.b16 %v207
        %v264 = vunpack.c.l.b16 %v208
        %v265 = vunpack.c.h.b16 %v208
        %v266 = vunpack.c.l.b16 %v209
        %v267 = vunpack.c.h.b16 %v209
        %v268 = vunpack.c.l.b16 %v210
        %v269 = vunpack.c.h.b16 %v210
        %v270 = vunpack.c.l.b16 %v211
        %v271 = vunpack.c.h.b16 %v211
        %v272 = vunpack.c.l.b16 %v212
        %v273 = vunpack.c.h.b16 %v212
        %v274 = vunpack.c.l.b16 %v213
        %v275 = vunpack.c.h.b16 %v213
        %v276 = vunpack.c.l.b16 %v214
        %v277 = vunpack.c.h.b16 %v214
        %v278 = vunpack.c.l.b16 %v215
        %v279 = vunpack.c.h.b16 %v215
        %v280 = vunpack.c.l.b16 %v216
        %v281 = vunpack.c.h.b16 %v216
        %v282 = vunpack.c.l.b16 %v217
        %v283 = vunpack.c.h.b16 %v217
        %v284 = vunpack.c.l.b16 %v218
        %v285 = vunpack.c.h.b16 %v218
        %v286 = vunpack.c.l.b16 %v219
        %v287 = vunpack.c.h.b16 %v219
        %v288 = vunpack.c.l.b16 %v220
        %v289 = vunpack.c.h.b16 %v220
        %v290 = vunpack.c.l.b16 %v221
        %v291 = vunpack.c.h.b16 %v221
        %v292 = vunpack.c.l.b16 %v222
        %v293 = vunpack.c.h.b16 %v222
        %v294 = vunpack.c.l.b16 %v223
        %v295 = vunpack.c.h.b16 %v223
        %v296 = vunpack.c.l.b16 %v224
        %v297 = vunpack.c.h.b16 %v224
        %v298 = vunpack.c.l.b16 %v225
        %v299 = vunpack.c.h.b16 %v225
        %v300 = vunpack.c.l.b16 %v226
        %v301 = vunpack.c.h.b16 %v226
        %v302 = vunpack.c.l.b16 %v227
        %v303 = vunpack.c.h.b16 %v227
        %v304 = vunpack.c.l.b16 %v228
        %v305 = vunpack.c.h.b16 %v228
        %v306 = vunpack.c.l.b16 %v229
        %v307 = vunpack.c.h.b16 %v229
        %v308 = vunpack.c.l.b16 %v230
        %v309 = vunpack.c.h.b16 %v230
        %v310 = vpack.c.b16 %v270, %v262
        %v311 = vpack.c.b16 %v271, %v263
        %v312 = vpack.c.b16 %v272, %v264
        %v313 = vpack.c.b16 %v273, %v265
        %v314 = vpack.c.b16 %v274, %v266
        %v315 = vpack.c.b16 %v275, %v267
        %v316 = vpack.c.b16 %v276, %v268
        %v317 = vpack.c.b16 %v277, %v269
        %v318 = vpack.c.b16 %v286, %v278
        %v319 = vpack.c.b16 %v287, %v279
        %v320 = vpack.c.b16 %v288, %v280
        %v321 = vpack.c.b16 %v289, %v281
        %v322 = vpack.c.b16 %v290, %v282
        %v323 = vpack.c.b16 %v291, %v283
        %v324 = vpack.c.b16 %v292, %v284
        %v325 = vpack.c.b16 %v293, %v285
        %v326 = vpack.c.b16 %v302, %v294
        %v327 = vpack.c.b16 %v303, %v295
        %v328 = vpack.c.b16 %v304, %v296
        %v329 = vpack.c.b16 %v305, %v297
        %v330 = vpack.c.b16 %v306, %v298
        %v331 = vpack.c.b16 %v307, %v299
        %v332 = vpack.c.b16 %v308, %v300
        %v333 = vpack.c.b16 %v309, %v301
        %vm358 = vcmask 392192
        %v360 = vsel %vm358, %v237, 0
        %362 = vmatprep.subr.bf16.mxu0 0
        %363 = vmatpush1.bf16.msra.mxu0 0
        %364 = vmatprep.subr.bf16.mxu0 0
        %365 = vmatpush1.bf16.msra.mxu0 0
        %366 = vmatprep.subr.bf16.mxu0 0
        %367 = vmatpush1.bf16.msra.mxu0 0
        %368 = vmatprep.subr.bf16.mxu0 0
        %369 = vmatpush1.bf16.msra.mxu0 0
        %370 = vmatprep.subr.bf16.mxu0 0
        %371 = vmatpush1.bf16.msra.mxu0 0
        %372 = vmatprep.subr.bf16.mxu0 %v327
        %373 = vmatpush1.bf16.msra.mxu0 %v326
        %374 = vmatprep.subr.bf16.mxu0 %v319
        %375 = vmatpush1.bf16.msra.mxu0 %v318
        %376 = vmatprep.subr.bf16.mxu0 %v311
        %377 = vmatpush1.bf16.msra.mxu0 %v310
        %378 = vmatprep.subr.bf16.mxu0 0
        %379 = vmatpush2.bf16.msra.mxu0 0
        %380 = vmatprep.subr.bf16.mxu0 0
        %381 = vmatpush2.bf16.msra.mxu0 0
        %382 = vmatprep.subr.bf16.mxu0 0
        %383 = vmatpush2.bf16.msra.mxu0 0
        %384 = vmatprep.subr.bf16.mxu0 0
        %385 = vmatpush2.bf16.msra.mxu0 0
        %386 = vmatprep.subr.bf16.mxu0 0
        %387 = vmatpush2.bf16.msra.mxu0 0
        %388 = vmatprep.subr.bf16.mxu0 0
        %389 = vmatpush2.bf16.msra.mxu0 0
        %390 = vmatprep.subr.bf16.mxu0 0
        %391 = vmatpush2.bf16.msra.mxu0 0
        %392 = vmatprep.subr.bf16.mxu0 0
        %393 = vmatpush2.bf16.msra.mxu0 0
        %394 = vmatprep.mubr.bf16.mxu0 0
        %395 = vmatmul.mubr.bf16.gmra.mxu0 %v360
        %v396 = vpop.f32.mrf.mxu0
        %v397 = vadd.f32 0.0, %v396
        %v398 = vpop.f32.mrf.mxu0
        %v399 = vadd.f32 0.0, %v398
        %v400 = vpop.f32.mrf.mxu0
        %v401 = vadd.f32 0.0, %v400
        %v402 = vpop.f32.mrf.mxu0
        %v403 = vadd.f32 0.0, %v402
        %404 = vdwg.mxu0
        %405 = vmatprep.subr.bf16.mxu0 0
        %406 = vmatpush1.bf16.msra.mxu0 0
        %407 = vmatprep.subr.bf16.mxu0 0
        %408 = vmatpush1.bf16.msra.mxu0 0
        %409 = vmatprep.subr.bf16.mxu0 0
        %410 = vmatpush1.bf16.msra.mxu0 0
        %411 = vmatprep.subr.bf16.mxu0 0
        %412 = vmatpush1.bf16.msra.mxu0 0
        %413 = vmatprep.subr.bf16.mxu0 0
        %414 = vmatpush1.bf16.msra.mxu0 0
        %415 = vmatprep.subr.bf16.mxu0 %v329
        %416 = vmatpush1.bf16.msra.mxu0 %v328
        %417 = vmatprep.subr.bf16.mxu0 %v321
        %418 = vmatpush1.bf16.msra.mxu0 %v320
        %419 = vmatprep.subr.bf16.mxu0 %v313
        %420 = vmatpush1.bf16.msra.mxu0 %v312
        %421 = vmatprep.subr.bf16.mxu0 0
        %422 = vmatpush2.bf16.msra.mxu0 0
        %423 = vmatprep.subr.bf16.mxu0 0
        %424 = vmatpush2.bf16.msra.mxu0 0
        %425 = vmatprep.subr.bf16.mxu0 0
        %426 = vmatpush2.bf16.msra.mxu0 0
        %427 = vmatprep.subr.bf16.mxu0 0
        %428 = vmatpush2.bf16.msra.mxu0 0
        %429 = vmatprep.subr.bf16.mxu0 0
        %430 = vmatpush2.bf16.msra.mxu0 0
        %431 = vmatprep.subr.bf16.mxu0 0
        %432 = vmatpush2.bf16.msra.mxu0 0
        %433 = vmatprep.subr.bf16.mxu0 0
        %434 = vmatpush2.bf16.msra.mxu0 0
        %435 = vmatprep.subr.bf16.mxu0 0
        %436 = vmatpush2.bf16.msra.mxu0 0
        %437 = vmatprep.mubr.bf16.mxu0 0
        %438 = vmatmul.mubr.bf16.gmra.mxu0 %v360
        %v439 = vpop.f32.mrf.mxu0
        %v440 = vadd.f32 0.0, %v439
        %v441 = vpop.f32.mrf.mxu0
        %v442 = vadd.f32 0.0, %v441
        %v443 = vpop.f32.mrf.mxu0
        %v444 = vadd.f32 0.0, %v443
        %v445 = vpop.f32.mrf.mxu0
        %v446 = vadd.f32 0.0, %v445
        %447 = vdwg.mxu0
        %448 = vmatprep.subr.bf16.mxu0 0
        %449 = vmatpush1.bf16.msra.mxu0 0
        %450 = vmatprep.subr.bf16.mxu0 0
        %451 = vmatpush1.bf16.msra.mxu0 0
        %452 = vmatprep.subr.bf16.mxu0 0
        %453 = vmatpush1.bf16.msra.mxu0 0
        %454 = vmatprep.subr.bf16.mxu0 0
        %455 = vmatpush1.bf16.msra.mxu0 0
        %456 = vmatprep.subr.bf16.mxu0 0
        %457 = vmatpush1.bf16.msra.mxu0 0
        %458 = vmatprep.subr.bf16.mxu0 %v331
        %459 = vmatpush1.bf16.msra.mxu0 %v330
        %460 = vmatprep.subr.bf16.mxu0 %v323
        %461 = vmatpush1.bf16.msra.mxu0 %v322
        %462 = vmatprep.subr.bf16.mxu0 %v315
        %463 = vmatpush1.bf16.msra.mxu0 %v314
        %464 = vmatprep.subr.bf16.mxu0 0
        %465 = vmatpush2.bf16.msra.mxu0 0
        %466 = vmatprep.subr.bf16.mxu0 0
        %467 = vmatpush2.bf16.msra.mxu0 0
        %468 = vmatprep.subr.bf16.mxu0 0
        %469 = vmatpush2.bf16.msra.mxu0 0
        %470 = vmatprep.subr.bf16.mxu0 0
        %471 = vmatpush2.bf16.msra.mxu0 0
        %472 = vmatprep.subr.bf16.mxu0 0
        %473 = vmatpush2.bf16.msra.mxu0 0
        %474 = vmatprep.subr.bf16.mxu0 0
        %475 = vmatpush2.bf16.msra.mxu0 0
        %476 = vmatprep.subr.bf16.mxu0 0
        %477 = vmatpush2.bf16.msra.mxu0 0
        %478 = vmatprep.subr.bf16.mxu0 0
        %479 = vmatpush2.bf16.msra.mxu0 0
        %480 = vmatprep.mubr.bf16.mxu0 0
        %481 = vmatmul.mubr.bf16.gmra.mxu0 %v360
        %v482 = vpop.f32.mrf.mxu0
        %v483 = vadd.f32 0.0, %v482
        %v484 = vpop.f32.mrf.mxu0
        %v485 = vadd.f32 0.0, %v484
        %v486 = vpop.f32.mrf.mxu0
        %v487 = vadd.f32 0.0, %v486
        %v488 = vpop.f32.mrf.mxu0
        %v489 = vadd.f32 0.0, %v488
        %490 = vdwg.mxu0
        %491 = vmatprep.subr.bf16.mxu0 0
        %492 = vmatpush1.bf16.msra.mxu0 0
        %493 = vmatprep.subr.bf16.mxu0 0
        %494 = vmatpush1.bf16.msra.mxu0 0
        %495 = vmatprep.subr.bf16.mxu0 0
        %496 = vmatpush1.bf16.msra.mxu0 0
        %497 = vmatprep.subr.bf16.mxu0 0
        %498 = vmatpush1.bf16.msra.mxu0 0
        %499 = vmatprep.subr.bf16.mxu0 0
        %500 = vmatpush1.bf16.msra.mxu0 0
        %501 = vmatprep.subr.bf16.mxu0 %v333
        %502 = vmatpush1.bf16.msra.mxu0 %v332
        %503 = vmatprep.subr.bf16.mxu0 %v325
        %504 = vmatpush1.bf16.msra.mxu0 %v324
        %505 = vmatprep.subr.bf16.mxu0 %v317
        %506 = vmatpush1.bf16.msra.mxu0 %v316
        %507 = vmatprep.subr.bf16.mxu0 0
        %508 = vmatpush2.bf16.msra.mxu0 0
        %509 = vmatprep.subr.bf16.mxu0 0
        %510 = vmatpush2.bf16.msra.mxu0 0
        %511 = vmatprep.subr.bf16.mxu0 0
        %512 = vmatpush2.bf16.msra.mxu0 0
        %513 = vmatprep.subr.bf16.mxu0 0
        %514 = vmatpush2.bf16.msra.mxu0 0
        %515 = vmatprep.subr.bf16.mxu0 0
        %516 = vmatpush2.bf16.msra.mxu0 0
        %517 = vmatprep.subr.bf16.mxu0 0
        %518 = vmatpush2.bf16.msra.mxu0 0
        %519 = vmatprep.subr.bf16.mxu0 0
        %520 = vmatpush2.bf16.msra.mxu0 0
        %521 = vmatprep.subr.bf16.mxu0 0
        %522 = vmatpush2.bf16.msra.mxu0 0
        %523 = vmatprep.mubr.bf16.mxu0 0
        %524 = vmatmul.mubr.bf16.gmra.mxu0 %v360
        %v525 = vpop.f32.mrf.mxu0
        %v526 = vadd.f32 0.0, %v525
        %v527 = vpop.f32.mrf.mxu0
        %v528 = vadd.f32 0.0, %v527
        %v529 = vpop.f32.mrf.mxu0
        %v530 = vadd.f32 0.0, %v529
        %v531 = vpop.f32.mrf.mxu0
        %v532 = vadd.f32 0.0, %v531
        %533 = vdwg.mxu0
        %vm534 = vcmp.gt.f32.partialorder %v397, 0.0
        %vm535 = vcmp.gt.f32.partialorder %v399, 0.0
        %vm536 = vcmp.gt.f32.partialorder %v440, 0.0
        %vm537 = vcmp.gt.f32.partialorder %v442, 0.0
        %vm538 = vcmp.gt.f32.partialorder %v483, 0.0
        %vm539 = vcmp.gt.f32.partialorder %v485, 0.0
        %vm540 = vcmp.gt.f32.partialorder %v526, 0.0
        %vm541 = vcmp.gt.f32.partialorder %v528, 0.0
        %vm542 = vcmp.gt.f32.partialorder %v401, 0.0
        %vm543 = vcmp.gt.f32.partialorder %v403, 0.0
        %vm544 = vcmp.gt.f32.partialorder %v444, 0.0
        %vm545 = vcmp.gt.f32.partialorder %v446, 0.0
        %vm546 = vcmp.gt.f32.partialorder %v487, 0.0
        %vm547 = vcmp.gt.f32.partialorder %v489, 0.0
        %vm548 = vcmp.gt.f32.partialorder %v530, 0.0
        %vm549 = vcmp.gt.f32.partialorder %v532, 0.0
        %v550 = vmul.f32 %v397, 0.2
        %v551 = vmul.f32 %v399, 0.2
        %v552 = vmul.f32 %v440, 0.2
        %v553 = vmul.f32 %v442, 0.2
        %v554 = vmul.f32 %v483, 0.2
        %v555 = vmul.f32 %v485, 0.2
        %v556 = vmul.f32 %v526, 0.2
        %v557 = vmul.f32 %v528, 0.2
        %v558 = vmul.f32 %v401, 0.2
        %v559 = vmul.f32 %v403, 0.2
        %v560 = vmul.f32 %v444, 0.2
        %v561 = vmul.f32 %v446, 0.2
        %v562 = vmul.f32 %v487, 0.2
        %v563 = vmul.f32 %v489, 0.2
        %v564 = vmul.f32 %v530, 0.2
        %v565 = vmul.f32 %v532, 0.2
        %v566 = vsel %vm534, %v397, %v550
        %v567 = vsel %vm535, %v399, %v551
        %v568 = vsel %vm536, %v440, %v552
        %v569 = vsel %vm537, %v442, %v553
        %v570 = vsel %vm538, %v483, %v554
        %v571 = vsel %vm539, %v485, %v555
        %v572 = vsel %vm540, %v526, %v556
        %v573 = vsel %vm541, %v528, %v557
        %v574 = vsel %vm542, %v401, %v558
        %v575 = vsel %vm543, %v403, %v559
        %v576 = vsel %vm544, %v444, %v560
        %v577 = vsel %vm545, %v446, %v561
        %v578 = vsel %vm546, %v487, %v562
        %v579 = vsel %vm547, %v489, %v563
        %v580 = vsel %vm548, %v530, %v564
        %v581 = vsel %vm549, %v532, %v565
        %v582 = vpack.c.bf16 %v574, %v566
        %v583 = vpack.c.bf16 %v575, %v567
        %v584 = vpack.c.bf16 %v576, %v568
        %v585 = vpack.c.bf16 %v577, %v569
        %v586 = vpack.c.bf16 %v578, %v570
        %v587 = vpack.c.bf16 %v579, %v571
        %v588 = vpack.c.bf16 %v580, %v572
        %v589 = vpack.c.bf16 %v581, %v573
        %v598 = vunpack.c.l.b16 %v582
        %v599 = vunpack.c.l.b16 %v583
        %v600 = vunpack.c.l.b16 %v584
        %v601 = vunpack.c.l.b16 %v585
        %v602 = vunpack.c.l.b16 %v586
        %v603 = vunpack.c.l.b16 %v587
        %v604 = vunpack.c.l.b16 %v588
        %v605 = vunpack.c.l.b16 %v589
        %v606 = vunpack.c.h.b16 %v582
        %v607 = vunpack.c.h.b16 %v583
        %v608 = vunpack.c.h.b16 %v584
        %v609 = vunpack.c.h.b16 %v585
        %v610 = vunpack.c.h.b16 %v586
        %v611 = vunpack.c.h.b16 %v587
        %v612 = vunpack.c.h.b16 %v588
        %v613 = vunpack.c.h.b16 %v589
        %v614 = vpack.c.b16 %v599, %v598
        %v615 = vpack.c.b16 %v601, %v600
        %v616 = vpack.c.b16 %v603, %v602
        %v617 = vpack.c.b16 %v605, %v604
        %v618 = vpack.c.b16 %v607, %v606
        %v619 = vpack.c.b16 %v609, %v608
        %v620 = vpack.c.b16 %v611, %v610
        %v621 = vpack.c.b16 %v613, %v612
        %630 = vst [vmem:[%s203] sm:$0xff] %v614
        %631 = vst [vmem:[%s203 + $0x8] sm:$0xff] %v615
        %632 = vst [vmem:[%s203 + $0x10] sm:$0xff] %v616
        %633 = vst [vmem:[%s203 + $0x18] sm:$0xff] %v617
        %634 = vst [vmem:[%s203 + $0x20] sm:$0xff] %v618
        %635 = vst [vmem:[%s203 + $0x28] sm:$0xff] %v619
        %636 = vst [vmem:[%s203 + $0x30] sm:$0xff] %v620
        %637 = vst [vmem:[%s203 + $0x38] sm:$0xff] %v621
        %s638 = sand.u32 %s68, 1
        %s639 = sand.u32 %s68, 1
        %s640 = smul.addr %s639, 64
        %s641 = scalar_lea.vmem [#allocation3], %s640
        // Predicated region
        $region52: #{image_discriminator.5} parent=46 // pred_check
          %p642 = pneg %p78
        $region53: #{image_discriminator.5} parent=46 // pred_check_branch
          %644 = sbr.rel (%p642) target = $region55
        $region54: #{image_discriminator.5} parent=46 // pred_region
          %s645 = smul.u32 8, %s13
          %s646 = smul.addr %s645, 4
          %s647 = scalar_lea.vmem %s2, %s646
          // Predicated region
          $region56: #{image_discriminator.5} parent=54 // pred_check
            _
          $region57: #{image_discriminator.5} parent=54 // pred_check_branch
            %649 = sbr.rel (0) target = $region59
          $region58: #{image_discriminator.5} parent=54 // pred_region
            // Predicated region
            $region60: #{image_discriminator.5} parent=58 // pred_check
              _
            $region61: #{image_discriminator.5} parent=58 // pred_check_branch
              %651 = sbr.rel (0) target = $region63
            $region62: #{image_discriminator.5} parent=58 // pred_region
              loop: start=0, step=1, limit=1
              $region64: #{image_discriminator.5} parent=62 // loop_pre_header
                _
              $region65: #{image_discriminator.5} parent=62 // loop_header
                %s653 = sphi 0, %s657
                %p654 = scmp.ge.s32.totalorder %s653, 1
                %s658 = sphi %s641, %s641
                %s659 = sphi %s647, %s647
              $region66: #{image_discriminator.5} parent=62 // loop_header_branch
                %656 = sbr.rel (%p654) target = $region70
              $region67: #{image_discriminator.5} parent=62 // loop_body
                %v660 = vld [vmem:[%s658] sm:$0xff]
                %661 = vst [vmem:[%s659] sm:$0xff] %v660
                %v662 = vld [vmem:[%s658 + $0x8] sm:$0xff]
                %663 = vst [vmem:[%s659 + $0x8] sm:$0xff] %v662
                %v664 = vld [vmem:[%s658 + $0x10] sm:$0xff]
                %665 = vst [vmem:[%s659 + $0x10] sm:$0xff] %v664
                %v666 = vld [vmem:[%s658 + $0x18] sm:$0xff]
                %667 = vst [vmem:[%s659 + $0x18] sm:$0xff] %v666
                %v668 = vld [vmem:[%s658 + $0x20] sm:$0xff]
                %669 = vst [vmem:[%s659 + $0x40] sm:$0xff] %v668
                %v670 = vld [vmem:[%s658 + $0x28] sm:$0xff]
                %671 = vst [vmem:[%s659 + $0x48] sm:$0xff] %v670
                %v672 = vld [vmem:[%s658 + $0x30] sm:$0xff]
                %673 = vst [vmem:[%s659 + $0x50] sm:$0xff] %v672
                %v674 = vld [vmem:[%s658 + $0x38] sm:$0xff]
                %675 = vst [vmem:[%s659 + $0x58] sm:$0xff] %v674
              $region68: #{image_discriminator.5} parent=62 // loop_footer
                %s657 = sadd.s32 1, %s653
              $region69: #{image_discriminator.5} parent=62 // loop_footer_branch
                %652 = sbr.rel target = $region65
              $region70: #{image_discriminator.5} parent=62 // loop_exit
                _
            $region63: #{image_discriminator.5} parent=58 // pred_fallthru
              _
            // Predicated region
            $region71: #{image_discriminator.5} parent=58 // pred_check
              _
            $region72: #{image_discriminator.5} parent=58 // pred_check_branch
              %677 = sbr.rel target = $region74
            $region73: #{image_discriminator.5} parent=58 // pred_region
              _
            $region74: #{image_discriminator.5} parent=58 // pred_fallthru
              _
          $region59: #{image_discriminator.5} parent=54 // pred_fallthru
            _
          %678 = vnop
        $region55: #{image_discriminator.5} parent=46 // pred_fallthru
          _
      $region47: #{image_discriminator.5} parent=5 // pred_fallthru
        _
      %p679 = scmp.le.s32.totalorder 2, %s8
      // Predicated region
      $region75: #{image_discriminator.5} parent=5 // pred_check
        %p680 = pneg %p679
      $region76: #{image_discriminator.5} parent=5 // pred_check_branch
        %682 = sbr.rel (%p680) target = $region78
      $region77: #{image_discriminator.5} parent=5 // pred_region
        %s683 = ssub.s32 %s8, 2
        // Predicated region
        $region79: #{image_discriminator.5} parent=77 // pred_check
          %p684 = pneg %p84
        $region80: #{image_discriminator.5} parent=77 // pred_check_branch
          %686 = sbr.rel (%p684) target = $region82
        $region81: #{image_discriminator.5} parent=77 // pred_region
          %s687 = sand.u32 %s69, 1
          %s688 = sand.u32 %s69, 1
          %s689 = smul.addr %s688, 64
          %s690 = scalar_lea.vmem [#allocation3], %s689
        $region82: #{image_discriminator.5} parent=77 // pred_fallthru
          _
      $region78: #{image_discriminator.5} parent=5 // pred_fallthru
        _
    $region6: #{image_discriminator.5} parent=1 // loop_footer
      %s12 = sadd.s32 1, %s8
    $region7: #{image_discriminator.5} parent=1 // loop_footer_branch
      %7 = sbr.rel target = $region3
    $region8: #{image_discriminator.5} parent=1 // loop_exit
      _

// kernel: image_discriminator.6
$region0: #{image_discriminator.6}
  #allocation0 [shape = 'u32[]', space=smem, size = 0x4, offset = 0x4, fixed_abs, tag = 'smem constant byte address 0x4 - core index']
  #allocation1 [shape = 'u32[144,128]{1,0:T(1,128)}', space=vmem, size = 0x12000, scoped, tag = 'internal scratch']
  %s0 = inlined_call_operand.vmem [shape: bf16[32,256], index: 0, kind: input, shape index: {}]
  %s1 = inlined_call_operand.vmem [shape: bf16[256,512], index: 1, kind: input, shape index: {}]
  %s2 = inlined_call_operand.vmem [shape: bf16[32,512], index: 2, kind: output, shape index: {0}]
  %s3 = inlined_call_operand.vmem [shape: f32[2,32,2], index: 3, kind: output, shape index: {1}]
  %4 = xla_tuple %s2, %s3
  %s5 = sld [smem:[#allocation0]]
  $region121: #{image_discriminator.6} parent=0
    _
  %s7 = ssub.s32 1, %s5
  %s8 = scalar_select 0, %s7, %s5
  $region1: #{image_discriminator.6} parent=0
    #allocation2 [shape = 'u8[262144]{0}', space=vmem, size = 0x40000, scoped, tag = 'input window, operand 1']
    #allocation3 [shape = 'u8[32768]{0}', space=vmem, size = 0x8000, scoped, tag = 'output window, operand 0']
    loop: start=0, step=1, limit=4
    $region2: #{image_discriminator.6} parent=1 // loop_pre_header
      _
    $region3: #{image_discriminator.6} parent=1 // loop_header
      %s10 = sphi 0, %s14
      %p11 = scmp.ge.s32.totalorder %s10, 4
      %s18 = sphi 0, %s18
      %s20 = sphi 0, %s18
      %s21 = sphi 0, %s20
      %s35 = sphi 0, %s21
      %s41 = sphi 0, %s43
      %s44 = sphi 0, %s41
      %s45 = sphi 0, %s44
      %s61 = sphi 0, %s45
      %s67 = sphi 0, %s69
      %s70 = sphi 0, %s67
      %s71 = sphi 0, %s70
      %s87 = sphi 0, %s71
      %s93 = sphi 0, %s95
      %s96 = sphi 0, %s93
      %s97 = sphi 0, %s96
      %s113 = sphi 0, %s97
    $region4: #{image_discriminator.6} parent=1 // loop_header_branch
      %13 = sbr.rel (%p11) target = $region8
    $region5: #{image_discriminator.6} parent=1 // loop_body
      %s15 = ssub.s32 %s10, 1
      %s16 = ssub.s32 %s10, 2
      %s17 = sadd.s32 %s10, 1
      %s19 = sadd.s32 %s18, 1
      %p22 = scmp.eq.s32.totalorder %s10, 1
      %p23 = scmp.ne.s32.totalorder %s18, %s20
      %p24 = scmp.eq.s32.totalorder %s10, 0
      %p25 = por %p23, %p24
      %p26 = scmp.ne.s32.totalorder %s18, %s20
      %p27 = scmp.eq.s32.totalorder %s15, 1
      %p28 = por %p26, %p27
      %p29 = scmp.ne.s32.totalorder %s20, %s21
      %p30 = scmp.eq.s32.totalorder %s15, 0
      %p31 = por %p29, %p30
      %p32 = scmp.ne.s32.totalorder %s20, %s21
      %p33 = scmp.eq.s32.totalorder %s16, 1
      %p34 = por %p32, %p33
      %p36 = scmp.ne.s32.totalorder %s21, %s35
      %p37 = scmp.eq.s32.totalorder %s16, 0
      %p38 = por %p36, %p37
      %s39 = ssub.s32 %s10, %s17
      %p40 = scmp.eq.s32.totalorder %s39, 0
      %s42 = sadd.s32 %s41, 1
      %s43 = scalar_select %p40, %s41, %s42
      %p46 = pneg %p40
      %p47 = scmp.eq.s32.totalorder %s10, 1
      %p48 = por %p46, %p47
      %p49 = scmp.ne.s32.totalorder %s41, %s44
      %p50 = scmp.eq.s32.totalorder %s10, 0
      %p51 = por %p49, %p50
      %p52 = scmp.ne.s32.totalorder %s41, %s44
      %p53 = scmp.eq.s32.totalorder %s15, 1
      %p54 = por %p52, %p53
      %p55 = scmp.ne.s32.totalorder %s44, %s45
      %p56 = scmp.eq.s32.totalorder %s15, 0
      %p57 = por %p55, %p56
      %p58 = scmp.ne.s32.totalorder %s44, %s45
      %p59 = scmp.eq.s32.totalorder %s16, 1
      %p60 = por %p58, %p59
      %p62 = scmp.ne.s32.totalorder %s45, %s61
      %p63 = scmp.eq.s32.totalorder %s16, 0
      %p64 = por %p62, %p63
      %s65 = ssub.s32 %s10, %s17
      %p66 = scmp.eq.s32.totalorder %s65, 0
      %s68 = sadd.s32 %s67, 1
      %s69 = scalar_select %p66, %s67, %s68
      %p72 = pneg %p66
      %p73 = scmp.eq.s32.totalorder %s10, 1
      %p74 = por %p72, %p73
      %p75 = scmp.ne.s32.totalorder %s67, %s70
      %p76 = scmp.eq.s32.totalorder %s10, 0
      %p77 = por %p75, %p76
      %p78 = scmp.ne.s32.totalorder %s67, %s70
      %p79 = scmp.eq.s32.totalorder %s15, 1
      %p80 = por %p78, %p79
      %p81 = scmp.ne.s32.totalorder %s70, %s71
      %p82 = scmp.eq.s32.totalorder %s15, 0
      %p83 = por %p81, %p82
      %p84 = scmp.ne.s32.totalorder %s70, %s71
      %p85 = scmp.eq.s32.totalorder %s16, 1
      %p86 = por %p84, %p85
      %p88 = scmp.ne.s32.totalorder %s71, %s87
      %p89 = scmp.eq.s32.totalorder %s16, 0
      %p90 = por %p88, %p89
      %s91 = ssub.s32 %s10, %s17
      %p92 = scmp.eq.s32.totalorder %s91, 0
      %s94 = sadd.s32 %s93, 1
      %s95 = scalar_select %p92, %s93, %s94
      %p98 = pneg %p92
      %p99 = scmp.eq.s32.totalorder %s10, 1
      %p100 = por %p98, %p99
      %p101 = scmp.ne.s32.totalorder %s93, %s96
      %p102 = scmp.eq.s32.totalorder %s10, 0
      %p103 = por %p101, %p102
      %p104 = scmp.ne.s32.totalorder %s93, %s96
      %p105 = scmp.eq.s32.totalorder %s15, 1
      %p106 = por %p104, %p105
      %p107 = scmp.ne.s32.totalorder %s96, %s97
      %p108 = scmp.eq.s32.totalorder %s15, 0
      %p109 = por %p107, %p108
      %p110 = scmp.ne.s32.totalorder %s96, %s97
      %p111 = scmp.eq.s32.totalorder %s16, 1
      %p112 = por %p110, %p111
      %p114 = scmp.ne.s32.totalorder %s97, %s113
      %p115 = scmp.eq.s32.totalorder %s16, 0
      %p116 = por %p114, %p115
      %p117 = scmp.le.s32.totalorder 1, %s10
      %p118 = scmp.lt.s32.totalorder %s10, 3
      %p119 = pnand %p117, %p118
      %p120 = pneg %p119
      // Predicated region
      $region9: #{image_discriminator.6} parent=5 // pred_check
        _
      $region10: #{image_discriminator.6} parent=5 // pred_check_branch
        %122 = sbr.rel (%p119) target = $region12
      $region11: #{image_discriminator.6} parent=5 // pred_region
        %s123 = ssub.s32 %s10, 1
        // Predicated region
        $region13: #{image_discriminator.6} parent=11 // pred_check
          %p124 = pneg %p31
        $region14: #{image_discriminator.6} parent=11 // pred_check_branch
          %126 = sbr.rel (%p124) target = $region16
        $region15: #{image_discriminator.6} parent=11 // pred_region
          _
        $region16: #{image_discriminator.6} parent=11 // pred_fallthru
          _
      $region12: #{image_discriminator.6} parent=5 // pred_fallthru
        _
      %p127 = scmp.lt.s32.totalorder %s10, 2
      // Predicated region
      $region17: #{image_discriminator.6} parent=5 // pred_check
        %p128 = pneg %p127
      $region18: #{image_discriminator.6} parent=5 // pred_check_branch
        %130 = sbr.rel (%p128) target = $region20
      $region19: #{image_discriminator.6} parent=5 // pred_region
        // Predicated region
        $region21: #{image_discriminator.6} parent=19 // pred_check
          %p131 = pneg %p51
        $region22: #{image_discriminator.6} parent=19 // pred_check_branch
          %133 = sbr.rel (%p131) target = $region24
        $region23: #{image_discriminator.6} parent=19 // pred_region
          %s134 = sand.u32 %s41, 1
          %s135 = sand.u32 %s41, 1
          %s136 = smul.addr %s135, 256
          %s137 = scalar_lea.vmem [#allocation2], %s136
          %s138 = smul.u32 2, %s10
          %s139 = smul.addr %s138, 4
          %s140 = scalar_lea.vmem %s1, %s139
          // Predicated region
          $region25: #{image_discriminator.6} parent=23 // pred_check
            _
          $region26: #{image_discriminator.6} parent=23 // pred_check_branch
            %142 = sbr.rel (0) target = $region28
          $region27: #{image_discriminator.6} parent=23 // pred_region
            // Predicated region
            $region29: #{image_discriminator.6} parent=27 // pred_check
              _
            $region30: #{image_discriminator.6} parent=27 // pred_check_branch
              %144 = sbr.rel (0) target = $region32
            $region31: #{image_discriminator.6} parent=27 // pred_region
              // Predicated region
              $region44: #{image_discriminator.6} parent=31 // pred_check
                _
              $region45: #{image_discriminator.6} parent=31 // pred_check_branch
                %222 = sbr.rel (0) target = $region47
              $region46: #{image_discriminator.6} parent=31 // pred_region
                loop: start=0, step=1, limit=1
                $region48: #{image_discriminator.6} parent=46 // loop_pre_header
                  _
                $region49: #{image_discriminator.6} parent=46 // loop_header
                  %s224 = sphi 0, %s228
                  %p225 = scmp.ge.s32.totalorder %s224, 1
                  %s229 = sphi %s140, %s140
                  %s230 = sphi %s137, %s137
                $region50: #{image_discriminator.6} parent=46 // loop_header_branch
                  %227 = sbr.rel (%p225) target = $region54
                $region51: #{image_discriminator.6} parent=46 // loop_body
                  %v231 = vld [vmem:[%s229] sm:$0xff]
                  %232 = vst [vmem:[%s230] sm:$0xff] %v231
                  %v233 = vld [vmem:[%s229 + $0x10] sm:$0xff]
                  %234 = vst [vmem:[%s230 + $0x8] sm:$0xff] %v233
                  %v235 = vld [vmem:[%s229 + $0x20] sm:$0xff]
                  %236 = vst [vmem:[%s230 + $0x10] sm:$0xff] %v235
                  %v237 = vld [vmem:[%s229 + $0x30] sm:$0xff]
                  %238 = vst [vmem:[%s230 + $0x18] sm:$0xff] %v237
                  %v239 = vld [vmem:[%s229 + $0x40] sm:$0xff]
                  %240 = vst [vmem:[%s230 + $0x20] sm:$0xff] %v239
                  %v241 = vld [vmem:[%s229 + $0x50] sm:$0xff]
                  %242 = vst [vmem:[%s230 + $0x28] sm:$0xff] %v241
                  %v243 = vld [vmem:[%s229 + $0x60] sm:$0xff]
                  %244 = vst [vmem:[%s230 + $0x30] sm:$0xff] %v243
                  %v245 = vld [vmem:[%s229 + $0x70] sm:$0xff]
                  %246 = vst [vmem:[%s230 + $0x38] sm:$0xff] %v245
                  %v247 = vld [vmem:[%s229 + $0x80] sm:$0xff]
                  %248 = vst [vmem:[%s230 + $0x40] sm:$0xff] %v247
                  %v249 = vld [vmem:[%s229 + $0x90] sm:$0xff]
                  %250 = vst [vmem:[%s230 + $0x48] sm:$0xff] %v249
                  %v251 = vld [vmem:[%s229 + $0xa0] sm:$0xff]
                  %252 = vst [vmem:[%s230 + $0x50] sm:$0xff] %v251
                  %v253 = vld [vmem:[%s229 + $0xb0] sm:$0xff]
                  %254 = vst [vmem:[%s230 + $0x58] sm:$0xff] %v253
                  %v255 = vld [vmem:[%s229 + $0xc0] sm:$0xff]
                  %256 = vst [vmem:[%s230 + $0x60] sm:$0xff] %v255
                  %v257 = vld [vmem:[%s229 + $0xd0] sm:$0xff]
                  %258 = vst [vmem:[%s230 + $0x68] sm:$0xff] %v257
                  %v259 = vld [vmem:[%s229 + $0xe0] sm:$0xff]
                  %260 = vst [vmem:[%s230 + $0x70] sm:$0xff] %v259
                  %v261 = vld [vmem:[%s229 + $0xf0] sm:$0xff]
                  %262 = vst [vmem:[%s230 + $0x78] sm:$0xff] %v261
                  %v263 = vld [vmem:[%s229 + $0x100] sm:$0xff]
                  %264 = vst [vmem:[%s230 + $0x80] sm:$0xff] %v263
                  %v265 = vld [vmem:[%s229 + $0x110] sm:$0xff]
                  %266 = vst [vmem:[%s230 + $0x88] sm:$0xff] %v265
                  %v267 = vld [vmem:[%s229 + $0x120] sm:$0xff]
                  %268 = vst [vmem:[%s230 + $0x90] sm:$0xff] %v267
                  %v269 = vld [vmem:[%s229 + $0x130] sm:$0xff]
                  %270 = vst [vmem:[%s230 + $0x98] sm:$0xff] %v269
                  %v271 = vld [vmem:[%s229 + $0x140] sm:$0xff]
                  %272 = vst [vmem:[%s230 + $0xa0] sm:$0xff] %v271
                  %v273 = vld [vmem:[%s229 + $0x150] sm:$0xff]
                  %274 = vst [vmem:[%s230 + $0xa8] sm:$0xff] %v273
                  %v275 = vld [vmem:[%s229 + $0x160] sm:$0xff]
                  %276 = vst [vmem:[%s230 + $0xb0] sm:$0xff] %v275
                  %v277 = vld [vmem:[%s229 + $0x170] sm:$0xff]
                  %278 = vst [vmem:[%s230 + $0xb8] sm:$0xff] %v277
                  %v279 = vld [vmem:[%s229 + $0x180] sm:$0xff]
                  %280 = vst [vmem:[%s230 + $0xc0] sm:$0xff] %v279
                  %v281 = vld [vmem:[%s229 + $0x190] sm:$0xff]
                  %282 = vst [vmem:[%s230 + $0xc8] sm:$0xff] %v281
                  %v283 = vld [vmem:[%s229 + $0x1a0] sm:$0xff]
                  %284 = vst [vmem:[%s230 + $0xd0] sm:$0xff] %v283
                  %v285 = vld [vmem:[%s229 + $0x1b0] sm:$0xff]
                  %286 = vst [vmem:[%s230 + $0xd8] sm:$0xff] %v285
                  %v287 = vld [vmem:[%s229 + $0x1c0] sm:$0xff]
                  %288 = vst [vmem:[%s230 + $0xe0] sm:$0xff] %v287
                  %v289 = vld [vmem:[%s229 + $0x1d0] sm:$0xff]
                  %290 = vst [vmem:[%s230 + $0xe8] sm:$0xff] %v289
                  %v291 = vld [vmem:[%s229 + $0x1e0] sm:$0xff]
                  %292 = vst [vmem:[%s230 + $0xf0] sm:$0xff] %v291
                  %v293 = vld [vmem:[%s229 + $0x1f0] sm:$0xff]
                  %294 = vst [vmem:[%s230 + $0xf8] sm:$0xff] %v293
                $region52: #{image_discriminator.6} parent=46 // loop_footer
                  %s228 = sadd.s32 1, %s224
                $region53: #{image_discriminator.6} parent=46 // loop_footer_branch
                  %223 = sbr.rel target = $region49
                $region54: #{image_discriminator.6} parent=46 // loop_exit
                  _
              $region47: #{image_discriminator.6} parent=31 // pred_fallthru
                _
              // Predicated region
              $region55: #{image_discriminator.6} parent=31 // pred_check
                _
              $region56: #{image_discriminator.6} parent=31 // pred_check_branch
                %296 = sbr.rel target = $region58
              $region57: #{image_discriminator.6} parent=31 // pred_region
                _
              $region58: #{image_discriminator.6} parent=31 // pred_fallthru
                _
            $region32: #{image_discriminator.6} parent=27 // pred_fallthru
              _
            // Predicated region
            $region33: #{image_discriminator.6} parent=27 // pred_check
              _
            $region34: #{image_discriminator.6} parent=27 // pred_check_branch
              %146 = sbr.rel target = $region36
            $region35: #{image_discriminator.6} parent=27 // pred_region
              %s148 = ssub.s32 256, 1
              loop: start=0, step=1, limit=1
              $region37: #{image_discriminator.6} parent=35 // loop_pre_header
                _
              $region38: #{image_discriminator.6} parent=35 // loop_header
                %s150 = sphi 0, %s154
                %p151 = scmp.ge.s32.totalorder %s150, 1
                %s155 = sphi %s140, %s140
                %s156 = sphi %s137, %s137
              $region39: #{image_discriminator.6} parent=35 // loop_header_branch
                %153 = sbr.rel (%p151) target = $region43
              $region40: #{image_discriminator.6} parent=35 // loop_body
                %v157 = vld [vmem:[%s155] sm:%s148]
                %158 = vst [vmem:[%s156] sm:%s148] %v157
                %v159 = vld [vmem:[%s155 + $0x10] sm:%s148]
                %160 = vst [vmem:[%s156 + $0x8] sm:%s148] %v159
                %v161 = vld [vmem:[%s155 + $0x20] sm:%s148]
                %162 = vst [vmem:[%s156 + $0x10] sm:%s148] %v161
                %v163 = vld [vmem:[%s155 + $0x30] sm:%s148]
                %164 = vst [vmem:[%s156 + $0x18] sm:%s148] %v163
                %v165 = vld [vmem:[%s155 + $0x40] sm:%s148]
                %166 = vst [vmem:[%s156 + $0x20] sm:%s148] %v165
                %v167 = vld [vmem:[%s155 + $0x50] sm:%s148]
                %168 = vst [vmem:[%s156 + $0x28] sm:%s148] %v167
                %v169 = vld [vmem:[%s155 + $0x60] sm:%s148]
                %170 = vst [vmem:[%s156 + $0x30] sm:%s148] %v169
                %v171 = vld [vmem:[%s155 + $0x70] sm:%s148]
                %172 = vst [vmem:[%s156 + $0x38] sm:%s148] %v171
                %v173 = vld [vmem:[%s155 + $0x80] sm:%s148]
                %174 = vst [vmem:[%s156 + $0x40] sm:%s148] %v173
                %v175 = vld [vmem:[%s155 + $0x90] sm:%s148]
                %176 = vst [vmem:[%s156 + $0x48] sm:%s148] %v175
                %v177 = vld [vmem:[%s155 + $0xa0] sm:%s148]
                %178 = vst [vmem:[%s156 + $0x50] sm:%s148] %v177
                %v179 = vld [vmem:[%s155 + $0xb0] sm:%s148]
                %180 = vst [vmem:[%s156 + $0x58] sm:%s148] %v179
                %v181 = vld [vmem:[%s155 + $0xc0] sm:%s148]
                %182 = vst [vmem:[%s156 + $0x60] sm:%s148] %v181
                %v183 = vld [vmem:[%s155 + $0xd0] sm:%s148]
                %184 = vst [vmem:[%s156 + $0x68] sm:%s148] %v183
                %v185 = vld [vmem:[%s155 + $0xe0] sm:%s148]
                %186 = vst [vmem:[%s156 + $0x70] sm:%s148] %v185
                %v187 = vld [vmem:[%s155 + $0xf0] sm:%s148]
                %188 = vst [vmem:[%s156 + $0x78] sm:%s148] %v187
                %v189 = vld [vmem:[%s155 + $0x100] sm:%s148]
                %190 = vst [vmem:[%s156 + $0x80] sm:%s148] %v189
                %v191 = vld [vmem:[%s155 + $0x110] sm:%s148]
                %192 = vst [vmem:[%s156 + $0x88] sm:%s148] %v191
                %v193 = vld [vmem:[%s155 + $0x120] sm:%s148]
                %194 = vst [vmem:[%s156 + $0x90] sm:%s148] %v193
                %v195 = vld [vmem:[%s155 + $0x130] sm:%s148]
                %196 = vst [vmem:[%s156 + $0x98] sm:%s148] %v195
                %v197 = vld [vmem:[%s155 + $0x140] sm:%s148]
                %198 = vst [vmem:[%s156 + $0xa0] sm:%s148] %v197
                %v199 = vld [vmem:[%s155 + $0x150] sm:%s148]
                %200 = vst [vmem:[%s156 + $0xa8] sm:%s148] %v199
                %v201 = vld [vmem:[%s155 + $0x160] sm:%s148]
                %202 = vst [vmem:[%s156 + $0xb0] sm:%s148] %v201
                %v203 = vld [vmem:[%s155 + $0x170] sm:%s148]
                %204 = vst [vmem:[%s156 + $0xb8] sm:%s148] %v203
                %v205 = vld [vmem:[%s155 + $0x180] sm:%s148]
                %206 = vst [vmem:[%s156 + $0xc0] sm:%s148] %v205
                %v207 = vld [vmem:[%s155 + $0x190] sm:%s148]
                %208 = vst [vmem:[%s156 + $0xc8] sm:%s148] %v207
                %v209 = vld [vmem:[%s155 + $0x1a0] sm:%s148]
                %210 = vst [vmem:[%s156 + $0xd0] sm:%s148] %v209
                %v211 = vld [vmem:[%s155 + $0x1b0] sm:%s148]
                %212 = vst [vmem:[%s156 + $0xd8] sm:%s148] %v211
                %v213 = vld [vmem:[%s155 + $0x1c0] sm:%s148]
                %214 = vst [vmem:[%s156 + $0xe0] sm:%s148] %v213
                %v215 = vld [vmem:[%s155 + $0x1d0] sm:%s148]
                %216 = vst [vmem:[%s156 + $0xe8] sm:%s148] %v215
                %v217 = vld [vmem:[%s155 + $0x1e0] sm:%s148]
                %218 = vst [vmem:[%s156 + $0xf0] sm:%s148] %v217
                %v219 = vld [vmem:[%s155 + $0x1f0] sm:%s148]
                %220 = vst [vmem:[%s156 + $0xf8] sm:%s148] %v219
              $region41: #{image_discriminator.6} parent=35 // loop_footer
                %s154 = sadd.s32 1, %s150
              $region42: #{image_discriminator.6} parent=35 // loop_footer_branch
                %149 = sbr.rel target = $region38
              $region43: #{image_discriminator.6} parent=35 // loop_exit
                _
            $region36: #{image_discriminator.6} parent=27 // pred_fallthru
              _
          $region28: #{image_discriminator.6} parent=23 // pred_fallthru
            _
          %297 = vnop
        $region24: #{image_discriminator.6} parent=19 // pred_fallthru
          _
      $region20: #{image_discriminator.6} parent=5 // pred_fallthru
        _
      %p298 = scmp.le.s32.totalorder 1, %s10
      %p299 = scmp.lt.s32.totalorder %s10, 3
      %p300 = pnand %p298, %p299
      %p301 = pneg %p300
      // Predicated region
      $region59: #{image_discriminator.6} parent=5 // pred_check
        _
      $region60: #{image_discriminator.6} parent=5 // pred_check_branch
        %303 = sbr.rel (%p300) target = $region62
      $region61: #{image_discriminator.6} parent=5 // pred_region
        %s304 = ssub.s32 %s10, 1
        %s305 = sand.u32 %s44, 1
        %s306 = sand.u32 %s44, 1
        %s307 = smul.addr %s306, 256
        %s308 = scalar_lea.vmem [#allocation2], %s307
        // Predicated region
        $region63: #{image_discriminator.6} parent=61 // pred_check
          %p309 = pneg %p57
        $region64: #{image_discriminator.6} parent=61 // pred_check_branch
          %311 = sbr.rel (%p309) target = $region66
        $region65: #{image_discriminator.6} parent=61 // pred_region
          _
        $region66: #{image_discriminator.6} parent=61 // pred_fallthru
          _
        %p312 = pneg %p31
        %p313 = pneg %p28
        %s314 = sand.u32 %s44, 1
        %s315 = sand.u32 %s44, 1
        %s316 = smul.addr %s315, 256
        %s317 = scalar_lea.vmem [#allocation2], %s316
        %p318 = pneg %p57
        %p319 = pneg %p54
        %p320 = pneg %p83
        %p321 = pneg %p80
        %s322 = sand.u32 %s70, 1
        %s323 = sand.u32 %s70, 1
        %s324 = smul.addr %s323, 32
        %s325 = scalar_lea.vmem [#allocation3], %s324
        %p326 = pneg %p109
        %p327 = pneg %p106
        %p328 = scmp.lt.s32.totalorder %s15, 1
        %s329 = scalar_select %p328, %s15, 1
        %s330 = smul.addr %s329, 4
        %s331 = smul.addr %s330, 8
        %s332 = scalar_lea.vmem %s3, %s331
        %s333 = smul.u32 2, %s15
        %s334 = smul.u32 2, %s15
        %p335 = scmp.lt.s32.totalorder %s15, 1
        %s336 = scalar_select %p335, %s15, 1
        %s337 = smul.addr %s336, 4
        %s338 = smul.addr %s337, 8
        %s339 = scalar_lea.vmem %s3, %s338
        %v340 = vld [vmem:[%s308] sm:$0xff]
        %v341 = vld [vmem:[%s308 + $0x8] sm:$0xff]
        %v342 = vld [vmem:[%s308 + $0x10] sm:$0xff]
        %v343 = vld [vmem:[%s308 + $0x18] sm:$0xff]
        %v344 = vld [vmem:[%s308 + $0x20] sm:$0xff]
        %v345 = vld [vmem:[%s308 + $0x28] sm:$0xff]
        %v346 = vld [vmem:[%s308 + $0x30] sm:$0xff]
        %v347 = vld [vmem:[%s308 + $0x38] sm:$0xff]
        %v348 = vld [vmem:[%s308 + $0x40] sm:$0xff]
        %v349 = vld [vmem:[%s308 + $0x48] sm:$0xff]
        %v350 = vld [vmem:[%s308 + $0x50] sm:$0xff]
        %v351 = vld [vmem:[%s308 + $0x58] sm:$0xff]
        %v352 = vld [vmem:[%s308 + $0x60] sm:$0xff]
        %v353 = vld [vmem:[%s308 + $0x68] sm:$0xff]
        %v354 = vld [vmem:[%s308 + $0x70] sm:$0xff]
        %v355 = vld [vmem:[%s308 + $0x78] sm:$0xff]
        %v356 = vld [vmem:[%s308 + $0x80] sm:$0xff]
        %v357 = vld [vmem:[%s308 + $0x88] sm:$0xff]
        %v358 = vld [vmem:[%s308 + $0x90] sm:$0xff]
        %v359 = vld [vmem:[%s308 + $0x98] sm:$0xff]
        %v360 = vld [vmem:[%s308 + $0xa0] sm:$0xff]
        %v361 = vld [vmem:[%s308 + $0xa8] sm:$0xff]
        %v362 = vld [vmem:[%s308 + $0xb0] sm:$0xff]
        %v363 = vld [vmem:[%s308 + $0xb8] sm:$0xff]
        %v364 = vld [vmem:[%s308 + $0xc0] sm:$0xff]
        %v365 = vld [vmem:[%s308 + $0xc8] sm:$0xff]
        %v366 = vld [vmem:[%s308 + $0xd0] sm:$0xff]
        %v367 = vld [vmem:[%s308 + $0xd8] sm:$0xff]
        %v368 = vld [vmem:[%s308 + $0xe0] sm:$0xff]
        %v369 = vld [vmem:[%s308 + $0xe8] sm:$0xff]
        %v370 = vld [vmem:[%s308 + $0xf0] sm:$0xff]
        %v371 = vld [vmem:[%s308 + $0xf8] sm:$0xff]
        %v372 = vld [vmem:[%s0] sm:$0xff]
        %v373 = vld [vmem:[%s0 + $0x8] sm:$0xff]
        %v374 = vld [vmem:[%s0 + $0x10] sm:$0xff]
        %v375 = vld [vmem:[%s0 + $0x18] sm:$0xff]
        %v380 = vunpack.c.l.b16 %v372
        %v381 = vunpack.c.h.b16 %v372
        %v382 = vunpack.c.l.b16 %v373
        %v383 = vunpack.c.h.b16 %v373
        %v384 = vunpack.c.l.b16 %v374
        %v385 = vunpack.c.h.b16 %v374
        %v386 = vunpack.c.l.b16 %v375
        %v387 = vunpack.c.h.b16 %v375
        %v388 = vpack.c.b16 %v382, %v380
        %v389 = vpack.c.b16 %v383, %v381
        %v390 = vpack.c.b16 %v386, %v384
        %v391 = vpack.c.b16 %v387, %v385
        %v428 = vunpack.c.l.b16 %v340
        %v429 = vunpack.c.h.b16 %v340
        %v430 = vunpack.c.l.b16 %v341
        %v431 = vunpack.c.h.b16 %v341
        %v432 = vunpack.c.l.b16 %v342
        %v433 = vunpack.c.h.b16 %v342
        %v434 = vunpack.c.l.b16 %v343
        %v435 = vunpack.c.h.b16 %v343
        %v436 = vunpack.c.l.b16 %v344
        %v437 = vunpack.c.h.b16 %v344
        %v438 = vunpack.c.l.b16 %v345
        %v439 = vunpack.c.h.b16 %v345
        %v440 = vunpack.c.l.b16 %v346
        %v441 = vunpack.c.h.b16 %v346
        %v442 = vunpack.c.l.b16 %v347
        %v443 = vunpack.c.h.b16 %v347
        %v444 = vunpack.c.l.b16 %v348
        %v445 = vunpack.c.h.b16 %v348
        %v446 = vunpack.c.l.b16 %v349
        %v447 = vunpack.c.h.b16 %v349
        %v448 = vunpack.c.l.b16 %v350
        %v449 = vunpack.c.h.b16 %v350
        %v450 = vunpack.c.l.b16 %v351
        %v451 = vunpack.c.h.b16 %v351
        %v452 = vunpack.c.l.b16 %v352
        %v453 = vunpack.c.h.b16 %v352
        %v454 = vunpack.c.l.b16 %v353
        %v455 = vunpack.c.h.b16 %v353
        %v456 = vunpack.c.l.b16 %v354
        %v457 = vunpack.c.h.b16 %v354
        %v458 = vunpack.c.l.b16 %v355
        %v459 = vunpack.c.h.b16 %v355
        %v460 = vunpack.c.l.b16 %v356
        %v461 = vunpack.c.h.b16 %v356
        %v462 = vunpack.c.l.b16 %v357
        %v463 = vunpack.c.h.b16 %v357
        %v464 = vunpack.c.l.b16 %v358
        %v465 = vunpack.c.h.b16 %v358
        %v466 = vunpack.c.l.b16 %v359
        %v467 = vunpack.c.h.b16 %v359
        %v468 = vunpack.c.l.b16 %v360
        %v469 = vunpack.c.h.b16 %v360
        %v470 = vunpack.c.l.b16 %v361
        %v471 = vunpack.c.h.b16 %v361
        %v472 = vunpack.c.l.b16 %v362
        %v473 = vunpack.c.h.b16 %v362
        %v474 = vunpack.c.l.b16 %v363
        %v475 = vunpack.c.h.b16 %v363
        %v476 = vunpack.c.l.b16 %v364
        %v477 = vunpack.c.h.b16 %v364
        %v478 = vunpack.c.l.b16 %v365
        %v479 = vunpack.c.h.b16 %v365
        %v480 = vunpack.c.l.b16 %v366
        %v481 = vunpack.c.h.b16 %v366
        %v482 = vunpack.c.l.b16 %v367
        %v483 = vunpack.c.h.b16 %v367
        %v484 = vunpack.c.l.b16 %v368
        %v485 = vunpack.c.h.b16 %v368
        %v486 = vunpack.c.l.b16 %v369
        %v487 = vunpack.c.h.b16 %v369
        %v488 = vunpack.c.l.b16 %v370
        %v489 = vunpack.c.h.b16 %v370
        %v490 = vunpack.c.l.b16 %v371
        %v491 = vunpack.c.h.b16 %v371
        %v492 = vpack.c.b16 %v430, %v428
        %v493 = vpack.c.b16 %v431, %v429
        %v494 = vpack.c.b16 %v434, %v432
        %v495 = vpack.c.b16 %v435, %v433
        %v496 = vpack.c.b16 %v438, %v436
        %v497 = vpack.c.b16 %v439, %v437
        %v498 = vpack.c.b16 %v442, %v440
        %v499 = vpack.c.b16 %v443, %v441
        %v500 = vpack.c.b16 %v446, %v444
        %v501 = vpack.c.b16 %v447, %v445
        %v502 = vpack.c.b16 %v450, %v448
        %v503 = vpack.c.b16 %v451, %v449
        %v504 = vpack.c.b16 %v454, %v452
        %v505 = vpack.c.b16 %v455, %v453
        %v506 = vpack.c.b16 %v458, %v456
        %v507 = vpack.c.b16 %v459, %v457
        %v508 = vpack.c.b16 %v462, %v460
        %v509 = vpack.c.b16 %v463, %v461
        %v510 = vpack.c.b16 %v466, %v464
        %v511 = vpack.c.b16 %v467, %v465
        %v512 = vpack.c.b16 %v470, %v468
        %v513 = vpack.c.b16 %v471, %v469
        %v514 = vpack.c.b16 %v474, %v472
        %v515 = vpack.c.b16 %v475, %v473
        %v516 = vpack.c.b16 %v478, %v476
        %v517 = vpack.c.b16 %v479, %v477
        %v518 = vpack.c.b16 %v482, %v480
        %v519 = vpack.c.b16 %v483, %v481
        %v520 = vpack.c.b16 %v486, %v484
        %v521 = vpack.c.b16 %v487, %v485
        %v522 = vpack.c.b16 %v490, %v488
        %v523 = vpack.c.b16 %v491, %v489
        %556 = vmatprep.subr.bf16.mxu0 %v507
        %557 = vmatpush1.bf16.msra.mxu0 %v506
        %558 = vmatprep.subr.bf16.mxu0 %v505
        %559 = vmatpush1.bf16.msra.mxu0 %v504
        %560 = vmatprep.subr.bf16.mxu0 %v503
        %561 = vmatpush1.bf16.msra.mxu0 %v502
        %562 = vmatprep.subr.bf16.mxu0 %v501
        %563 = vmatpush1.bf16.msra.mxu0 %v500
        %564 = vmatprep.subr.bf16.mxu0 %v499
        %565 = vmatpush1.bf16.msra.mxu0 %v498
        %566 = vmatprep.subr.bf16.mxu0 %v497
        %567 = vmatpush1.bf16.msra.mxu0 %v496
        %568 = vmatprep.subr.bf16.mxu0 %v495
        %569 = vmatpush1.bf16.msra.mxu0 %v494
        %570 = vmatprep.subr.bf16.mxu0 %v493
        %571 = vmatpush1.bf16.msra.mxu0 %v492
        %572 = vmatprep.subr.bf16.mxu0 %v523
        %573 = vmatpush2.bf16.msra.mxu0 %v522
        %574 = vmatprep.subr.bf16.mxu0 %v521
        %575 = vmatpush2.bf16.msra.mxu0 %v520
        %576 = vmatprep.subr.bf16.mxu0 %v519
        %577 = vmatpush2.bf16.msra.mxu0 %v518
        %578 = vmatprep.subr.bf16.mxu0 %v517
        %579 = vmatpush2.bf16.msra.mxu0 %v516
        %580 = vmatprep.subr.bf16.mxu0 %v515
        %581 = vmatpush2.bf16.msra.mxu0 %v514
        %582 = vmatprep.subr.bf16.mxu0 %v513
        %583 = vmatpush2.bf16.msra.mxu0 %v512
        %584 = vmatprep.subr.bf16.mxu0 %v511
        %585 = vmatpush2.bf16.msra.mxu0 %v510
        %586 = vmatprep.subr.bf16.mxu0 %v509
        %587 = vmatpush2.bf16.msra.mxu0 %v508
        %588 = vmatprep.mubr.bf16.mxu0 %v389
        %589 = vmatmul.mubr.bf16.gmra.mxu0 %v388
        %v590 = vpop.f32.mrf.mxu0
        %v591 = vadd.f32 0.0, %v590
        %v592 = vpop.f32.mrf.mxu0
        %v593 = vadd.f32 0.0, %v592
        %v594 = vpop.f32.mrf.mxu0
        %v595 = vadd.f32 0.0, %v594
        %v596 = vpop.f32.mrf.mxu0
        %v597 = vadd.f32 0.0, %v596
        %598 = vmatprep.mubr.bf16.mxu0 %v391
        %599 = vmatmul.mubr.bf16.gmra.mxu0 %v390
        %v600 = vpop.f32.mrf.mxu0
        %v601 = vadd.f32 0.0, %v600
        %v602 = vpop.f32.mrf.mxu0
        %v603 = vadd.f32 0.0, %v602
        %v604 = vpop.f32.mrf.mxu0
        %v605 = vadd.f32 0.0, %v604
        %v606 = vpop.f32.mrf.mxu0
        %v607 = vadd.f32 0.0, %v606
        %608 = vdwg.mxu0
        %v609 = vadd.f32 %v591, %v593
        %610 = vadd.xlane.f32.xlu0 %v609
        %v611 = vpop.xlane.xlu0 %610
        %v612 = vadd.f32 %v595, %v597
        %613 = vadd.xlane.f32.xlu0 %v612
        %v614 = vpop.xlane.xlu0 %613
        %v615 = vadd.f32 %v601, %v603
        %616 = vadd.xlane.f32.xlu0 %v615
        %v617 = vpop.xlane.xlu0 %616
        %v618 = vadd.f32 %v605, %v607
        %619 = vadd.xlane.f32.xlu0 %v618
        %v620 = vpop.xlane.xlu0 %619
        %v621 = vmul.f32 %v591, %v591
        %v622 = vmul.f32 %v593, %v593
        %v623 = vmul.f32 %v595, %v595
        %v624 = vmul.f32 %v597, %v597
        %v625 = vmul.f32 %v601, %v601
        %v626 = vmul.f32 %v603, %v603
        %v627 = vmul.f32 %v605, %v605
        %v628 = vmul.f32 %v607, %v607
        %v629 = vadd.f32 %v621, %v622
        %630 = vadd.xlane.f32.xlu0 %v629
        %v631 = vpop.xlane.xlu0 %630
        %v632 = vadd.f32 %v623, %v624
        %633 = vadd.xlane.f32.xlu0 %v632
        %v634 = vpop.xlane.xlu0 %633
        %v635 = vadd.f32 %v625, %v626
        %636 = vadd.xlane.f32.xlu0 %v635
        %v637 = vpop.xlane.xlu0 %636
        %v638 = vadd.f32 %v627, %v628
        %639 = vadd.xlane.f32.xlu0 %v638
        %v640 = vpop.xlane.xlu0 %639
        %vm641 = vcmask 7168
        %v642 = vsel %vm641, %v611, %v631
        %v643 = vsel %vm641, %v614, %v634
        %v644 = vsel %vm641, %v617, %v637
        %v645 = vsel %vm641, %v620, %v640
        %vm646 = vcmask 15360
        %647 = vst.msk [vmem:[%s339] sm:$0xff] %vm646, %v642
        %648 = vst.msk [vmem:[%s339 + $0x8] sm:$0xff] %vm646, %v643
        %649 = vst.msk [vmem:[%s339 + $0x10] sm:$0xff] %vm646, %v644
        %650 = vst.msk [vmem:[%s339 + $0x18] sm:$0xff] %vm646, %v645
        %v651 = vpack.c.bf16 %v595, %v591
        %v652 = vpack.c.bf16 %v597, %v593
        %v653 = vpack.c.bf16 %v605, %v601
        %v654 = vpack.c.bf16 %v607, %v603
        %v659 = vunpack.c.l.b16 %v651
        %v660 = vunpack.c.l.b16 %v652
        %v661 = vunpack.c.h.b16 %v651
        %v662 = vunpack.c.h.b16 %v652
        %v663 = vunpack.c.l.b16 %v653
        %v664 = vunpack.c.l.b16 %v654
        %v665 = vunpack.c.h.b16 %v653
        %v666 = vunpack.c.h.b16 %v654
        %v667 = vpack.c.b16 %v660, %v659
        %v668 = vpack.c.b16 %v662, %v661
        %v669 = vpack.c.b16 %v664, %v663
        %v670 = vpack.c.b16 %v666, %v665
        %675 = vst [vmem:[%s325] sm:$0xff] %v667
        %676 = vst [vmem:[%s325 + $0x8] sm:$0xff] %v668
        %677 = vst [vmem:[%s325 + $0x10] sm:$0xff] %v669
        %678 = vst [vmem:[%s325 + $0x18] sm:$0xff] %v670
        %s679 = sand.u32 %s70, 1
        %s680 = sand.u32 %s70, 1
        %s681 = smul.addr %s680, 32
        %s682 = scalar_lea.vmem [#allocation3], %s681
        %p683 = scmp.lt.s32.totalorder %s15, 1
        %s684 = scalar_select %p683, %s15, 1
        %s685 = smul.addr %s684, 4
        %s686 = smul.addr %s685, 8
        %s687 = scalar_lea.vmem %s3, %s686
        // Predicated region
        $region67: #{image_discriminator.6} parent=61 // pred_check
          %p688 = pneg %p80
        $region68: #{image_discriminator.6} parent=61 // pred_check_branch
          %690 = sbr.rel (%p688) target = $region70
        $region69: #{image_discriminator.6} parent=61 // pred_region
          %s691 = smul.u32 2, %s15
          %s692 = smul.addr %s691, 4
          %s693 = scalar_lea.vmem %s2, %s692
          // Predicated region
          $region71: #{image_discriminator.6} parent=69 // pred_check
            _
          $region72: #{image_discriminator.6} parent=69 // pred_check_branch
            %695 = sbr.rel (0) target = $region74
          $region73: #{image_discriminator.6} parent=69 // pred_region
            // Predicated region
            $region75: #{image_discriminator.6} parent=73 // pred_check
              _
            $region76: #{image_discriminator.6} parent=73 // pred_check_branch
              %697 = sbr.rel (0) target = $region78
            $region77: #{image_discriminator.6} parent=73 // pred_region
              // Predicated region
              $region90: #{image_discriminator.6} parent=77 // pred_check
                _
              $region91: #{image_discriminator.6} parent=77 // pred_check_branch
                %719 = sbr.rel (0) target = $region93
              $region92: #{image_discriminator.6} parent=77 // pred_region
                loop: start=0, step=1, limit=1
                $region94: #{image_discriminator.6} parent=92 // loop_pre_header
                  _
                $region95: #{image_discriminator.6} parent=92 // loop_header
                  %s721 = sphi 0, %s725
                  %p722 = scmp.ge.s32.totalorder %s721, 1
                  %s726 = sphi %s682, %s682
                  %s727 = sphi %s693, %s693
                $region96: #{image_discriminator.6} parent=92 // loop_header_branch
                  %724 = sbr.rel (%p722) target = $region100
                $region97: #{image_discriminator.6} parent=92 // loop_body
                  %v728 = vld [vmem:[%s726] sm:$0xff]
                  %729 = vst [vmem:[%s727] sm:$0xff] %v728
                  %v730 = vld [vmem:[%s726 + $0x8] sm:$0xff]
                  %731 = vst [vmem:[%s727 + $0x10] sm:$0xff] %v730
                  %v732 = vld [vmem:[%s726 + $0x10] sm:$0xff]
                  %733 = vst [vmem:[%s727 + $0x20] sm:$0xff] %v732
                  %v734 = vld [vmem:[%s726 + $0x18] sm:$0xff]
                  %735 = vst [vmem:[%s727 + $0x30] sm:$0xff] %v734
                $region98: #{image_discriminator.6} parent=92 // loop_footer
                  %s725 = sadd.s32 1, %s721
                $region99: #{image_discriminator.6} parent=92 // loop_footer_branch
                  %720 = sbr.rel target = $region95
                $region100: #{image_discriminator.6} parent=92 // loop_exit
                  _
              $region93: #{image_discriminator.6} parent=77 // pred_fallthru
                _
              // Predicated region
              $region101: #{image_discriminator.6} parent=77 // pred_check
                _
              $region102: #{image_discriminator.6} parent=77 // pred_check_branch
                %737 = sbr.rel target = $region104
              $region103: #{image_discriminator.6} parent=77 // pred_region
                _
              $region104: #{image_discriminator.6} parent=77 // pred_fallthru
                _
            $region78: #{image_discriminator.6} parent=73 // pred_fallthru
              _
            // Predicated region
            $region79: #{image_discriminator.6} parent=73 // pred_check
              _
            $region80: #{image_discriminator.6} parent=73 // pred_check_branch
              %699 = sbr.rel target = $region82
            $region81: #{image_discriminator.6} parent=73 // pred_region
              %s701 = ssub.s32 256, 1
              loop: start=0, step=1, limit=1
              $region83: #{image_discriminator.6} parent=81 // loop_pre_header
                _
              $region84: #{image_discriminator.6} parent=81 // loop_header
                %s703 = sphi 0, %s707
                %p704 = scmp.ge.s32.totalorder %s703, 1
                %s708 = sphi %s682, %s682
                %s709 = sphi %s693, %s693
              $region85: #{image_discriminator.6} parent=81 // loop_header_branch
                %706 = sbr.rel (%p704) target = $region89
              $region86: #{image_discriminator.6} parent=81 // loop_body
                %v710 = vld [vmem:[%s708] sm:%s701]
                %711 = vst [vmem:[%s709] sm:%s701] %v710
                %v712 = vld [vmem:[%s708 + $0x8] sm:%s701]
                %713 = vst [vmem:[%s709 + $0x10] sm:%s701] %v712
                %v714 = vld [vmem:[%s708 + $0x10] sm:%s701]
                %715 = vst [vmem:[%s709 + $0x20] sm:%s701] %v714
                %v716 = vld [vmem:[%s708 + $0x18] sm:%s701]
                %717 = vst [vmem:[%s709 + $0x30] sm:%s701] %v716
              $region87: #{image_discriminator.6} parent=81 // loop_footer
                %s707 = sadd.s32 1, %s703
              $region88: #{image_discriminator.6} parent=81 // loop_footer_branch
                %702 = sbr.rel target = $region84
              $region89: #{image_discriminator.6} parent=81 // loop_exit
                _
            $region82: #{image_discriminator.6} parent=73 // pred_fallthru
              _
          $region74: #{image_discriminator.6} parent=69 // pred_fallthru
            _
          %738 = vnop
        $region70: #{image_discriminator.6} parent=61 // pred_fallthru
          _
        // Predicated region
        $region105: #{image_discriminator.6} parent=61 // pred_check
          %p739 = pneg %p106
        $region106: #{image_discriminator.6} parent=61 // pred_check_branch
          %741 = sbr.rel (%p739) target = $region108
        $region107: #{image_discriminator.6} parent=61 // pred_region
          _
        $region108: #{image_discriminator.6} parent=61 // pred_fallthru
          _
      $region62: #{image_discriminator.6} parent=5 // pred_fallthru
        _
      %p742 = scmp.le.s32.totalorder 2, %s10
      // Predicated region
      $region109: #{image_discriminator.6} parent=5 // pred_check
        %p743 = pneg %p742
      $region110: #{image_discriminator.6} parent=5 // pred_check_branch
        %745 = sbr.rel (%p743) target = $region112
      $region111: #{image_discriminator.6} parent=5 // pred_region
        %s746 = ssub.s32 %s10, 2
        // Predicated region
        $region113: #{image_discriminator.6} parent=111 // pred_check
          %p747 = pneg %p86
        $region114: #{image_discriminator.6} parent=111 // pred_check_branch
          %749 = sbr.rel (%p747) target = $region116
        $region115: #{image_discriminator.6} parent=111 // pred_region
          %s750 = sand.u32 %s71, 1
          %s751 = sand.u32 %s71, 1
          %s752 = smul.addr %s751, 32
          %s753 = scalar_lea.vmem [#allocation3], %s752
        $region116: #{image_discriminator.6} parent=111 // pred_fallthru
          _
        // Predicated region
        $region117: #{image_discriminator.6} parent=111 // pred_check
          %p754 = pneg %p112
        $region118: #{image_discriminator.6} parent=111 // pred_check_branch
          %756 = sbr.rel (%p754) target = $region120
        $region119: #{image_discriminator.6} parent=111 // pred_region
          %p757 = scmp.lt.s32.totalorder %s16, 1
          %s758 = scalar_select %p757, %s16, 1
          %s759 = smul.addr %s758, 4
          %s760 = smul.addr %s759, 8
          %s761 = scalar_lea.vmem %s3, %s760
        $region120: #{image_discriminator.6} parent=111 // pred_fallthru
          _
      $region112: #{image_discriminator.6} parent=5 // pred_fallthru
        _
    $region6: #{image_discriminator.6} parent=1 // loop_footer
      %s14 = sadd.s32 1, %s10
    $region7: #{image_discriminator.6} parent=1 // loop_footer_branch
      %9 = sbr.rel target = $region3
    $region8: #{image_discriminator.6} parent=1 // loop_exit
      _

// kernel: tile.18
$region0: #{tile.18}
  #allocation0 [shape = 's32[1]{0}', space=sflag, size = 0x4, scoped, tag = 'scoped memory for tile.18']
  %s0 = inlined_call_operand.vmem [shape: f32[32], index: 0, kind: input, shape index: {}]
  %s1 = inlined_call_operand.vmem [shape: f32[16,32], index: 1, kind: output, shape index: {}]
  // Predicated region
  $region2: #{tile.18} parent=0 // pred_check
    _
  $region3: #{tile.18} parent=0 // pred_check_branch
    %3 = sbr.rel (0) target = $region5
  $region4: #{tile.18} parent=0 // pred_region
    _
  $region5: #{tile.18} parent=0 // pred_fallthru
    _
  %v4 = vld [vmem:[%s0] ss:$0 sm:$0xff]
  %5 = vst [vmem:[%s1] sm:$0xff] %v4
  %s6 = scalar_lea.vmem %s1, 8
  %7 = vst [vmem:[%s6] sm:$0xff] %v4

// kernel: mul.18
$region0: #{mul.18}
  %s0 = inlined_call_operand.vmem [shape: f32[16,32], index: 0, kind: input, shape index: {}]
  %s1 = inlined_call_operand.vmem [shape: f32[512], index: 1, kind: output, shape index: {}]
  $region1: #{mul.18} parent=0
    #allocation0 [shape = 'u8[4096]{0}', space=vmem, size = 0x1000, scoped, tag = 'scoped mem for output reshape']
    %v2 = vld [vmem:[%s0] ss:$4 sm:$0xf]
    %vm3 = vcmask 261120
    %4 = vst.msk [vmem:[#allocation0] sm:$0xf] %vm3, %v2
    %s5 = scalar_lea.vmem %s0, 3
    %v6 = vld [vmem:[%s5] ss:$4 sm:$0xf]
    %7 = vrot.lane.b32.xlu0 %v6, 96
    %v8 = vpop.permute.xlu0 %7
    %vm9 = vcmask 1048320
    %10 = vst.msk [vmem:[#allocation0] sm:$0xf] %vm9, %v8
    %s11 = scalar_lea.vmem %s0, 2
    %v12 = vld [vmem:[%s11] ss:$4 sm:$0xf]
    %13 = vrot.lane.b32.xlu0 %v12, 64
    %v14 = vpop.permute.xlu0 %13
    %vm15 = vcmask 785920
    %16 = vst.msk [vmem:[#allocation0] sm:$0xf] %vm15, %v14
    %s17 = scalar_lea.vmem %s0, 1
    %v18 = vld [vmem:[%s17] ss:$4 sm:$0xf]
    %19 = vrot.lane.b32.xlu0 %v18, 32
    %v20 = vpop.permute.xlu0 %19
    %vm21 = vcmask 523520
    %22 = vst.msk [vmem:[#allocation0] sm:$0xf] %vm21, %v20
    %s24 = sshll.u32 1, 4
    %s25 = ssub.s32 %s24, 1
    %v27 = vld [vmem:[#allocation0] sm:%s25]
    %s28 = sshll.u32 1, 4
    %s29 = ssub.s32 %s28, 1
    %30 = vst [vmem:[%s1] sm:%s29] %v27

// kernel: image_discriminator.7
$region0: #{image_discriminator.7}
  #allocation0 [shape = 'u32[]', space=smem, size = 0x4, offset = 0x4, fixed_abs, tag = 'smem constant byte address 0x4 - core index']
  #allocation1 [shape = 'u32[144,128]{1,0:T(1,128)}', space=vmem, size = 0x12000, scoped, tag = 'internal scratch']
  %s0 = inlined_call_operand.vmem [shape: bf16[64,512], index: 0, kind: input, shape index: {}]
  %s1 = inlined_call_operand.vmem [shape: bf16[512,128], index: 1, kind: input, shape index: {}]
  %s2 = inlined_call_operand.vmem [shape: bf16[64,128], index: 2, kind: output, shape index: {0}]
  %s3 = inlined_call_operand.vmem [shape: f32[1,64,2], index: 3, kind: output, shape index: {1}]
  %4 = xla_tuple %s2, %s3
  %s5 = sld [smem:[#allocation0]]
  $region26: #{image_discriminator.7} parent=0
    _
  %s7 = ssub.s32 1, %s5
  %s8 = scalar_select 0, %s7, %s5
  // Predicated region
  $region2: #{image_discriminator.7} parent=0 // pred_check
    _
  $region3: #{image_discriminator.7} parent=0 // pred_check_branch
    %10 = sbr.rel (0) target = $region5
  $region4: #{image_discriminator.7} parent=0 // pred_region
    _
  $region5: #{image_discriminator.7} parent=0 // pred_fallthru
    _
  // Predicated region
  $region6: #{image_discriminator.7} parent=0 // pred_check
    _
  $region7: #{image_discriminator.7} parent=0 // pred_check_branch
    %12 = sbr.rel (0) target = $region9
  $region8: #{image_discriminator.7} parent=0 // pred_region
    _
  $region9: #{image_discriminator.7} parent=0 // pred_fallthru
    _
  %v15 = vld [vmem:[%s1] sm:$0xf]
  %v16 = vld [vmem:[%s1 + $0x4] sm:$0xf]
  %v17 = vld [vmem:[%s1 + $0x8] sm:$0xf]
  %v18 = vld [vmem:[%s1 + $0xc] sm:$0xf]
  %v19 = vld [vmem:[%s1 + $0x10] sm:$0xf]
  %v20 = vld [vmem:[%s1 + $0x14] sm:$0xf]
  %v21 = vld [vmem:[%s1 + $0x18] sm:$0xf]
  %v22 = vld [vmem:[%s1 + $0x1c] sm:$0xf]
  %v23 = vld [vmem:[%s1 + $0x20] sm:$0xf]
  %v24 = vld [vmem:[%s1 + $0x24] sm:$0xf]
  %v25 = vld [vmem:[%s1 + $0x28] sm:$0xf]
  %v26 = vld [vmem:[%s1 + $0x2c] sm:$0xf]
  %v27 = vld [vmem:[%s1 + $0x30] sm:$0xf]
  %v28 = vld [vmem:[%s1 + $0x34] sm:$0xf]
  %v29 = vld [vmem:[%s1 + $0x38] sm:$0xf]
  %v30 = vld [vmem:[%s1 + $0x3c] sm:$0xf]
  %v31 = vld [vmem:[%s1 + $0x40] sm:$0xf]
  %v32 = vld [vmem:[%s1 + $0x44] sm:$0xf]
  %v33 = vld [vmem:[%s1 + $0x48] sm:$0xf]
  %v34 = vld [vmem:[%s1 + $0x4c] sm:$0xf]
  %v35 = vld [vmem:[%s1 + $0x50] sm:$0xf]
  %v36 = vld [vmem:[%s1 + $0x54] sm:$0xf]
  %v37 = vld [vmem:[%s1 + $0x58] sm:$0xf]
  %v38 = vld [vmem:[%s1 + $0x5c] sm:$0xf]
  %v39 = vld [vmem:[%s1 + $0x60] sm:$0xf]
  %v40 = vld [vmem:[%s1 + $0x64] sm:$0xf]
  %v41 = vld [vmem:[%s1 + $0x68] sm:$0xf]
  %v42 = vld [vmem:[%s1 + $0x6c] sm:$0xf]
  %v43 = vld [vmem:[%s1 + $0x70] sm:$0xf]
  %v44 = vld [vmem:[%s1 + $0x74] sm:$0xf]
  %v45 = vld [vmem:[%s1 + $0x78] sm:$0xf]
  %v46 = vld [vmem:[%s1 + $0x7c] sm:$0xf]
  %v47 = vld [vmem:[%s1 + $0x80] sm:$0xf]
  %v48 = vld [vmem:[%s1 + $0x84] sm:$0xf]
  %v49 = vld [vmem:[%s1 + $0x88] sm:$0xf]
  %v50 = vld [vmem:[%s1 + $0x8c] sm:$0xf]
  %v51 = vld [vmem:[%s1 + $0x90] sm:$0xf]
  %v52 = vld [vmem:[%s1 + $0x94] sm:$0xf]
  %v53 = vld [vmem:[%s1 + $0x98] sm:$0xf]
  %v54 = vld [vmem:[%s1 + $0x9c] sm:$0xf]
  %v55 = vld [vmem:[%s1 + $0xa0] sm:$0xf]
  %v56 = vld [vmem:[%s1 + $0xa4] sm:$0xf]
  %v57 = vld [vmem:[%s1 + $0xa8] sm:$0xf]
  %v58 = vld [vmem:[%s1 + $0xac] sm:$0xf]
  %v59 = vld [vmem:[%s1 + $0xb0] sm:$0xf]
  %v60 = vld [vmem:[%s1 + $0xb4] sm:$0xf]
  %v61 = vld [vmem:[%s1 + $0xb8] sm:$0xf]
  %v62 = vld [vmem:[%s1 + $0xbc] sm:$0xf]
  %v63 = vld [vmem:[%s1 + $0xc0] sm:$0xf]
  %v64 = vld [vmem:[%s1 + $0xc4] sm:$0xf]
  %v65 = vld [vmem:[%s1 + $0xc8] sm:$0xf]
  %v66 = vld [vmem:[%s1 + $0xcc] sm:$0xf]
  %v67 = vld [vmem:[%s1 + $0xd0] sm:$0xf]
  %v68 = vld [vmem:[%s1 + $0xd4] sm:$0xf]
  %v69 = vld [vmem:[%s1 + $0xd8] sm:$0xf]
  %v70 = vld [vmem:[%s1 + $0xdc] sm:$0xf]
  %v71 = vld [vmem:[%s1 + $0xe0] sm:$0xf]
  %v72 = vld [vmem:[%s1 + $0xe4] sm:$0xf]
  %v73 = vld [vmem:[%s1 + $0xe8] sm:$0xf]
  %v74 = vld [vmem:[%s1 + $0xec] sm:$0xf]
  %v75 = vld [vmem:[%s1 + $0xf0] sm:$0xf]
  %v76 = vld [vmem:[%s1 + $0xf4] sm:$0xf]
  %v77 = vld [vmem:[%s1 + $0xf8] sm:$0xf]
  %v78 = vld [vmem:[%s1 + $0xfc] sm:$0xf]
  %vm79 = vcmp.gt.bf16.partialorder %v15, 0
  %vm80 = vcmp.gt.bf16.partialorder %v16, 0
  %vm81 = vcmp.gt.bf16.partialorder %v17, 0
  %vm82 = vcmp.gt.bf16.partialorder %v18, 0
  %vm83 = vcmp.gt.bf16.partialorder %v19, 0
  %vm84 = vcmp.gt.bf16.partialorder %v20, 0
  %vm85 = vcmp.gt.bf16.partialorder %v21, 0
  %vm86 = vcmp.gt.bf16.partialorder %v22, 0
  %vm87 = vcmp.gt.bf16.partialorder %v23, 0
  %vm88 = vcmp.gt.bf16.partialorder %v24, 0
  %vm89 = vcmp.gt.bf16.partialorder %v25, 0
  %vm90 = vcmp.gt.bf16.partialorder %v26, 0
  %vm91 = vcmp.gt.bf16.partialorder %v27, 0
  %vm92 = vcmp.gt.bf16.partialorder %v28, 0
  %vm93 = vcmp.gt.bf16.partialorder %v29, 0
  %vm94 = vcmp.gt.bf16.partialorder %v30, 0
  %vm95 = vcmp.gt.bf16.partialorder %v31, 0
  %vm96 = vcmp.gt.bf16.partialorder %v32, 0
  %vm97 = vcmp.gt.bf16.partialorder %v33, 0
  %vm98 = vcmp.gt.bf16.partialorder %v34, 0
  %vm99 = vcmp.gt.bf16.partialorder %v35, 0
  %vm100 = vcmp.gt.bf16.partialorder %v36, 0
  %vm101 = vcmp.gt.bf16.partialorder %v37, 0
  %vm102 = vcmp.gt.bf16.partialorder %v38, 0
  %vm103 = vcmp.gt.bf16.partialorder %v39, 0
  %vm104 = vcmp.gt.bf16.partialorder %v40, 0
  %vm105 = vcmp.gt.bf16.partialorder %v41, 0
  %vm106 = vcmp.gt.bf16.partialorder %v42, 0
  %vm107 = vcmp.gt.bf16.partialorder %v43, 0
  %vm108 = vcmp.gt.bf16.partialorder %v44, 0
  %vm109 = vcmp.gt.bf16.partialorder %v45, 0
  %vm110 = vcmp.gt.bf16.partialorder %v46, 0
  %vm111 = vcmp.gt.bf16.partialorder %v47, 0
  %vm112 = vcmp.gt.bf16.partialorder %v48, 0
  %vm113 = vcmp.gt.bf16.partialorder %v49, 0
  %vm114 = vcmp.gt.bf16.partialorder %v50, 0
  %vm115 = vcmp.gt.bf16.partialorder %v51, 0
  %vm116 = vcmp.gt.bf16.partialorder %v52, 0
  %vm117 = vcmp.gt.bf16.partialorder %v53, 0
  %vm118 = vcmp.gt.bf16.partialorder %v54, 0
  %vm119 = vcmp.gt.bf16.partialorder %v55, 0
  %vm120 = vcmp.gt.bf16.partialorder %v56, 0
  %vm121 = vcmp.gt.bf16.partialorder %v57, 0
  %vm122 = vcmp.gt.bf16.partialorder %v58, 0
  %vm123 = vcmp.gt.bf16.partialorder %v59, 0
  %vm124 = vcmp.gt.bf16.partialorder %v60, 0
  %vm125 = vcmp.gt.bf16.partialorder %v61, 0
  %vm126 = vcmp.gt.bf16.partialorder %v62, 0
  %vm127 = vcmp.gt.bf16.partialorder %v63, 0
  %vm128 = vcmp.gt.bf16.partialorder %v64, 0
  %vm129 = vcmp.gt.bf16.partialorder %v65, 0
  %vm130 = vcmp.gt.bf16.partialorder %v66, 0
  %vm131 = vcmp.gt.bf16.partialorder %v67, 0
  %vm132 = vcmp.gt.bf16.partialorder %v68, 0
  %vm133 = vcmp.gt.bf16.partialorder %v69, 0
  %vm134 = vcmp.gt.bf16.partialorder %v70, 0
  %vm135 = vcmp.gt.bf16.partialorder %v71, 0
  %vm136 = vcmp.gt.bf16.partialorder %v72, 0
  %vm137 = vcmp.gt.bf16.partialorder %v73, 0
  %vm138 = vcmp.gt.bf16.partialorder %v74, 0
  %vm139 = vcmp.gt.bf16.partialorder %v75, 0
  %vm140 = vcmp.gt.bf16.partialorder %v76, 0
  %vm141 = vcmp.gt.bf16.partialorder %v77, 0
  %vm142 = vcmp.gt.bf16.partialorder %v78, 0
  %v143 = vmul.bf16 %v15, 1045249613
  %v144 = vmul.bf16 %v16, 1045249613
  %v145 = vmul.bf16 %v17, 1045249613
  %v146 = vmul.bf16 %v18, 1045249613
  %v147 = vmul.bf16 %v19, 1045249613
  %v148 = vmul.bf16 %v20, 1045249613
  %v149 = vmul.bf16 %v21, 1045249613
  %v150 = vmul.bf16 %v22, 1045249613
  %v151 = vmul.bf16 %v23, 1045249613
  %v152 = vmul.bf16 %v24, 1045249613
  %v153 = vmul.bf16 %v25, 1045249613
  %v154 = vmul.bf16 %v26, 1045249613
  %v155 = vmul.bf16 %v27, 1045249613
  %v156 = vmul.bf16 %v28, 1045249613
  %v157 = vmul.bf16 %v29, 1045249613
  %v158 = vmul.bf16 %v30, 1045249613
  %v159 = vmul.bf16 %v31, 1045249613
  %v160 = vmul.bf16 %v32, 1045249613
  %v161 = vmul.bf16 %v33, 1045249613
  %v162 = vmul.bf16 %v34, 1045249613
  %v163 = vmul.bf16 %v35, 1045249613
  %v164 = vmul.bf16 %v36, 1045249613
  %v165 = vmul.bf16 %v37, 1045249613
  %v166 = vmul.bf16 %v38, 1045249613
  %v167 = vmul.bf16 %v39, 1045249613
  %v168 = vmul.bf16 %v40, 1045249613
  %v169 = vmul.bf16 %v41, 1045249613
  %v170 = vmul.bf16 %v42, 1045249613
  %v171 = vmul.bf16 %v43, 1045249613
  %v172 = vmul.bf16 %v44, 1045249613
  %v173 = vmul.bf16 %v45, 1045249613
  %v174 = vmul.bf16 %v46, 1045249613
  %v175 = vmul.bf16 %v47, 1045249613
  %v176 = vmul.bf16 %v48, 1045249613
  %v177 = vmul.bf16 %v49, 1045249613
  %v178 = vmul.bf16 %v50, 1045249613
  %v179 = vmul.bf16 %v51, 1045249613
  %v180 = vmul.bf16 %v52, 1045249613
  %v181 = vmul.bf16 %v53, 1045249613
  %v182 = vmul.bf16 %v54, 1045249613
  %v183 = vmul.bf16 %v55, 1045249613
  %v184 = vmul.bf16 %v56, 1045249613
  %v185 = vmul.bf16 %v57, 1045249613
  %v186 = vmul.bf16 %v58, 1045249613
  %v187 = vmul.bf16 %v59, 1045249613
  %v188 = vmul.bf16 %v60, 1045249613
  %v189 = vmul.bf16 %v61, 1045249613
  %v190 = vmul.bf16 %v62, 1045249613
  %v191 = vmul.bf16 %v63, 1045249613
  %v192 = vmul.bf16 %v64, 1045249613
  %v193 = vmul.bf16 %v65, 1045249613
  %v194 = vmul.bf16 %v66, 1045249613
  %v195 = vmul.bf16 %v67, 1045249613
  %v196 = vmul.bf16 %v68, 1045249613
  %v197 = vmul.bf16 %v69, 1045249613
  %v198 = vmul.bf16 %v70, 1045249613
  %v199 = vmul.bf16 %v71, 1045249613
  %v200 = vmul.bf16 %v72, 1045249613
  %v201 = vmul.bf16 %v73, 1045249613
  %v202 = vmul.bf16 %v74, 1045249613
  %v203 = vmul.bf16 %v75, 1045249613
  %v204 = vmul.bf16 %v76, 1045249613
  %v205 = vmul.bf16 %v77, 1045249613
  %v206 = vmul.bf16 %v78, 1045249613
  %v207 = vsel %vm79, %v15, %v143
  %v208 = vsel %vm80, %v16, %v144
  %v209 = vsel %vm81, %v17, %v145
  %v210 = vsel %vm82, %v18, %v146
  %v211 = vsel %vm83, %v19, %v147
  %v212 = vsel %vm84, %v20, %v148
  %v213 = vsel %vm85, %v21, %v149
  %v214 = vsel %vm86, %v22, %v150
  %v215 = vsel %vm87, %v23, %v151
  %v216 = vsel %vm88, %v24, %v152
  %v217 = vsel %vm89, %v25, %v153
  %v218 = vsel %vm90, %v26, %v154
  %v219 = vsel %vm91, %v27, %v155
  %v220 = vsel %vm92, %v28, %v156
  %v221 = vsel %vm93, %v29, %v157
  %v222 = vsel %vm94, %v30, %v158
  %v223 = vsel %vm95, %v31, %v159
  %v224 = vsel %vm96, %v32, %v160
  %v225 = vsel %vm97, %v33, %v161
  %v226 = vsel %vm98, %v34, %v162
  %v227 = vsel %vm99, %v35, %v163
  %v228 = vsel %vm100, %v36, %v164
  %v229 = vsel %vm101, %v37, %v165
  %v230 = vsel %vm102, %v38, %v166
  %v231 = vsel %vm103, %v39, %v167
  %v232 = vsel %vm104, %v40, %v168
  %v233 = vsel %vm105, %v41, %v169
  %v234 = vsel %vm106, %v42, %v170
  %v235 = vsel %vm107, %v43, %v171
  %v236 = vsel %vm108, %v44, %v172
  %v237 = vsel %vm109, %v45, %v173
  %v238 = vsel %vm110, %v46, %v174
  %v239 = vsel %vm111, %v47, %v175
  %v240 = vsel %vm112, %v48, %v176
  %v241 = vsel %vm113, %v49, %v177
  %v242 = vsel %vm114, %v50, %v178
  %v243 = vsel %vm115, %v51, %v179
  %v244 = vsel %vm116, %v52, %v180
  %v245 = vsel %vm117, %v53, %v181
  %v246 = vsel %vm118, %v54, %v182
  %v247 = vsel %vm119, %v55, %v183
  %v248 = vsel %vm120, %v56, %v184
  %v249 = vsel %vm121, %v57, %v185
  %v250 = vsel %vm122, %v58, %v186
  %v251 = vsel %vm123, %v59, %v187
  %v252 = vsel %vm124, %v60, %v188
  %v253 = vsel %vm125, %v61, %v189
  %v254 = vsel %vm126, %v62, %v190
  %v255 = vsel %vm127, %v63, %v191
  %v256 = vsel %vm128, %v64, %v192
  %v257 = vsel %vm129, %v65, %v193
  %v258 = vsel %vm130, %v66, %v194
  %v259 = vsel %vm131, %v67, %v195
  %v260 = vsel %vm132, %v68, %v196
  %v261 = vsel %vm133, %v69, %v197
  %v262 = vsel %vm134, %v70, %v198
  %v263 = vsel %vm135, %v71, %v199
  %v264 = vsel %vm136, %v72, %v200
  %v265 = vsel %vm137, %v73, %v201
  %v266 = vsel %vm138, %v74, %v202
  %v267 = vsel %vm139, %v75, %v203
  %v268 = vsel %vm140, %v76, %v204
  %v269 = vsel %vm141, %v77, %v205
  %v270 = vsel %vm142, %v78, %v206
  %v271 = vld [vmem:[%s0] sm:$0xff]
  %v272 = vld [vmem:[%s0 + $0x8] sm:$0xff]
  %v273 = vld [vmem:[%s0 + $0x10] sm:$0xff]
  %v274 = vld [vmem:[%s0 + $0x18] sm:$0xff]
  %v275 = vld [vmem:[%s0 + $0x20] sm:$0xff]
  %v276 = vld [vmem:[%s0 + $0x28] sm:$0xff]
  %v277 = vld [vmem:[%s0 + $0x30] sm:$0xff]
  %v278 = vld [vmem:[%s0 + $0x38] sm:$0xff]
  %v279 = vld [vmem:[%s0 + $0x40] sm:$0xff]
  %v280 = vld [vmem:[%s0 + $0x48] sm:$0xff]
  %v281 = vld [vmem:[%s0 + $0x50] sm:$0xff]
  %v282 = vld [vmem:[%s0 + $0x58] sm:$0xff]
  %v283 = vld [vmem:[%s0 + $0x60] sm:$0xff]
  %v284 = vld [vmem:[%s0 + $0x68] sm:$0xff]
  %v285 = vld [vmem:[%s0 + $0x70] sm:$0xff]
  %v286 = vld [vmem:[%s0 + $0x78] sm:$0xff]
  %v303 = vunpack.c.l.b16 %v271
  %v304 = vunpack.c.h.b16 %v271
  %v305 = vunpack.c.l.b16 %v272
  %v306 = vunpack.c.h.b16 %v272
  %v307 = vunpack.c.l.b16 %v273
  %v308 = vunpack.c.h.b16 %v273
  %v309 = vunpack.c.l.b16 %v274
  %v310 = vunpack.c.h.b16 %v274
  %v311 = vunpack.c.l.b16 %v275
  %v312 = vunpack.c.h.b16 %v275
  %v313 = vunpack.c.l.b16 %v276
  %v314 = vunpack.c.h.b16 %v276
  %v315 = vunpack.c.l.b16 %v277
  %v316 = vunpack.c.h.b16 %v277
  %v317 = vunpack.c.l.b16 %v278
  %v318 = vunpack.c.h.b16 %v278
  %v319 = vunpack.c.l.b16 %v279
  %v320 = vunpack.c.h.b16 %v279
  %v321 = vunpack.c.l.b16 %v280
  %v322 = vunpack.c.h.b16 %v280
  %v323 = vunpack.c.l.b16 %v281
  %v324 = vunpack.c.h.b16 %v281
  %v325 = vunpack.c.l.b16 %v282
  %v326 = vunpack.c.h.b16 %v282
  %v327 = vunpack.c.l.b16 %v283
  %v328 = vunpack.c.h.b16 %v283
  %v329 = vunpack.c.l.b16 %v284
  %v330 = vunpack.c.h.b16 %v284
  %v331 = vunpack.c.l.b16 %v285
  %v332 = vunpack.c.h.b16 %v285
  %v333 = vunpack.c.l.b16 %v286
  %v334 = vunpack.c.h.b16 %v286
  %v335 = vpack.c.b16 %v307, %v303
  %v336 = vpack.c.b16 %v308, %v304
  %v337 = vpack.c.b16 %v309, %v305
  %v338 = vpack.c.b16 %v310, %v306
  %v339 = vpack.c.b16 %v315, %v311
  %v340 = vpack.c.b16 %v316, %v312
  %v341 = vpack.c.b16 %v317, %v313
  %v342 = vpack.c.b16 %v318, %v314
  %v343 = vpack.c.b16 %v323, %v319
  %v344 = vpack.c.b16 %v324, %v320
  %v345 = vpack.c.b16 %v325, %v321
  %v346 = vpack.c.b16 %v326, %v322
  %v347 = vpack.c.b16 %v331, %v327
  %v348 = vpack.c.b16 %v332, %v328
  %v349 = vpack.c.b16 %v333, %v329
  %v350 = vpack.c.b16 %v334, %v330
  %v431 = vunpack.c.l.b16 %v207
  %v432 = vunpack.c.l.b16 %v208
  %v433 = vunpack.c.l.b16 %v209
  %v434 = vunpack.c.l.b16 %v210
  %v435 = vunpack.c.l.b16 %v211
  %v436 = vunpack.c.l.b16 %v212
  %v437 = vunpack.c.l.b16 %v213
  %v438 = vunpack.c.l.b16 %v214
  %v439 = vunpack.c.l.b16 %v215
  %v440 = vunpack.c.l.b16 %v216
  %v441 = vunpack.c.l.b16 %v217
  %v442 = vunpack.c.l.b16 %v218
  %v443 = vunpack.c.l.b16 %v219
  %v444 = vunpack.c.l.b16 %v220
  %v445 = vunpack.c.l.b16 %v221
  %v446 = vunpack.c.l.b16 %v222
  %v447 = vunpack.c.l.b16 %v223
  %v448 = vunpack.c.l.b16 %v224
  %v449 = vunpack.c.l.b16 %v225
  %v450 = vunpack.c.l.b16 %v226
  %v451 = vunpack.c.l.b16 %v227
  %v452 = vunpack.c.l.b16 %v228
  %v453 = vunpack.c.l.b16 %v229
  %v454 = vunpack.c.l.b16 %v230
  %v455 = vunpack.c.l.b16 %v231
  %v456 = vunpack.c.l.b16 %v232
  %v457 = vunpack.c.l.b16 %v233
  %v458 = vunpack.c.l.b16 %v234
  %v459 = vunpack.c.l.b16 %v235
  %v460 = vunpack.c.l.b16 %v236
  %v461 = vunpack.c.l.b16 %v237
  %v462 = vunpack.c.l.b16 %v238
  %v463 = vunpack.c.l.b16 %v239
  %v464 = vunpack.c.l.b16 %v240
  %v465 = vunpack.c.l.b16 %v241
  %v466 = vunpack.c.l.b16 %v242
  %v467 = vunpack.c.l.b16 %v243
  %v468 = vunpack.c.l.b16 %v244
  %v469 = vunpack.c.l.b16 %v245
  %v470 = vunpack.c.l.b16 %v246
  %v471 = vunpack.c.l.b16 %v247
  %v472 = vunpack.c.l.b16 %v248
  %v473 = vunpack.c.l.b16 %v249
  %v474 = vunpack.c.l.b16 %v250
  %v475 = vunpack.c.l.b16 %v251
  %v476 = vunpack.c.l.b16 %v252
  %v477 = vunpack.c.l.b16 %v253
  %v478 = vunpack.c.l.b16 %v254
  %v479 = vunpack.c.l.b16 %v255
  %v480 = vunpack.c.l.b16 %v256
  %v481 = vunpack.c.l.b16 %v257
  %v482 = vunpack.c.l.b16 %v258
  %v483 = vunpack.c.l.b16 %v259
  %v484 = vunpack.c.l.b16 %v260
  %v485 = vunpack.c.l.b16 %v261
  %v486 = vunpack.c.l.b16 %v262
  %v487 = vunpack.c.l.b16 %v263
  %v488 = vunpack.c.l.b16 %v264
  %v489 = vunpack.c.l.b16 %v265
  %v490 = vunpack.c.l.b16 %v266
  %v491 = vunpack.c.l.b16 %v267
  %v492 = vunpack.c.l.b16 %v268
  %v493 = vunpack.c.l.b16 %v269
  %v494 = vunpack.c.l.b16 %v270
  %v495 = vpack.c.b16 %v432, %v431
  %v496 = vpack.c.b16 %v434, %v433
  %v497 = vpack.c.b16 %v436, %v435
  %v498 = vpack.c.b16 %v438, %v437
  %v499 = vpack.c.b16 %v440, %v439
  %v500 = vpack.c.b16 %v442, %v441
  %v501 = vpack.c.b16 %v444, %v443
  %v502 = vpack.c.b16 %v446, %v445
  %v503 = vpack.c.b16 %v448, %v447
  %v504 = vpack.c.b16 %v450, %v449
  %v505 = vpack.c.b16 %v452, %v451
  %v506 = vpack.c.b16 %v454, %v453
  %v507 = vpack.c.b16 %v456, %v455
  %v508 = vpack.c.b16 %v458, %v457
  %v509 = vpack.c.b16 %v460, %v459
  %v510 = vpack.c.b16 %v462, %v461
  %v511 = vpack.c.b16 %v464, %v463
  %v512 = vpack.c.b16 %v466, %v465
  %v513 = vpack.c.b16 %v468, %v467
  %v514 = vpack.c.b16 %v470, %v469
  %v515 = vpack.c.b16 %v472, %v471
  %v516 = vpack.c.b16 %v474, %v473
  %v517 = vpack.c.b16 %v476, %v475
  %v518 = vpack.c.b16 %v478, %v477
  %v519 = vpack.c.b16 %v480, %v479
  %v520 = vpack.c.b16 %v482, %v481
  %v521 = vpack.c.b16 %v484, %v483
  %v522 = vpack.c.b16 %v486, %v485
  %v523 = vpack.c.b16 %v488, %v487
  %v524 = vpack.c.b16 %v490, %v489
  %v525 = vpack.c.b16 %v492, %v491
  %v526 = vpack.c.b16 %v494, %v493
  %559 = vmatprep.subr.bf16.mxu0 0
  %560 = vmatpush1.bf16.msra.mxu0 %v502
  %561 = vmatprep.subr.bf16.mxu0 0
  %562 = vmatpush1.bf16.msra.mxu0 %v501
  %563 = vmatprep.subr.bf16.mxu0 0
  %564 = vmatpush1.bf16.msra.mxu0 %v500
  %565 = vmatprep.subr.bf16.mxu0 0
  %566 = vmatpush1.bf16.msra.mxu0 %v499
  %567 = vmatprep.subr.bf16.mxu0 0
  %568 = vmatpush1.bf16.msra.mxu0 %v498
  %569 = vmatprep.subr.bf16.mxu0 0
  %570 = vmatpush1.bf16.msra.mxu0 %v497
  %571 = vmatprep.subr.bf16.mxu0 0
  %572 = vmatpush1.bf16.msra.mxu0 %v496
  %573 = vmatprep.subr.bf16.mxu0 0
  %574 = vmatpush1.bf16.msra.mxu0 %v495
  %575 = vmatprep.subr.bf16.mxu0 0
  %576 = vmatpush2.bf16.msra.mxu0 %v510
  %577 = vmatprep.subr.bf16.mxu0 0
  %578 = vmatpush2.bf16.msra.mxu0 %v509
  %579 = vmatprep.subr.bf16.mxu0 0
  %580 = vmatpush2.bf16.msra.mxu0 %v508
  %581 = vmatprep.subr.bf16.mxu0 0
  %582 = vmatpush2.bf16.msra.mxu0 %v507
  %583 = vmatprep.subr.bf16.mxu0 0
  %584 = vmatpush2.bf16.msra.mxu0 %v506
  %585 = vmatprep.subr.bf16.mxu0 0
  %586 = vmatpush2.bf16.msra.mxu0 %v505
  %587 = vmatprep.subr.bf16.mxu0 0
  %588 = vmatpush2.bf16.msra.mxu0 %v504
  %589 = vmatprep.subr.bf16.mxu0 0
  %590 = vmatpush2.bf16.msra.mxu0 %v503
  %591 = vmatprep.mubr.bf16.mxu0 %v336
  %592 = vmatmul.mubr.bf16.gmra.mxu0 %v335
  %v593 = vpop.f32.mrf.mxu0
  %v594 = vadd.f32 0.0, %v593
  %v595 = vpop.f32.mrf.mxu0
  %v596 = vpop.f32.mrf.mxu0
  %v597 = vadd.f32 0.0, %v596
  %v598 = vpop.f32.mrf.mxu0
  %599 = vmatprep.mubr.bf16.mxu0 %v340
  %600 = vmatmul.mubr.bf16.gmra.mxu0 %v339
  %v601 = vpop.f32.mrf.mxu0
  %v602 = vadd.f32 0.0, %v601
  %v603 = vpop.f32.mrf.mxu0
  %v604 = vpop.f32.mrf.mxu0
  %v605 = vadd.f32 0.0, %v604
  %v606 = vpop.f32.mrf.mxu0
  %607 = vmatprep.mubr.bf16.mxu0 %v344
  %608 = vmatmul.mubr.bf16.gmra.mxu0 %v343
  %v609 = vpop.f32.mrf.mxu0
  %v610 = vadd.f32 0.0, %v609
  %v611 = vpop.f32.mrf.mxu0
  %v612 = vpop.f32.mrf.mxu0
  %v613 = vadd.f32 0.0, %v612
  %v614 = vpop.f32.mrf.mxu0
  %615 = vmatprep.mubr.bf16.mxu0 %v348
  %616 = vmatmul.mubr.bf16.gmra.mxu0 %v347
  %v617 = vpop.f32.mrf.mxu0
  %v618 = vadd.f32 0.0, %v617
  %v619 = vpop.f32.mrf.mxu0
  %v620 = vpop.f32.mrf.mxu0
  %v621 = vadd.f32 0.0, %v620
  %v622 = vpop.f32.mrf.mxu0
  %623 = vdwg.mxu0
  %624 = vmatprep.subr.bf16.mxu0 0
  %625 = vmatpush1.bf16.msra.mxu0 %v518
  %626 = vmatprep.subr.bf16.mxu0 0
  %627 = vmatpush1.bf16.msra.mxu0 %v517
  %628 = vmatprep.subr.bf16.mxu0 0
  %629 = vmatpush1.bf16.msra.mxu0 %v516
  %630 = vmatprep.subr.bf16.mxu0 0
  %631 = vmatpush1.bf16.msra.mxu0 %v515
  %632 = vmatprep.subr.bf16.mxu0 0
  %633 = vmatpush1.bf16.msra.mxu0 %v514
  %634 = vmatprep.subr.bf16.mxu0 0
  %635 = vmatpush1.bf16.msra.mxu0 %v513
  %636 = vmatprep.subr.bf16.mxu0 0
  %637 = vmatpush1.bf16.msra.mxu0 %v512
  %638 = vmatprep.subr.bf16.mxu0 0
  %639 = vmatpush1.bf16.msra.mxu0 %v511
  %640 = vmatprep.subr.bf16.mxu0 0
  %641 = vmatpush2.bf16.msra.mxu0 %v526
  %642 = vmatprep.subr.bf16.mxu0 0
  %643 = vmatpush2.bf16.msra.mxu0 %v525
  %644 = vmatprep.subr.bf16.mxu0 0
  %645 = vmatpush2.bf16.msra.mxu0 %v524
  %646 = vmatprep.subr.bf16.mxu0 0
  %647 = vmatpush2.bf16.msra.mxu0 %v523
  %648 = vmatprep.subr.bf16.mxu0 0
  %649 = vmatpush2.bf16.msra.mxu0 %v522
  %650 = vmatprep.subr.bf16.mxu0 0
  %651 = vmatpush2.bf16.msra.mxu0 %v521
  %652 = vmatprep.subr.bf16.mxu0 0
  %653 = vmatpush2.bf16.msra.mxu0 %v520
  %654 = vmatprep.subr.bf16.mxu0 0
  %655 = vmatpush2.bf16.msra.mxu0 %v519
  %656 = vmatprep.mubr.bf16.mxu0 %v338
  %657 = vmatmul.mubr.bf16.gmra.mxu0 %v337
  %v658 = vpop.f32.mrf.mxu0
  %v659 = vadd.f32 %v594, %v658
  %v660 = vpop.f32.mrf.mxu0
  %v661 = vpop.f32.mrf.mxu0
  %v662 = vadd.f32 %v597, %v661
  %v663 = vpop.f32.mrf.mxu0
  %664 = vmatprep.mubr.bf16.mxu0 %v342
  %665 = vmatmul.mubr.bf16.gmra.mxu0 %v341
  %v666 = vpop.f32.mrf.mxu0
  %v667 = vadd.f32 %v602, %v666
  %v668 = vpop.f32.mrf.mxu0
  %v669 = vpop.f32.mrf.mxu0
  %v670 = vadd.f32 %v605, %v669
  %v671 = vpop.f32.mrf.mxu0
  %672 = vmatprep.mubr.bf16.mxu0 %v346
  %673 = vmatmul.mubr.bf16.gmra.mxu0 %v345
  %v674 = vpop.f32.mrf.mxu0
  %v675 = vadd.f32 %v610, %v674
  %v676 = vpop.f32.mrf.mxu0
  %v677 = vpop.f32.mrf.mxu0
  %v678 = vadd.f32 %v613, %v677
  %v679 = vpop.f32.mrf.mxu0
  %680 = vmatprep.mubr.bf16.mxu0 %v350
  %681 = vmatmul.mubr.bf16.gmra.mxu0 %v349
  %v682 = vpop.f32.mrf.mxu0
  %v683 = vadd.f32 %v618, %v682
  %v684 = vpop.f32.mrf.mxu0
  %v685 = vpop.f32.mrf.mxu0
  %v686 = vadd.f32 %v621, %v685
  %v687 = vpop.f32.mrf.mxu0
  %688 = vdwg.mxu0
  %689 = vadd.xlane.f32.xlu0 %v659
  %v690 = vpop.xlane.xlu0 %689
  %691 = vadd.xlane.f32.xlu0 %v662
  %v692 = vpop.xlane.xlu0 %691
  %693 = vadd.xlane.f32.xlu0 %v667
  %v694 = vpop.xlane.xlu0 %693
  %695 = vadd.xlane.f32.xlu0 %v670
  %v696 = vpop.xlane.xlu0 %695
  %697 = vadd.xlane.f32.xlu0 %v675
  %v698 = vpop.xlane.xlu0 %697
  %699 = vadd.xlane.f32.xlu0 %v678
  %v700 = vpop.xlane.xlu0 %699
  %701 = vadd.xlane.f32.xlu0 %v683
  %v702 = vpop.xlane.xlu0 %701
  %703 = vadd.xlane.f32.xlu0 %v686
  %v704 = vpop.xlane.xlu0 %703
  %v705 = vmul.f32 %v659, %v659
  %v706 = vmul.f32 %v662, %v662
  %v707 = vmul.f32 %v667, %v667
  %v708 = vmul.f32 %v670, %v670
  %v709 = vmul.f32 %v675, %v675
  %v710 = vmul.f32 %v678, %v678
  %v711 = vmul.f32 %v683, %v683
  %v712 = vmul.f32 %v686, %v686
  %713 = vadd.xlane.f32.xlu0 %v705
  %v714 = vpop.xlane.xlu0 %713
  %715 = vadd.xlane.f32.xlu0 %v706
  %v716 = vpop.xlane.xlu0 %715
  %717 = vadd.xlane.f32.xlu0 %v707
  %v718 = vpop.xlane.xlu0 %717
  %719 = vadd.xlane.f32.xlu0 %v708
  %v720 = vpop.xlane.xlu0 %719
  %721 = vadd.xlane.f32.xlu0 %v709
  %v722 = vpop.xlane.xlu0 %721
  %723 = vadd.xlane.f32.xlu0 %v710
  %v724 = vpop.xlane.xlu0 %723
  %725 = vadd.xlane.f32.xlu0 %v711
  %v726 = vpop.xlane.xlu0 %725
  %727 = vadd.xlane.f32.xlu0 %v712
  %v728 = vpop.xlane.xlu0 %727
  %vm729 = vcmask 7168
  %v730 = vsel %vm729, %v690, %v714
  %v731 = vsel %vm729, %v692, %v716
  %v732 = vsel %vm729, %v694, %v718
  %v733 = vsel %vm729, %v696, %v720
  %v734 = vsel %vm729, %v698, %v722
  %v735 = vsel %vm729, %v700, %v724
  %v736 = vsel %vm729, %v702, %v726
  %v737 = vsel %vm729, %v704, %v728
  %vm738 = vcmask 15360
  %739 = vst.msk [vmem:[%s3] sm:$0xff] %vm738, %v730
  %740 = vst.msk [vmem:[%s3 + $0x8] sm:$0xff] %vm738, %v731
  %741 = vst.msk [vmem:[%s3 + $0x10] sm:$0xff] %vm738, %v732
  %742 = vst.msk [vmem:[%s3 + $0x18] sm:$0xff] %vm738, %v733
  %743 = vst.msk [vmem:[%s3 + $0x20] sm:$0xff] %vm738, %v734
  %744 = vst.msk [vmem:[%s3 + $0x28] sm:$0xff] %vm738, %v735
  %745 = vst.msk [vmem:[%s3 + $0x30] sm:$0xff] %vm738, %v736
  %746 = vst.msk [vmem:[%s3 + $0x38] sm:$0xff] %vm738, %v737
  %v747 = vpack.c.bf16 %v662, %v659
  %v748 = vpack.c.bf16 %v670, %v667
  %v749 = vpack.c.bf16 %v678, %v675
  %v750 = vpack.c.bf16 %v686, %v683
  %v755 = vunpack.c.l.b16 %v747
  %v756 = vunpack.c.h.b16 %v747
  %v757 = vunpack.c.l.b16 %v748
  %v758 = vunpack.c.h.b16 %v748
  %v759 = vunpack.c.l.b16 %v749
  %v760 = vunpack.c.h.b16 %v749
  %v761 = vunpack.c.l.b16 %v750
  %v762 = vunpack.c.h.b16 %v750
  %v763 = vpack.c.b16 %v755, %v755
  %v764 = vpack.c.b16 %v756, %v756
  %v765 = vpack.c.b16 %v757, %v757
  %v766 = vpack.c.b16 %v758, %v758
  %v767 = vpack.c.b16 %v759, %v759
  %v768 = vpack.c.b16 %v760, %v760
  %v769 = vpack.c.b16 %v761, %v761
  %v770 = vpack.c.b16 %v762, %v762
  %779 = vst [vmem:[%s2] sm:$0xf] %v763
  %780 = vst [vmem:[%s2 + $0x4] sm:$0xf] %v764
  %781 = vst [vmem:[%s2 + $0x8] sm:$0xf] %v765
  %782 = vst [vmem:[%s2 + $0xc] sm:$0xf] %v766
  %783 = vst [vmem:[%s2 + $0x10] sm:$0xf] %v767
  %784 = vst [vmem:[%s2 + $0x14] sm:$0xf] %v768
  %785 = vst [vmem:[%s2 + $0x18] sm:$0xf] %v769
  %786 = vst [vmem:[%s2 + $0x1c] sm:$0xf] %v770
  // Predicated region
  $region10: #{image_discriminator.7} parent=0 // pred_check
    _
  $region11: #{image_discriminator.7} parent=0 // pred_check_branch
    %788 = sbr.rel (0) target = $region13
  $region12: #{image_discriminator.7} parent=0 // pred_region
    _
  $region13: #{image_discriminator.7} parent=0 // pred_fallthru
    _
  // Predicated region
  $region14: #{image_discriminator.7} parent=0 // pred_check
    _
  $region15: #{image_discriminator.7} parent=0 // pred_check_branch
    %790 = sbr.rel (0) target = $region17
  $region16: #{image_discriminator.7} parent=0 // pred_region
    _
  $region17: #{image_discriminator.7} parent=0 // pred_fallthru
    _
  // Predicated region
  $region18: #{image_discriminator.7} parent=0 // pred_check
    _
  $region19: #{image_discriminator.7} parent=0 // pred_check_branch
    %792 = sbr.rel (0) target = $region21
  $region20: #{image_discriminator.7} parent=0 // pred_region
    _
  $region21: #{image_discriminator.7} parent=0 // pred_fallthru
    _
  // Predicated region
  $region22: #{image_discriminator.7} parent=0 // pred_check
    _
  $region23: #{image_discriminator.7} parent=0 // pred_check_branch
    %794 = sbr.rel (0) target = $region25
  $region24: #{image_discriminator.7} parent=0 // pred_region
    _
  $region25: #{image_discriminator.7} parent=0 // pred_fallthru
    _

// kernel: tile.23
$region0: #{tile.23}
  #allocation0 [shape = 's32[1]{0}', space=sflag, size = 0x4, scoped, tag = 'scoped memory for tile.23']
  %s0 = inlined_call_operand.vmem [shape: f32[64], index: 0, kind: input, shape index: {}]
  %s1 = inlined_call_operand.vmem [shape: f32[16,64], index: 1, kind: output, shape index: {}]
  // Predicated region
  $region2: #{tile.23} parent=0 // pred_check
    _
  $region3: #{tile.23} parent=0 // pred_check_branch
    %3 = sbr.rel (0) target = $region5
  $region4: #{tile.23} parent=0 // pred_region
    _
  $region5: #{tile.23} parent=0 // pred_fallthru
    _
  %v4 = vld [vmem:[%s0] ss:$0 sm:$0xff]
  %5 = vst [vmem:[%s1] sm:$0xff] %v4
  %s6 = scalar_lea.vmem %s1, 8
  %7 = vst [vmem:[%s6] sm:$0xff] %v4

// kernel: mul.24
$region0: #{mul.24}
  %s0 = inlined_call_operand.vmem [shape: f32[16,64], index: 0, kind: input, shape index: {}]
  %s1 = inlined_call_operand.vmem [shape: f32[1024], index: 1, kind: output, shape index: {}]
  %v2 = vld [vmem:[%s0] ss:$2 sm:$0xff]
  %vm3 = vcmask 523264
  %4 = vst.msk [vmem:[%s1] sm:$0xff] %vm3, %v2
  %s5 = scalar_lea.vmem %s0, 1
  %v6 = vld [vmem:[%s5] ss:$2 sm:$0xff]
  %7 = vrot.lane.b32.xlu0 %v6, 64
  %v8 = vpop.permute.xlu0 %7
  %vm9 = vcmask 1048064
  %10 = vst.msk [vmem:[%s1] sm:$0xff] %vm9, %v8

// kernel: tile.28
$region0: #{tile.28}
  #allocation0 [shape = 's32[1]{0}', space=sflag, size = 0x4, scoped, tag = 'scoped memory for tile.28']
  %s0 = inlined_call_operand.vmem [shape: f32[128], index: 0, kind: input, shape index: {}]
  %s1 = inlined_call_operand.vmem [shape: f32[16,128], index: 1, kind: output, shape index: {}]
  // Predicated region
  $region2: #{tile.28} parent=0 // pred_check
    _
  $region3: #{tile.28} parent=0 // pred_check_branch
    %3 = sbr.rel (0) target = $region5
  $region4: #{tile.28} parent=0 // pred_region
    _
  $region5: #{tile.28} parent=0 // pred_fallthru
    _
  %v4 = vld [vmem:[%s0] ss:$0 sm:$0xff]
  %5 = vst [vmem:[%s1] sm:$0xff] %v4
  %s6 = scalar_lea.vmem %s1, 8
  %7 = vst [vmem:[%s6] sm:$0xff] %v4

// kernel: image_discriminator.8
$region0: #{image_discriminator.8}
  #allocation0 [shape = 'u32[]', space=smem, size = 0x4, offset = 0x4, fixed_abs, tag = 'smem constant byte address 0x4 - core index']
  #allocation1 [shape = 'u32[144,128]{1,0:T(1,128)}', space=vmem, size = 0x12000, scoped, tag = 'internal scratch']
  %s0 = inlined_call_operand.vmem [shape: bf16[128,1024], index: 0, kind: input, shape index: {}]
  %s1 = inlined_call_operand.vmem [shape: bf16[1024,32], index: 1, kind: input, shape index: {}]
  %s2 = inlined_call_operand.vmem [shape: bf16[128,32], index: 2, kind: output, shape index: {0}]
  %s3 = inlined_call_operand.vmem [shape: f32[1,128,2], index: 3, kind: output, shape index: {1}]
  %4 = xla_tuple %s2, %s3
  %s5 = sld [smem:[#allocation0]]
  $region26: #{image_discriminator.8} parent=0
    _
  %s7 = ssub.s32 1, %s5
  %s8 = scalar_select 0, %s7, %s5
  // Predicated region
  $region2: #{image_discriminator.8} parent=0 // pred_check
    _
  $region3: #{image_discriminator.8} parent=0 // pred_check_branch
    %10 = sbr.rel (0) target = $region5
  $region4: #{image_discriminator.8} parent=0 // pred_region
    _
  $region5: #{image_discriminator.8} parent=0 // pred_fallthru
    _
  // Predicated region
  $region6: #{image_discriminator.8} parent=0 // pred_check
    _
  $region7: #{image_discriminator.8} parent=0 // pred_check_branch
    %12 = sbr.rel (0) target = $region9
  $region8: #{image_discriminator.8} parent=0 // pred_region
    _
  $region9: #{image_discriminator.8} parent=0 // pred_fallthru
    _
  %v15 = vld [vmem:[%s1] sm:$0xf]
  %v16 = vld [vmem:[%s1 + $0x4] sm:$0xf]
  %v17 = vld [vmem:[%s1 + $0x8] sm:$0xf]
  %v18 = vld [vmem:[%s1 + $0xc] sm:$0xf]
  %v19 = vld [vmem:[%s1 + $0x10] sm:$0xf]
  %v20 = vld [vmem:[%s1 + $0x14] sm:$0xf]
  %v21 = vld [vmem:[%s1 + $0x18] sm:$0xf]
  %v22 = vld [vmem:[%s1 + $0x1c] sm:$0xf]
  %v23 = vld [vmem:[%s1 + $0x20] sm:$0xf]
  %v24 = vld [vmem:[%s1 + $0x24] sm:$0xf]
  %v25 = vld [vmem:[%s1 + $0x28] sm:$0xf]
  %v26 = vld [vmem:[%s1 + $0x2c] sm:$0xf]
  %v27 = vld [vmem:[%s1 + $0x30] sm:$0xf]
  %v28 = vld [vmem:[%s1 + $0x34] sm:$0xf]
  %v29 = vld [vmem:[%s1 + $0x38] sm:$0xf]
  %v30 = vld [vmem:[%s1 + $0x3c] sm:$0xf]
  %v31 = vld [vmem:[%s1 + $0x40] sm:$0xf]
  %v32 = vld [vmem:[%s1 + $0x44] sm:$0xf]
  %v33 = vld [vmem:[%s1 + $0x48] sm:$0xf]
  %v34 = vld [vmem:[%s1 + $0x4c] sm:$0xf]
  %v35 = vld [vmem:[%s1 + $0x50] sm:$0xf]
  %v36 = vld [vmem:[%s1 + $0x54] sm:$0xf]
  %v37 = vld [vmem:[%s1 + $0x58] sm:$0xf]
  %v38 = vld [vmem:[%s1 + $0x5c] sm:$0xf]
  %v39 = vld [vmem:[%s1 + $0x60] sm:$0xf]
  %v40 = vld [vmem:[%s1 + $0x64] sm:$0xf]
  %v41 = vld [vmem:[%s1 + $0x68] sm:$0xf]
  %v42 = vld [vmem:[%s1 + $0x6c] sm:$0xf]
  %v43 = vld [vmem:[%s1 + $0x70] sm:$0xf]
  %v44 = vld [vmem:[%s1 + $0x74] sm:$0xf]
  %v45 = vld [vmem:[%s1 + $0x78] sm:$0xf]
  %v46 = vld [vmem:[%s1 + $0x7c] sm:$0xf]
  %v47 = vld [vmem:[%s1 + $0x80] sm:$0xf]
  %v48 = vld [vmem:[%s1 + $0x84] sm:$0xf]
  %v49 = vld [vmem:[%s1 + $0x88] sm:$0xf]
  %v50 = vld [vmem:[%s1 + $0x8c] sm:$0xf]
  %v51 = vld [vmem:[%s1 + $0x90] sm:$0xf]
  %v52 = vld [vmem:[%s1 + $0x94] sm:$0xf]
  %v53 = vld [vmem:[%s1 + $0x98] sm:$0xf]
  %v54 = vld [vmem:[%s1 + $0x9c] sm:$0xf]
  %v55 = vld [vmem:[%s1 + $0xa0] sm:$0xf]
  %v56 = vld [vmem:[%s1 + $0xa4] sm:$0xf]
  %v57 = vld [vmem:[%s1 + $0xa8] sm:$0xf]
  %v58 = vld [vmem:[%s1 + $0xac] sm:$0xf]
  %v59 = vld [vmem:[%s1 + $0xb0] sm:$0xf]
  %v60 = vld [vmem:[%s1 + $0xb4] sm:$0xf]
  %v61 = vld [vmem:[%s1 + $0xb8] sm:$0xf]
  %v62 = vld [vmem:[%s1 + $0xbc] sm:$0xf]
  %v63 = vld [vmem:[%s1 + $0xc0] sm:$0xf]
  %v64 = vld [vmem:[%s1 + $0xc4] sm:$0xf]
  %v65 = vld [vmem:[%s1 + $0xc8] sm:$0xf]
  %v66 = vld [vmem:[%s1 + $0xcc] sm:$0xf]
  %v67 = vld [vmem:[%s1 + $0xd0] sm:$0xf]
  %v68 = vld [vmem:[%s1 + $0xd4] sm:$0xf]
  %v69 = vld [vmem:[%s1 + $0xd8] sm:$0xf]
  %v70 = vld [vmem:[%s1 + $0xdc] sm:$0xf]
  %v71 = vld [vmem:[%s1 + $0xe0] sm:$0xf]
  %v72 = vld [vmem:[%s1 + $0xe4] sm:$0xf]
  %v73 = vld [vmem:[%s1 + $0xe8] sm:$0xf]
  %v74 = vld [vmem:[%s1 + $0xec] sm:$0xf]
  %v75 = vld [vmem:[%s1 + $0xf0] sm:$0xf]
  %v76 = vld [vmem:[%s1 + $0xf4] sm:$0xf]
  %v77 = vld [vmem:[%s1 + $0xf8] sm:$0xf]
  %v78 = vld [vmem:[%s1 + $0xfc] sm:$0xf]
  %v79 = vld [vmem:[%s1 + $0x100] sm:$0xf]
  %v80 = vld [vmem:[%s1 + $0x104] sm:$0xf]
  %v81 = vld [vmem:[%s1 + $0x108] sm:$0xf]
  %v82 = vld [vmem:[%s1 + $0x10c] sm:$0xf]
  %v83 = vld [vmem:[%s1 + $0x110] sm:$0xf]
  %v84 = vld [vmem:[%s1 + $0x114] sm:$0xf]
  %v85 = vld [vmem:[%s1 + $0x118] sm:$0xf]
  %v86 = vld [vmem:[%s1 + $0x11c] sm:$0xf]
  %v87 = vld [vmem:[%s1 + $0x120] sm:$0xf]
  %v88 = vld [vmem:[%s1 + $0x124] sm:$0xf]
  %v89 = vld [vmem:[%s1 + $0x128] sm:$0xf]
  %v90 = vld [vmem:[%s1 + $0x12c] sm:$0xf]
  %v91 = vld [vmem:[%s1 + $0x130] sm:$0xf]
  %v92 = vld [vmem:[%s1 + $0x134] sm:$0xf]
  %v93 = vld [vmem:[%s1 + $0x138] sm:$0xf]
  %v94 = vld [vmem:[%s1 + $0x13c] sm:$0xf]
  %v95 = vld [vmem:[%s1 + $0x140] sm:$0xf]
  %v96 = vld [vmem:[%s1 + $0x144] sm:$0xf]
  %v97 = vld [vmem:[%s1 + $0x148] sm:$0xf]
  %v98 = vld [vmem:[%s1 + $0x14c] sm:$0xf]
  %v99 = vld [vmem:[%s1 + $0x150] sm:$0xf]
  %v100 = vld [vmem:[%s1 + $0x154] sm:$0xf]
  %v101 = vld [vmem:[%s1 + $0x158] sm:$0xf]
  %v102 = vld [vmem:[%s1 + $0x15c] sm:$0xf]
  %v103 = vld [vmem:[%s1 + $0x160] sm:$0xf]
  %v104 = vld [vmem:[%s1 + $0x164] sm:$0xf]
  %v105 = vld [vmem:[%s1 + $0x168] sm:$0xf]
  %v106 = vld [vmem:[%s1 + $0x16c] sm:$0xf]
  %v107 = vld [vmem:[%s1 + $0x170] sm:$0xf]
  %v108 = vld [vmem:[%s1 + $0x174] sm:$0xf]
  %v109 = vld [vmem:[%s1 + $0x178] sm:$0xf]
  %v110 = vld [vmem:[%s1 + $0x17c] sm:$0xf]
  %v111 = vld [vmem:[%s1 + $0x180] sm:$0xf]
  %v112 = vld [vmem:[%s1 + $0x184] sm:$0xf]
  %v113 = vld [vmem:[%s1 + $0x188] sm:$0xf]
  %v114 = vld [vmem:[%s1 + $0x18c] sm:$0xf]
  %v115 = vld [vmem:[%s1 + $0x190] sm:$0xf]
  %v116 = vld [vmem:[%s1 + $0x194] sm:$0xf]
  %v117 = vld [vmem:[%s1 + $0x198] sm:$0xf]
  %v118 = vld [vmem:[%s1 + $0x19c] sm:$0xf]
  %v119 = vld [vmem:[%s1 + $0x1a0] sm:$0xf]
  %v120 = vld [vmem:[%s1 + $0x1a4] sm:$0xf]
  %v121 = vld [vmem:[%s1 + $0x1a8] sm:$0xf]
  %v122 = vld [vmem:[%s1 + $0x1ac] sm:$0xf]
  %v123 = vld [vmem:[%s1 + $0x1b0] sm:$0xf]
  %v124 = vld [vmem:[%s1 + $0x1b4] sm:$0xf]
  %v125 = vld [vmem:[%s1 + $0x1b8] sm:$0xf]
  %v126 = vld [vmem:[%s1 + $0x1bc] sm:$0xf]
  %v127 = vld [vmem:[%s1 + $0x1c0] sm:$0xf]
  %v128 = vld [vmem:[%s1 + $0x1c4] sm:$0xf]
  %v129 = vld [vmem:[%s1 + $0x1c8] sm:$0xf]
  %v130 = vld [vmem:[%s1 + $0x1cc] sm:$0xf]
  %v131 = vld [vmem:[%s1 + $0x1d0] sm:$0xf]
  %v132 = vld [vmem:[%s1 + $0x1d4] sm:$0xf]
  %v133 = vld [vmem:[%s1 + $0x1d8] sm:$0xf]
  %v134 = vld [vmem:[%s1 + $0x1dc] sm:$0xf]
  %v135 = vld [vmem:[%s1 + $0x1e0] sm:$0xf]
  %v136 = vld [vmem:[%s1 + $0x1e4] sm:$0xf]
  %v137 = vld [vmem:[%s1 + $0x1e8] sm:$0xf]
  %v138 = vld [vmem:[%s1 + $0x1ec] sm:$0xf]
  %v139 = vld [vmem:[%s1 + $0x1f0] sm:$0xf]
  %v140 = vld [vmem:[%s1 + $0x1f4] sm:$0xf]
  %v141 = vld [vmem:[%s1 + $0x1f8] sm:$0xf]
  %v142 = vld [vmem:[%s1 + $0x1fc] sm:$0xf]
  %vm143 = vcmp.gt.bf16.partialorder %v15, 0
  %vm144 = vcmp.gt.bf16.partialorder %v16, 0
  %vm145 = vcmp.gt.bf16.partialorder %v17, 0
  %vm146 = vcmp.gt.bf16.partialorder %v18, 0
  %vm147 = vcmp.gt.bf16.partialorder %v19, 0
  %vm148 = vcmp.gt.bf16.partialorder %v20, 0
  %vm149 = vcmp.gt.bf16.partialorder %v21, 0
  %vm150 = vcmp.gt.bf16.partialorder %v22, 0
  %vm151 = vcmp.gt.bf16.partialorder %v23, 0
  %vm152 = vcmp.gt.bf16.partialorder %v24, 0
  %vm153 = vcmp.gt.bf16.partialorder %v25, 0
  %vm154 = vcmp.gt.bf16.partialorder %v26, 0
  %vm155 = vcmp.gt.bf16.partialorder %v27, 0
  %vm156 = vcmp.gt.bf16.partialorder %v28, 0
  %vm157 = vcmp.gt.bf16.partialorder %v29, 0
  %vm158 = vcmp.gt.bf16.partialorder %v30, 0
  %vm159 = vcmp.gt.bf16.partialorder %v31, 0
  %vm160 = vcmp.gt.bf16.partialorder %v32, 0
  %vm161 = vcmp.gt.bf16.partialorder %v33, 0
  %vm162 = vcmp.gt.bf16.partialorder %v34, 0
  %vm163 = vcmp.gt.bf16.partialorder %v35, 0
  %vm164 = vcmp.gt.bf16.partialorder %v36, 0
  %vm165 = vcmp.gt.bf16.partialorder %v37, 0
  %vm166 = vcmp.gt.bf16.partialorder %v38, 0
  %vm167 = vcmp.gt.bf16.partialorder %v39, 0
  %vm168 = vcmp.gt.bf16.partialorder %v40, 0
  %vm169 = vcmp.gt.bf16.partialorder %v41, 0
  %vm170 = vcmp.gt.bf16.partialorder %v42, 0
  %vm171 = vcmp.gt.bf16.partialorder %v43, 0
  %vm172 = vcmp.gt.bf16.partialorder %v44, 0
  %vm173 = vcmp.gt.bf16.partialorder %v45, 0
  %vm174 = vcmp.gt.bf16.partialorder %v46, 0
  %vm175 = vcmp.gt.bf16.partialorder %v47, 0
  %vm176 = vcmp.gt.bf16.partialorder %v48, 0
  %vm177 = vcmp.gt.bf16.partialorder %v49, 0
  %vm178 = vcmp.gt.bf16.partialorder %v50, 0
  %vm179 = vcmp.gt.bf16.partialorder %v51, 0
  %vm180 = vcmp.gt.bf16.partialorder %v52, 0
  %vm181 = vcmp.gt.bf16.partialorder %v53, 0
  %vm182 = vcmp.gt.bf16.partialorder %v54, 0
  %vm183 = vcmp.gt.bf16.partialorder %v55, 0
  %vm184 = vcmp.gt.bf16.partialorder %v56, 0
  %vm185 = vcmp.gt.bf16.partialorder %v57, 0
  %vm186 = vcmp.gt.bf16.partialorder %v58, 0
  %vm187 = vcmp.gt.bf16.partialorder %v59, 0
  %vm188 = vcmp.gt.bf16.partialorder %v60, 0
  %vm189 = vcmp.gt.bf16.partialorder %v61, 0
  %vm190 = vcmp.gt.bf16.partialorder %v62, 0
  %vm191 = vcmp.gt.bf16.partialorder %v63, 0
  %vm192 = vcmp.gt.bf16.partialorder %v64, 0
  %vm193 = vcmp.gt.bf16.partialorder %v65, 0
  %vm194 = vcmp.gt.bf16.partialorder %v66, 0
  %vm195 = vcmp.gt.bf16.partialorder %v67, 0
  %vm196 = vcmp.gt.bf16.partialorder %v68, 0
  %vm197 = vcmp.gt.bf16.partialorder %v69, 0
  %vm198 = vcmp.gt.bf16.partialorder %v70, 0
  %vm199 = vcmp.gt.bf16.partialorder %v71, 0
  %vm200 = vcmp.gt.bf16.partialorder %v72, 0
  %vm201 = vcmp.gt.bf16.partialorder %v73, 0
  %vm202 = vcmp.gt.bf16.partialorder %v74, 0
  %vm203 = vcmp.gt.bf16.partialorder %v75, 0
  %vm204 = vcmp.gt.bf16.partialorder %v76, 0
  %vm205 = vcmp.gt.bf16.partialorder %v77, 0
  %vm206 = vcmp.gt.bf16.partialorder %v78, 0
  %vm207 = vcmp.gt.bf16.partialorder %v79, 0
  %vm208 = vcmp.gt.bf16.partialorder %v80, 0
  %vm209 = vcmp.gt.bf16.partialorder %v81, 0
  %vm210 = vcmp.gt.bf16.partialorder %v82, 0
  %vm211 = vcmp.gt.bf16.partialorder %v83, 0
  %vm212 = vcmp.gt.bf16.partialorder %v84, 0
  %vm213 = vcmp.gt.bf16.partialorder %v85, 0
  %vm214 = vcmp.gt.bf16.partialorder %v86, 0
  %vm215 = vcmp.gt.bf16.partialorder %v87, 0
  %vm216 = vcmp.gt.bf16.partialorder %v88, 0
  %vm217 = vcmp.gt.bf16.partialorder %v89, 0
  %vm218 = vcmp.gt.bf16.partialorder %v90, 0
  %vm219 = vcmp.gt.bf16.partialorder %v91, 0
  %vm220 = vcmp.gt.bf16.partialorder %v92, 0
  %vm221 = vcmp.gt.bf16.partialorder %v93, 0
  %vm222 = vcmp.gt.bf16.partialorder %v94, 0
  %vm223 = vcmp.gt.bf16.partialorder %v95, 0
  %vm224 = vcmp.gt.bf16.partialorder %v96, 0
  %vm225 = vcmp.gt.bf16.partialorder %v97, 0
  %vm226 = vcmp.gt.bf16.partialorder %v98, 0
  %vm227 = vcmp.gt.bf16.partialorder %v99, 0
  %vm228 = vcmp.gt.bf16.partialorder %v100, 0
  %vm229 = vcmp.gt.bf16.partialorder %v101, 0
  %vm230 = vcmp.gt.bf16.partialorder %v102, 0
  %vm231 = vcmp.gt.bf16.partialorder %v103, 0
  %vm232 = vcmp.gt.bf16.partialorder %v104, 0
  %vm233 = vcmp.gt.bf16.partialorder %v105, 0
  %vm234 = vcmp.gt.bf16.partialorder %v106, 0
  %vm235 = vcmp.gt.bf16.partialorder %v107, 0
  %vm236 = vcmp.gt.bf16.partialorder %v108, 0
  %vm237 = vcmp.gt.bf16.partialorder %v109, 0
  %vm238 = vcmp.gt.bf16.partialorder %v110, 0
  %vm239 = vcmp.gt.bf16.partialorder %v111, 0
  %vm240 = vcmp.gt.bf16.partialorder %v112, 0
  %vm241 = vcmp.gt.bf16.partialorder %v113, 0
  %vm242 = vcmp.gt.bf16.partialorder %v114, 0
  %vm243 = vcmp.gt.bf16.partialorder %v115, 0
  %vm244 = vcmp.gt.bf16.partialorder %v116, 0
  %vm245 = vcmp.gt.bf16.partialorder %v117, 0
  %vm246 = vcmp.gt.bf16.partialorder %v118, 0
  %vm247 = vcmp.gt.bf16.partialorder %v119, 0
  %vm248 = vcmp.gt.bf16.partialorder %v120, 0
  %vm249 = vcmp.gt.bf16.partialorder %v121, 0
  %vm250 = vcmp.gt.bf16.partialorder %v122, 0
  %vm251 = vcmp.gt.bf16.partialorder %v123, 0
  %vm252 = vcmp.gt.bf16.partialorder %v124, 0
  %vm253 = vcmp.gt.bf16.partialorder %v125, 0
  %vm254 = vcmp.gt.bf16.partialorder %v126, 0
  %vm255 = vcmp.gt.bf16.partialorder %v127, 0
  %vm256 = vcmp.gt.bf16.partialorder %v128, 0
  %vm257 = vcmp.gt.bf16.partialorder %v129, 0
  %vm258 = vcmp.gt.bf16.partialorder %v130, 0
  %vm259 = vcmp.gt.bf16.partialorder %v131, 0
  %vm260 = vcmp.gt.bf16.partialorder %v132, 0
  %vm261 = vcmp.gt.bf16.partialorder %v133, 0
  %vm262 = vcmp.gt.bf16.partialorder %v134, 0
  %vm263 = vcmp.gt.bf16.partialorder %v135, 0
  %vm264 = vcmp.gt.bf16.partialorder %v136, 0
  %vm265 = vcmp.gt.bf16.partialorder %v137, 0
  %vm266 = vcmp.gt.bf16.partialorder %v138, 0
  %vm267 = vcmp.gt.bf16.partialorder %v139, 0
  %vm268 = vcmp.gt.bf16.partialorder %v140, 0
  %vm269 = vcmp.gt.bf16.partialorder %v141, 0
  %vm270 = vcmp.gt.bf16.partialorder %v142, 0
  %v271 = vmul.bf16 %v15, 1045249613
  %v272 = vmul.bf16 %v16, 1045249613
  %v273 = vmul.bf16 %v17, 1045249613
  %v274 = vmul.bf16 %v18, 1045249613
  %v275 = vmul.bf16 %v19, 1045249613
  %v276 = vmul.bf16 %v20, 1045249613
  %v277 = vmul.bf16 %v21, 1045249613
  %v278 = vmul.bf16 %v22, 1045249613
  %v279 = vmul.bf16 %v23, 1045249613
  %v280 = vmul.bf16 %v24, 1045249613
  %v281 = vmul.bf16 %v25, 1045249613
  %v282 = vmul.bf16 %v26, 1045249613
  %v283 = vmul.bf16 %v27, 1045249613
  %v284 = vmul.bf16 %v28, 1045249613
  %v285 = vmul.bf16 %v29, 1045249613
  %v286 = vmul.bf16 %v30, 1045249613
  %v287 = vmul.bf16 %v31, 1045249613
  %v288 = vmul.bf16 %v32, 1045249613
  %v289 = vmul.bf16 %v33, 1045249613
  %v290 = vmul.bf16 %v34, 1045249613
  %v291 = vmul.bf16 %v35, 1045249613
  %v292 = vmul.bf16 %v36, 1045249613
  %v293 = vmul.bf16 %v37, 1045249613
  %v294 = vmul.bf16 %v38, 1045249613
  %v295 = vmul.bf16 %v39, 1045249613
  %v296 = vmul.bf16 %v40, 1045249613
  %v297 = vmul.bf16 %v41, 1045249613
  %v298 = vmul.bf16 %v42, 1045249613
  %v299 = vmul.bf16 %v43, 1045249613
  %v300 = vmul.bf16 %v44, 1045249613
  %v301 = vmul.bf16 %v45, 1045249613
  %v302 = vmul.bf16 %v46, 1045249613
  %v303 = vmul.bf16 %v47, 1045249613
  %v304 = vmul.bf16 %v48, 1045249613
  %v305 = vmul.bf16 %v49, 1045249613
  %v306 = vmul.bf16 %v50, 1045249613
  %v307 = vmul.bf16 %v51, 1045249613
  %v308 = vmul.bf16 %v52, 1045249613
  %v309 = vmul.bf16 %v53, 1045249613
  %v310 = vmul.bf16 %v54, 1045249613
  %v311 = vmul.bf16 %v55, 1045249613
  %v312 = vmul.bf16 %v56, 1045249613
  %v313 = vmul.bf16 %v57, 1045249613
  %v314 = vmul.bf16 %v58, 1045249613
  %v315 = vmul.bf16 %v59, 1045249613
  %v316 = vmul.bf16 %v60, 1045249613
  %v317 = vmul.bf16 %v61, 1045249613
  %v318 = vmul.bf16 %v62, 1045249613
  %v319 = vmul.bf16 %v63, 1045249613
  %v320 = vmul.bf16 %v64, 1045249613
  %v321 = vmul.bf16 %v65, 1045249613
  %v322 = vmul.bf16 %v66, 1045249613
  %v323 = vmul.bf16 %v67, 1045249613
  %v324 = vmul.bf16 %v68, 1045249613
  %v325 = vmul.bf16 %v69, 1045249613
  %v326 = vmul.bf16 %v70, 1045249613
  %v327 = vmul.bf16 %v71, 1045249613
  %v328 = vmul.bf16 %v72, 1045249613
  %v329 = vmul.bf16 %v73, 1045249613
  %v330 = vmul.bf16 %v74, 1045249613
  %v331 = vmul.bf16 %v75, 1045249613
  %v332 = vmul.bf16 %v76, 1045249613
  %v333 = vmul.bf16 %v77, 1045249613
  %v334 = vmul.bf16 %v78, 1045249613
  %v335 = vmul.bf16 %v79, 1045249613
  %v336 = vmul.bf16 %v80, 1045249613
  %v337 = vmul.bf16 %v81, 1045249613
  %v338 = vmul.bf16 %v82, 1045249613
  %v339 = vmul.bf16 %v83, 1045249613
  %v340 = vmul.bf16 %v84, 1045249613
  %v341 = vmul.bf16 %v85, 1045249613
  %v342 = vmul.bf16 %v86, 1045249613
  %v343 = vmul.bf16 %v87, 1045249613
  %v344 = vmul.bf16 %v88, 1045249613
  %v345 = vmul.bf16 %v89, 1045249613
  %v346 = vmul.bf16 %v90, 1045249613
  %v347 = vmul.bf16 %v91, 1045249613
  %v348 = vmul.bf16 %v92, 1045249613
  %v349 = vmul.bf16 %v93, 1045249613
  %v350 = vmul.bf16 %v94, 1045249613
  %v351 = vmul.bf16 %v95, 1045249613
  %v352 = vmul.bf16 %v96, 1045249613
  %v353 = vmul.bf16 %v97, 1045249613
  %v354 = vmul.bf16 %v98, 1045249613
  %v355 = vmul.bf16 %v99, 1045249613
  %v356 = vmul.bf16 %v100, 1045249613
  %v357 = vmul.bf16 %v101, 1045249613
  %v358 = vmul.bf16 %v102, 1045249613
  %v359 = vmul.bf16 %v103, 1045249613
  %v360 = vmul.bf16 %v104, 1045249613
  %v361 = vmul.bf16 %v105, 1045249613
  %v362 = vmul.bf16 %v106, 1045249613
  %v363 = vmul.bf16 %v107, 1045249613
  %v364 = vmul.bf16 %v108, 1045249613
  %v365 = vmul.bf16 %v109, 1045249613
  %v366 = vmul.bf16 %v110, 1045249613
  %v367 = vmul.bf16 %v111, 1045249613
  %v368 = vmul.bf16 %v112, 1045249613
  %v369 = vmul.bf16 %v113, 1045249613
  %v370 = vmul.bf16 %v114, 1045249613
  %v371 = vmul.bf16 %v115, 1045249613
  %v372 = vmul.bf16 %v116, 1045249613
  %v373 = vmul.bf16 %v117, 1045249613
  %v374 = vmul.bf16 %v118, 1045249613
  %v375 = vmul.bf16 %v119, 1045249613
  %v376 = vmul.bf16 %v120, 1045249613
  %v377 = vmul.bf16 %v121, 1045249613
  %v378 = vmul.bf16 %v122, 1045249613
  %v379 = vmul.bf16 %v123, 1045249613
  %v380 = vmul.bf16 %v124, 1045249613
  %v381 = vmul.bf16 %v125, 1045249613
  %v382 = vmul.bf16 %v126, 1045249613
  %v383 = vmul.bf16 %v127, 1045249613
  %v384 = vmul.bf16 %v128, 1045249613
  %v385 = vmul.bf16 %v129, 1045249613
  %v386 = vmul.bf16 %v130, 1045249613
  %v387 = vmul.bf16 %v131, 1045249613
  %v388 = vmul.bf16 %v132, 1045249613
  %v389 = vmul.bf16 %v133, 1045249613
  %v390 = vmul.bf16 %v134, 1045249613
  %v391 = vmul.bf16 %v135, 1045249613
  %v392 = vmul.bf16 %v136, 1045249613
  %v393 = vmul.bf16 %v137, 1045249613
  %v394 = vmul.bf16 %v138, 1045249613
  %v395 = vmul.bf16 %v139, 1045249613
  %v396 = vmul.bf16 %v140, 1045249613
  %v397 = vmul.bf16 %v141, 1045249613
  %v398 = vmul.bf16 %v142, 1045249613
  %v399 = vsel %vm143, %v15, %v271
  %v400 = vsel %vm144, %v16, %v272
  %v401 = vsel %vm145, %v17, %v273
  %v402 = vsel %vm146, %v18, %v274
  %v403 = vsel %vm147, %v19, %v275
  %v404 = vsel %vm148, %v20, %v276
  %v405 = vsel %vm149, %v21, %v277
  %v406 = vsel %vm150, %v22, %v278
  %v407 = vsel %vm151, %v23, %v279
  %v408 = vsel %vm152, %v24, %v280
  %v409 = vsel %vm153, %v25, %v281
  %v410 = vsel %vm154, %v26, %v282
  %v411 = vsel %vm155, %v27, %v283
  %v412 = vsel %vm156, %v28, %v284
  %v413 = vsel %vm157, %v29, %v285
  %v414 = vsel %vm158, %v30, %v286
  %v415 = vsel %vm159, %v31, %v287
  %v416 = vsel %vm160, %v32, %v288
  %v417 = vsel %vm161, %v33, %v289
  %v418 = vsel %vm162, %v34, %v290
  %v419 = vsel %vm163, %v35, %v291
  %v420 = vsel %vm164, %v36, %v292
  %v421 = vsel %vm165, %v37, %v293
  %v422 = vsel %vm166, %v38, %v294
  %v423 = vsel %vm167, %v39, %v295
  %v424 = vsel %vm168, %v40, %v296
  %v425 = vsel %vm169, %v41, %v297
  %v426 = vsel %vm170, %v42, %v298
  %v427 = vsel %vm171, %v43, %v299
  %v428 = vsel %vm172, %v44, %v300
  %v429 = vsel %vm173, %v45, %v301
  %v430 = vsel %vm174, %v46, %v302
  %v431 = vsel %vm175, %v47, %v303
  %v432 = vsel %vm176, %v48, %v304
  %v433 = vsel %vm177, %v49, %v305
  %v434 = vsel %vm178, %v50, %v306
  %v435 = vsel %vm179, %v51, %v307
  %v436 = vsel %vm180, %v52, %v308
  %v437 = vsel %vm181, %v53, %v309
  %v438 = vsel %vm182, %v54, %v310
  %v439 = vsel %vm183, %v55, %v311
  %v440 = vsel %vm184, %v56, %v312
  %v441 = vsel %vm185, %v57, %v313
  %v442 = vsel %vm186, %v58, %v314
  %v443 = vsel %vm187, %v59, %v315
  %v444 = vsel %vm188, %v60, %v316
  %v445 = vsel %vm189, %v61, %v317
  %v446 = vsel %vm190, %v62, %v318
  %v447 = vsel %vm191, %v63, %v319
  %v448 = vsel %vm192, %v64, %v320
  %v449 = vsel %vm193, %v65, %v321
  %v450 = vsel %vm194, %v66, %v322
  %v451 = vsel %vm195, %v67, %v323
  %v452 = vsel %vm196, %v68, %v324
  %v453 = vsel %vm197, %v69, %v325
  %v454 = vsel %vm198, %v70, %v326
  %v455 = vsel %vm199, %v71, %v327
  %v456 = vsel %vm200, %v72, %v328
  %v457 = vsel %vm201, %v73, %v329
  %v458 = vsel %vm202, %v74, %v330
  %v459 = vsel %vm203, %v75, %v331
  %v460 = vsel %vm204, %v76, %v332
  %v461 = vsel %vm205, %v77, %v333
  %v462 = vsel %vm206, %v78, %v334
  %v463 = vsel %vm207, %v79, %v335
  %v464 = vsel %vm208, %v80, %v336
  %v465 = vsel %vm209, %v81, %v337
  %v466 = vsel %vm210, %v82, %v338
  %v467 = vsel %vm211, %v83, %v339
  %v468 = vsel %vm212, %v84, %v340
  %v469 = vsel %vm213, %v85, %v341
  %v470 = vsel %vm214, %v86, %v342
  %v471 = vsel %vm215, %v87, %v343
  %v472 = vsel %vm216, %v88, %v344
  %v473 = vsel %vm217, %v89, %v345
  %v474 = vsel %vm218, %v90, %v346
  %v475 = vsel %vm219, %v91, %v347
  %v476 = vsel %vm220, %v92, %v348
  %v477 = vsel %vm221, %v93, %v349
  %v478 = vsel %vm222, %v94, %v350
  %v479 = vsel %vm223, %v95, %v351
  %v480 = vsel %vm224, %v96, %v352
  %v481 = vsel %vm225, %v97, %v353
  %v482 = vsel %vm226, %v98, %v354
  %v483 = vsel %vm227, %v99, %v355
  %v484 = vsel %vm228, %v100, %v356
  %v485 = vsel %vm229, %v101, %v357
  %v486 = vsel %vm230, %v102, %v358
  %v487 = vsel %vm231, %v103, %v359
  %v488 = vsel %vm232, %v104, %v360
  %v489 = vsel %vm233, %v105, %v361
  %v490 = vsel %vm234, %v106, %v362
  %v491 = vsel %vm235, %v107, %v363
  %v492 = vsel %vm236, %v108, %v364
  %v493 = vsel %vm237, %v109, %v365
  %v494 = vsel %vm238, %v110, %v366
  %v495 = vsel %vm239, %v111, %v367
  %v496 = vsel %vm240, %v112, %v368
  %v497 = vsel %vm241, %v113, %v369
  %v498 = vsel %vm242, %v114, %v370
  %v499 = vsel %vm243, %v115, %v371
  %v500 = vsel %vm244, %v116, %v372
  %v501 = vsel %vm245, %v117, %v373
  %v502 = vsel %vm246, %v118, %v374
  %v503 = vsel %vm247, %v119, %v375
  %v504 = vsel %vm248, %v120, %v376
  %v505 = vsel %vm249, %v121, %v377
  %v506 = vsel %vm250, %v122, %v378
  %v507 = vsel %vm251, %v123, %v379
  %v508 = vsel %vm252, %v124, %v380
  %v509 = vsel %vm253, %v125, %v381
  %v510 = vsel %vm254, %v126, %v382
  %v511 = vsel %vm255, %v127, %v383
  %v512 = vsel %vm256, %v128, %v384
  %v513 = vsel %vm257, %v129, %v385
  %v514 = vsel %vm258, %v130, %v386
  %v515 = vsel %vm259, %v131, %v387
  %v516 = vsel %vm260, %v132, %v388
  %v517 = vsel %vm261, %v133, %v389
  %v518 = vsel %vm262, %v134, %v390
  %v519 = vsel %vm263, %v135, %v391
  %v520 = vsel %vm264, %v136, %v392
  %v521 = vsel %vm265, %v137, %v393
  %v522 = vsel %vm266, %v138, %v394
  %v523 = vsel %vm267, %v139, %v395
  %v524 = vsel %vm268, %v140, %v396
  %v525 = vsel %vm269, %v141, %v397
  %v526 = vsel %vm270, %v142, %v398
  %v527 = vld [vmem:[%s0] sm:$0xff]
  %v528 = vld [vmem:[%s0 + $0x8] sm:$0xff]
  %v529 = vld [vmem:[%s0 + $0x10] sm:$0xff]
  %v530 = vld [vmem:[%s0 + $0x18] sm:$0xff]
  %v531 = vld [vmem:[%s0 + $0x20] sm:$0xff]
  %v532 = vld [vmem:[%s0 + $0x28] sm:$0xff]
  %v533 = vld [vmem:[%s0 + $0x30] sm:$0xff]
  %v534 = vld [vmem:[%s0 + $0x38] sm:$0xff]
  %v535 = vld [vmem:[%s0 + $0x40] sm:$0xff]
  %v536 = vld [vmem:[%s0 + $0x48] sm:$0xff]
  %v537 = vld [vmem:[%s0 + $0x50] sm:$0xff]
  %v538 = vld [vmem:[%s0 + $0x58] sm:$0xff]
  %v539 = vld [vmem:[%s0 + $0x60] sm:$0xff]
  %v540 = vld [vmem:[%s0 + $0x68] sm:$0xff]
  %v541 = vld [vmem:[%s0 + $0x70] sm:$0xff]
  %v542 = vld [vmem:[%s0 + $0x78] sm:$0xff]
  %v543 = vld [vmem:[%s0 + $0x80] sm:$0xff]
  %v544 = vld [vmem:[%s0 + $0x88] sm:$0xff]
  %v545 = vld [vmem:[%s0 + $0x90] sm:$0xff]
  %v546 = vld [vmem:[%s0 + $0x98] sm:$0xff]
  %v547 = vld [vmem:[%s0 + $0xa0] sm:$0xff]
  %v548 = vld [vmem:[%s0 + $0xa8] sm:$0xff]
  %v549 = vld [vmem:[%s0 + $0xb0] sm:$0xff]
  %v550 = vld [vmem:[%s0 + $0xb8] sm:$0xff]
  %v551 = vld [vmem:[%s0 + $0xc0] sm:$0xff]
  %v552 = vld [vmem:[%s0 + $0xc8] sm:$0xff]
  %v553 = vld [vmem:[%s0 + $0xd0] sm:$0xff]
  %v554 = vld [vmem:[%s0 + $0xd8] sm:$0xff]
  %v555 = vld [vmem:[%s0 + $0xe0] sm:$0xff]
  %v556 = vld [vmem:[%s0 + $0xe8] sm:$0xff]
  %v557 = vld [vmem:[%s0 + $0xf0] sm:$0xff]
  %v558 = vld [vmem:[%s0 + $0xf8] sm:$0xff]
  %v559 = vld [vmem:[%s0 + $0x100] sm:$0xff]
  %v560 = vld [vmem:[%s0 + $0x108] sm:$0xff]
  %v561 = vld [vmem:[%s0 + $0x110] sm:$0xff]
  %v562 = vld [vmem:[%s0 + $0x118] sm:$0xff]
  %v563 = vld [vmem:[%s0 + $0x120] sm:$0xff]
  %v564 = vld [vmem:[%s0 + $0x128] sm:$0xff]
  %v565 = vld [vmem:[%s0 + $0x130] sm:$0xff]
  %v566 = vld [vmem:[%s0 + $0x138] sm:$0xff]
  %v567 = vld [vmem:[%s0 + $0x140] sm:$0xff]
  %v568 = vld [vmem:[%s0 + $0x148] sm:$0xff]
  %v569 = vld [vmem:[%s0 + $0x150] sm:$0xff]
  %v570 = vld [vmem:[%s0 + $0x158] sm:$0xff]
  %v571 = vld [vmem:[%s0 + $0x160] sm:$0xff]
  %v572 = vld [vmem:[%s0 + $0x168] sm:$0xff]
  %v573 = vld [vmem:[%s0 + $0x170] sm:$0xff]
  %v574 = vld [vmem:[%s0 + $0x178] sm:$0xff]
  %v575 = vld [vmem:[%s0 + $0x180] sm:$0xff]
  %v576 = vld [vmem:[%s0 + $0x188] sm:$0xff]
  %v577 = vld [vmem:[%s0 + $0x190] sm:$0xff]
  %v578 = vld [vmem:[%s0 + $0x198] sm:$0xff]
  %v579 = vld [vmem:[%s0 + $0x1a0] sm:$0xff]
  %v580 = vld [vmem:[%s0 + $0x1a8] sm:$0xff]
  %v581 = vld [vmem:[%s0 + $0x1b0] sm:$0xff]
  %v582 = vld [vmem:[%s0 + $0x1b8] sm:$0xff]
  %v583 = vld [vmem:[%s0 + $0x1c0] sm:$0xff]
  %v584 = vld [vmem:[%s0 + $0x1c8] sm:$0xff]
  %v585 = vld [vmem:[%s0 + $0x1d0] sm:$0xff]
  %v586 = vld [vmem:[%s0 + $0x1d8] sm:$0xff]
  %v587 = vld [vmem:[%s0 + $0x1e0] sm:$0xff]
  %v588 = vld [vmem:[%s0 + $0x1e8] sm:$0xff]
  %v589 = vld [vmem:[%s0 + $0x1f0] sm:$0xff]
  %v590 = vld [vmem:[%s0 + $0x1f8] sm:$0xff]
  %v655 = vunpack.c.l.b16 %v527
  %v656 = vunpack.c.h.b16 %v527
  %v657 = vunpack.c.l.b16 %v528
  %v658 = vunpack.c.h.b16 %v528
  %v659 = vunpack.c.l.b16 %v529
  %v660 = vunpack.c.h.b16 %v529
  %v661 = vunpack.c.l.b16 %v530
  %v662 = vunpack.c.h.b16 %v530
  %v663 = vunpack.c.l.b16 %v531
  %v664 = vunpack.c.h.b16 %v531
  %v665 = vunpack.c.l.b16 %v532
  %v666 = vunpack.c.h.b16 %v532
  %v667 = vunpack.c.l.b16 %v533
  %v668 = vunpack.c.h.b16 %v533
  %v669 = vunpack.c.l.b16 %v534
  %v670 = vunpack.c.h.b16 %v534
  %v671 = vunpack.c.l.b16 %v535
  %v672 = vunpack.c.h.b16 %v535
  %v673 = vunpack.c.l.b16 %v536
  %v674 = vunpack.c.h.b16 %v536
  %v675 = vunpack.c.l.b16 %v537
  %v676 = vunpack.c.h.b16 %v537
  %v677 = vunpack.c.l.b16 %v538
  %v678 = vunpack.c.h.b16 %v538
  %v679 = vunpack.c.l.b16 %v539
  %v680 = vunpack.c.h.b16 %v539
  %v681 = vunpack.c.l.b16 %v540
  %v682 = vunpack.c.h.b16 %v540
  %v683 = vunpack.c.l.b16 %v541
  %v684 = vunpack.c.h.b16 %v541
  %v685 = vunpack.c.l.b16 %v542
  %v686 = vunpack.c.h.b16 %v542
  %v687 = vunpack.c.l.b16 %v543
  %v688 = vunpack.c.h.b16 %v543
  %v689 = vunpack.c.l.b16 %v544
  %v690 = vunpack.c.h.b16 %v544
  %v691 = vunpack.c.l.b16 %v545
  %v692 = vunpack.c.h.b16 %v545
  %v693 = vunpack.c.l.b16 %v546
  %v694 = vunpack.c.h.b16 %v546
  %v695 = vunpack.c.l.b16 %v547
  %v696 = vunpack.c.h.b16 %v547
  %v697 = vunpack.c.l.b16 %v548
  %v698 = vunpack.c.h.b16 %v548
  %v699 = vunpack.c.l.b16 %v549
  %v700 = vunpack.c.h.b16 %v549
  %v701 = vunpack.c.l.b16 %v550
  %v702 = vunpack.c.h.b16 %v550
  %v703 = vunpack.c.l.b16 %v551
  %v704 = vunpack.c.h.b16 %v551
  %v705 = vunpack.c.l.b16 %v552
  %v706 = vunpack.c.h.b16 %v552
  %v707 = vunpack.c.l.b16 %v553
  %v708 = vunpack.c.h.b16 %v553
  %v709 = vunpack.c.l.b16 %v554
  %v710 = vunpack.c.h.b16 %v554
  %v711 = vunpack.c.l.b16 %v555
  %v712 = vunpack.c.h.b16 %v555
  %v713 = vunpack.c.l.b16 %v556
  %v714 = vunpack.c.h.b16 %v556
  %v715 = vunpack.c.l.b16 %v557
  %v716 = vunpack.c.h.b16 %v557
  %v717 = vunpack.c.l.b16 %v558
  %v718 = vunpack.c.h.b16 %v558
  %v719 = vunpack.c.l.b16 %v559
  %v720 = vunpack.c.h.b16 %v559
  %v721 = vunpack.c.l.b16 %v560
  %v722 = vunpack.c.h.b16 %v560
  %v723 = vunpack.c.l.b16 %v561
  %v724 = vunpack.c.h.b16 %v561
  %v725 = vunpack.c.l.b16 %v562
  %v726 = vunpack.c.h.b16 %v562
  %v727 = vunpack.c.l.b16 %v563
  %v728 = vunpack.c.h.b16 %v563
  %v729 = vunpack.c.l.b16 %v564
  %v730 = vunpack.c.h.b16 %v564
  %v731 = vunpack.c.l.b16 %v565
  %v732 = vunpack.c.h.b16 %v565
  %v733 = vunpack.c.l.b16 %v566
  %v734 = vunpack.c.h.b16 %v566
  %v735 = vunpack.c.l.b16 %v567
  %v736 = vunpack.c.h.b16 %v567
  %v737 = vunpack.c.l.b16 %v568
  %v738 = vunpack.c.h.b16 %v568
  %v739 = vunpack.c.l.b16 %v569
  %v740 = vunpack.c.h.b16 %v569
  %v741 = vunpack.c.l.b16 %v570
  %v742 = vunpack.c.h.b16 %v570
  %v743 = vunpack.c.l.b16 %v571
  %v744 = vunpack.c.h.b16 %v571
  %v745 = vunpack.c.l.b16 %v572
  %v746 = vunpack.c.h.b16 %v572
  %v747 = vunpack.c.l.b16 %v573
  %v748 = vunpack.c.h.b16 %v573
  %v749 = vunpack.c.l.b16 %v574
  %v750 = vunpack.c.h.b16 %v574
  %v751 = vunpack.c.l.b16 %v575
  %v752 = vunpack.c.h.b16 %v575
  %v753 = vunpack.c.l.b16 %v576
  %v754 = vunpack.c.h.b16 %v576
  %v755 = vunpack.c.l.b16 %v577
  %v756 = vunpack.c.h.b16 %v577
  %v757 = vunpack.c.l.b16 %v578
  %v758 = vunpack.c.h.b16 %v578
  %v759 = vunpack.c.l.b16 %v579
  %v760 = vunpack.c.h.b16 %v579
  %v761 = vunpack.c.l.b16 %v580
  %v762 = vunpack.c.h.b16 %v580
  %v763 = vunpack.c.l.b16 %v581
  %v764 = vunpack.c.h.b16 %v581
  %v765 = vunpack.c.l.b16 %v582
  %v766 = vunpack.c.h.b16 %v582
  %v767 = vunpack.c.l.b16 %v583
  %v768 = vunpack.c.h.b16 %v583
  %v769 = vunpack.c.l.b16 %v584
  %v770 = vunpack.c.h.b16 %v584
  %v771 = vunpack.c.l.b16 %v585
  %v772 = vunpack.c.h.b16 %v585
  %v773 = vunpack.c.l.b16 %v586
  %v774 = vunpack.c.h.b16 %v586
  %v775 = vunpack.c.l.b16 %v587
  %v776 = vunpack.c.h.b16 %v587
  %v777 = vunpack.c.l.b16 %v588
  %v778 = vunpack.c.h.b16 %v588
  %v779 = vunpack.c.l.b16 %v589
  %v780 = vunpack.c.h.b16 %v589
  %v781 = vunpack.c.l.b16 %v590
  %v782 = vunpack.c.h.b16 %v590
  %v783 = vpack.c.b16 %v663, %v655
  %v784 = vpack.c.b16 %v664, %v656
  %v785 = vpack.c.b16 %v665, %v657
  %v786 = vpack.c.b16 %v666, %v658
  %v787 = vpack.c.b16 %v667, %v659
  %v788 = vpack.c.b16 %v668, %v660
  %v789 = vpack.c.b16 %v669, %v661
  %v790 = vpack.c.b16 %v670, %v662
  %v791 = vpack.c.b16 %v679, %v671
  %v792 = vpack.c.b16 %v680, %v672
  %v793 = vpack.c.b16 %v681, %v673
  %v794 = vpack.c.b16 %v682, %v674
  %v795 = vpack.c.b16 %v683, %v675
  %v796 = vpack.c.b16 %v684, %v676
  %v797 = vpack.c.b16 %v685, %v677
  %v798 = vpack.c.b16 %v686, %v678
  %v799 = vpack.c.b16 %v695, %v687
  %v800 = vpack.c.b16 %v696, %v688
  %v801 = vpack.c.b16 %v697, %v689
  %v802 = vpack.c.b16 %v698, %v690
  %v803 = vpack.c.b16 %v699, %v691
  %v804 = vpack.c.b16 %v700, %v692
  %v805 = vpack.c.b16 %v701, %v693
  %v806 = vpack.c.b16 %v702, %v694
  %v807 = vpack.c.b16 %v711, %v703
  %v808 = vpack.c.b16 %v712, %v704
  %v809 = vpack.c.b16 %v713, %v705
  %v810 = vpack.c.b16 %v714, %v706
  %v811 = vpack.c.b16 %v715, %v707
  %v812 = vpack.c.b16 %v716, %v708
  %v813 = vpack.c.b16 %v717, %v709
  %v814 = vpack.c.b16 %v718, %v710
  %v815 = vpack.c.b16 %v727, %v719
  %v816 = vpack.c.b16 %v728, %v720
  %v817 = vpack.c.b16 %v729, %v721
  %v818 = vpack.c.b16 %v730, %v722
  %v819 = vpack.c.b16 %v731, %v723
  %v820 = vpack.c.b16 %v732, %v724
  %v821 = vpack.c.b16 %v733, %v725
  %v822 = vpack.c.b16 %v734, %v726
  %v823 = vpack.c.b16 %v743, %v735
  %v824 = vpack.c.b16 %v744, %v736
  %v825 = vpack.c.b16 %v745, %v737
  %v826 = vpack.c.b16 %v746, %v738
  %v827 = vpack.c.b16 %v747, %v739
  %v828 = vpack.c.b16 %v748, %v740
  %v829 = vpack.c.b16 %v749, %v741
  %v830 = vpack.c.b16 %v750, %v742
  %v831 = vpack.c.b16 %v759, %v751
  %v832 = vpack.c.b16 %v760, %v752
  %v833 = vpack.c.b16 %v761, %v753
  %v834 = vpack.c.b16 %v762, %v754
  %v835 = vpack.c.b16 %v763, %v755
  %v836 = vpack.c.b16 %v764, %v756
  %v837 = vpack.c.b16 %v765, %v757
  %v838 = vpack.c.b16 %v766, %v758
  %v839 = vpack.c.b16 %v775, %v767
  %v840 = vpack.c.b16 %v776, %v768
  %v841 = vpack.c.b16 %v777, %v769
  %v842 = vpack.c.b16 %v778, %v770
  %v843 = vpack.c.b16 %v779, %v771
  %v844 = vpack.c.b16 %v780, %v772
  %v845 = vpack.c.b16 %v781, %v773
  %v846 = vpack.c.b16 %v782, %v774
  %v1039 = vunpack.c.l.b16 %v399
  %v1040 = vunpack.c.l.b16 %v400
  %v1041 = vunpack.c.l.b16 %v401
  %v1042 = vunpack.c.l.b16 %v402
  %v1043 = vunpack.c.l.b16 %v403
  %v1044 = vunpack.c.l.b16 %v404
  %v1045 = vunpack.c.l.b16 %v405
  %v1046 = vunpack.c.l.b16 %v406
  %v1047 = vunpack.c.l.b16 %v407
  %v1048 = vunpack.c.l.b16 %v408
  %v1049 = vunpack.c.l.b16 %v409
  %v1050 = vunpack.c.l.b16 %v410
  %v1051 = vunpack.c.l.b16 %v411
  %v1052 = vunpack.c.l.b16 %v412
  %v1053 = vunpack.c.l.b16 %v413
  %v1054 = vunpack.c.l.b16 %v414
  %v1055 = vunpack.c.l.b16 %v415
  %v1056 = vunpack.c.l.b16 %v416
  %v1057 = vunpack.c.l.b16 %v417
  %v1058 = vunpack.c.l.b16 %v418
  %v1059 = vunpack.c.l.b16 %v419
  %v1060 = vunpack.c.l.b16 %v420
  %v1061 = vunpack.c.l.b16 %v421
  %v1062 = vunpack.c.l.b16 %v422
  %v1063 = vunpack.c.l.b16 %v423
  %v1064 = vunpack.c.l.b16 %v424
  %v1065 = vunpack.c.l.b16 %v425
  %v1066 = vunpack.c.l.b16 %v426
  %v1067 = vunpack.c.l.b16 %v427
  %v1068 = vunpack.c.l.b16 %v428
  %v1069 = vunpack.c.l.b16 %v429
  %v1070 = vunpack.c.l.b16 %v430
  %v1071 = vunpack.c.l.b16 %v431
  %v1072 = vunpack.c.l.b16 %v432
  %v1073 = vunpack.c.l.b16 %v433
  %v1074 = vunpack.c.l.b16 %v434
  %v1075 = vunpack.c.l.b16 %v435
  %v1076 = vunpack.c.l.b16 %v436
  %v1077 = vunpack.c.l.b16 %v437
  %v1078 = vunpack.c.l.b16 %v438
  %v1079 = vunpack.c.l.b16 %v439
  %v1080 = vunpack.c.l.b16 %v440
  %v1081 = vunpack.c.l.b16 %v441
  %v1082 = vunpack.c.l.b16 %v442
  %v1083 = vunpack.c.l.b16 %v443
  %v1084 = vunpack.c.l.b16 %v444
  %v1085 = vunpack.c.l.b16 %v445
  %v1086 = vunpack.c.l.b16 %v446
  %v1087 = vunpack.c.l.b16 %v447
  %v1088 = vunpack.c.l.b16 %v448
  %v1089 = vunpack.c.l.b16 %v449
  %v1090 = vunpack.c.l.b16 %v450
  %v1091 = vunpack.c.l.b16 %v451
  %v1092 = vunpack.c.l.b16 %v452
  %v1093 = vunpack.c.l.b16 %v453
  %v1094 = vunpack.c.l.b16 %v454
  %v1095 = vunpack.c.l.b16 %v455
  %v1096 = vunpack.c.l.b16 %v456
  %v1097 = vunpack.c.l.b16 %v457
  %v1098 = vunpack.c.l.b16 %v458
  %v1099 = vunpack.c.l.b16 %v459
  %v1100 = vunpack.c.l.b16 %v460
  %v1101 = vunpack.c.l.b16 %v461
  %v1102 = vunpack.c.l.b16 %v462
  %v1103 = vunpack.c.l.b16 %v463
  %v1104 = vunpack.c.l.b16 %v464
  %v1105 = vunpack.c.l.b16 %v465
  %v1106 = vunpack.c.l.b16 %v466
  %v1107 = vunpack.c.l.b16 %v467
  %v1108 = vunpack.c.l.b16 %v468
  %v1109 = vunpack.c.l.b16 %v469
  %v1110 = vunpack.c.l.b16 %v470
  %v1111 = vunpack.c.l.b16 %v471
  %v1112 = vunpack.c.l.b16 %v472
  %v1113 = vunpack.c.l.b16 %v473
  %v1114 = vunpack.c.l.b16 %v474
  %v1115 = vunpack.c.l.b16 %v475
  %v1116 = vunpack.c.l.b16 %v476
  %v1117 = vunpack.c.l.b16 %v477
  %v1118 = vunpack.c.l.b16 %v478
  %v1119 = vunpack.c.l.b16 %v479
  %v1120 = vunpack.c.l.b16 %v480
  %v1121 = vunpack.c.l.b16 %v481
  %v1122 = vunpack.c.l.b16 %v482
  %v1123 = vunpack.c.l.b16 %v483
  %v1124 = vunpack.c.l.b16 %v484
  %v1125 = vunpack.c.l.b16 %v485
  %v1126 = vunpack.c.l.b16 %v486
  %v1127 = vunpack.c.l.b16 %v487
  %v1128 = vunpack.c.l.b16 %v488
  %v1129 = vunpack.c.l.b16 %v489
  %v1130 = vunpack.c.l.b16 %v490
  %v1131 = vunpack.c.l.b16 %v491
  %v1132 = vunpack.c.l.b16 %v492
  %v1133 = vunpack.c.l.b16 %v493
  %v1134 = vunpack.c.l.b16 %v494
  %v1135 = vunpack.c.l.b16 %v495
  %v1136 = vunpack.c.l.b16 %v496
  %v1137 = vunpack.c.l.b16 %v497
  %v1138 = vunpack.c.l.b16 %v498
  %v1139 = vunpack.c.l.b16 %v499
  %v1140 = vunpack.c.l.b16 %v500
  %v1141 = vunpack.c.l.b16 %v501
  %v1142 = vunpack.c.l.b16 %v502
  %v1143 = vunpack.c.l.b16 %v503
  %v1144 = vunpack.c.l.b16 %v504
  %v1145 = vunpack.c.l.b16 %v505
  %v1146 = vunpack.c.l.b16 %v506
  %v1147 = vunpack.c.l.b16 %v507
  %v1148 = vunpack.c.l.b16 %v508
  %v1149 = vunpack.c.l.b16 %v509
  %v1150 = vunpack.c.l.b16 %v510
  %v1151 = vunpack.c.l.b16 %v511
  %v1152 = vunpack.c.l.b16 %v512
  %v1153 = vunpack.c.l.b16 %v513
  %v1154 = vunpack.c.l.b16 %v514
  %v1155 = vunpack.c.l.b16 %v515
  %v1156 = vunpack.c.l.b16 %v516
  %v1157 = vunpack.c.l.b16 %v517
  %v1158 = vunpack.c.l.b16 %v518
  %v1159 = vunpack.c.l.b16 %v519
  %v1160 = vunpack.c.l.b16 %v520
  %v1161 = vunpack.c.l.b16 %v521
  %v1162 = vunpack.c.l.b16 %v522
  %v1163 = vunpack.c.l.b16 %v523
  %v1164 = vunpack.c.l.b16 %v524
  %v1165 = vunpack.c.l.b16 %v525
  %v1166 = vunpack.c.l.b16 %v526
  %v1167 = vpack.c.b16 %v1040, %v1039
  %v1168 = vpack.c.b16 %v1042, %v1041
  %v1169 = vpack.c.b16 %v1044, %v1043
  %v1170 = vpack.c.b16 %v1046, %v1045
  %v1171 = vpack.c.b16 %v1048, %v1047
  %v1172 = vpack.c.b16 %v1050, %v1049
  %v1173 = vpack.c.b16 %v1052, %v1051
  %v1174 = vpack.c.b16 %v1054, %v1053
  %v1175 = vpack.c.b16 %v1056, %v1055
  %v1176 = vpack.c.b16 %v1058, %v1057
  %v1177 = vpack.c.b16 %v1060, %v1059
  %v1178 = vpack.c.b16 %v1062, %v1061
  %v1179 = vpack.c.b16 %v1064, %v1063
  %v1180 = vpack.c.b16 %v1066, %v1065
  %v1181 = vpack.c.b16 %v1068, %v1067
  %v1182 = vpack.c.b16 %v1070, %v1069
  %v1183 = vpack.c.b16 %v1072, %v1071
  %v1184 = vpack.c.b16 %v1074, %v1073
  %v1185 = vpack.c.b16 %v1076, %v1075
  %v1186 = vpack.c.b16 %v1078, %v1077
  %v1187 = vpack.c.b16 %v1080, %v1079
  %v1188 = vpack.c.b16 %v1082, %v1081
  %v1189 = vpack.c.b16 %v1084, %v1083
  %v1190 = vpack.c.b16 %v1086, %v1085
  %v1191 = vpack.c.b16 %v1088, %v1087
  %v1192 = vpack.c.b16 %v1090, %v1089
  %v1193 = vpack.c.b16 %v1092, %v1091
  %v1194 = vpack.c.b16 %v1094, %v1093
  %v1195 = vpack.c.b16 %v1096, %v1095
  %v1196 = vpack.c.b16 %v1098, %v1097
  %v1197 = vpack.c.b16 %v1100, %v1099
  %v1198 = vpack.c.b16 %v1102, %v1101
  %v1199 = vpack.c.b16 %v1104, %v1103
  %v1200 = vpack.c.b16 %v1106, %v1105
  %v1201 = vpack.c.b16 %v1108, %v1107
  %v1202 = vpack.c.b16 %v1110, %v1109
  %v1203 = vpack.c.b16 %v1112, %v1111
  %v1204 = vpack.c.b16 %v1114, %v1113
  %v1205 = vpack.c.b16 %v1116, %v1115
  %v1206 = vpack.c.b16 %v1118, %v1117
  %v1207 = vpack.c.b16 %v1120, %v1119
  %v1208 = vpack.c.b16 %v1122, %v1121
  %v1209 = vpack.c.b16 %v1124, %v1123
  %v1210 = vpack.c.b16 %v1126, %v1125
  %v1211 = vpack.c.b16 %v1128, %v1127
  %v1212 = vpack.c.b16 %v1130, %v1129
  %v1213 = vpack.c.b16 %v1132, %v1131
  %v1214 = vpack.c.b16 %v1134, %v1133
  %v1215 = vpack.c.b16 %v1136, %v1135
  %v1216 = vpack.c.b16 %v1138, %v1137
  %v1217 = vpack.c.b16 %v1140, %v1139
  %v1218 = vpack.c.b16 %v1142, %v1141
  %v1219 = vpack.c.b16 %v1144, %v1143
  %v1220 = vpack.c.b16 %v1146, %v1145
  %v1221 = vpack.c.b16 %v1148, %v1147
  %v1222 = vpack.c.b16 %v1150, %v1149
  %v1223 = vpack.c.b16 %v1152, %v1151
  %v1224 = vpack.c.b16 %v1154, %v1153
  %v1225 = vpack.c.b16 %v1156, %v1155
  %v1226 = vpack.c.b16 %v1158, %v1157
  %v1227 = vpack.c.b16 %v1160, %v1159
  %v1228 = vpack.c.b16 %v1162, %v1161
  %v1229 = vpack.c.b16 %v1164, %v1163
  %v1230 = vpack.c.b16 %v1166, %v1165
  %1295 = vmatprep.subr.bf16.mxu0 0
  %1296 = vmatpush1.bf16.msra.mxu0 %v1174
  %1297 = vmatprep.subr.bf16.mxu0 0
  %1298 = vmatpush1.bf16.msra.mxu0 %v1173
  %1299 = vmatprep.subr.bf16.mxu0 0
  %1300 = vmatpush1.bf16.msra.mxu0 %v1172
  %1301 = vmatprep.subr.bf16.mxu0 0
  %1302 = vmatpush1.bf16.msra.mxu0 %v1171
  %1303 = vmatprep.subr.bf16.mxu0 0
  %1304 = vmatpush1.bf16.msra.mxu0 %v1170
  %1305 = vmatprep.subr.bf16.mxu0 0
  %1306 = vmatpush1.bf16.msra.mxu0 %v1169
  %1307 = vmatprep.subr.bf16.mxu0 0
  %1308 = vmatpush1.bf16.msra.mxu0 %v1168
  %1309 = vmatprep.subr.bf16.mxu0 0
  %1310 = vmatpush1.bf16.msra.mxu0 %v1167
  %1311 = vmatprep.subr.bf16.mxu0 0
  %1312 = vmatpush2.bf16.msra.mxu0 %v1182
  %1313 = vmatprep.subr.bf16.mxu0 0
  %1314 = vmatpush2.bf16.msra.mxu0 %v1181
  %1315 = vmatprep.subr.bf16.mxu0 0
  %1316 = vmatpush2.bf16.msra.mxu0 %v1180
  %1317 = vmatprep.subr.bf16.mxu0 0
  %1318 = vmatpush2.bf16.msra.mxu0 %v1179
  %1319 = vmatprep.subr.bf16.mxu0 0
  %1320 = vmatpush2.bf16.msra.mxu0 %v1178
  %1321 = vmatprep.subr.bf16.mxu0 0
  %1322 = vmatpush2.bf16.msra.mxu0 %v1177
  %1323 = vmatprep.subr.bf16.mxu0 0
  %1324 = vmatpush2.bf16.msra.mxu0 %v1176
  %1325 = vmatprep.subr.bf16.mxu0 0
  %1326 = vmatpush2.bf16.msra.mxu0 %v1175
  %1327 = vmatprep.mubr.bf16.mxu0 %v784
  %1328 = vmatmul.mubr.bf16.gmra.mxu0 %v783
  %v1329 = vpop.f32.mrf.mxu0
  %v1330 = vadd.f32 0.0, %v1329
  %v1331 = vpop.f32.mrf.mxu0
  %v1332 = vpop.f32.mrf.mxu0
  %v1333 = vadd.f32 0.0, %v1332
  %v1334 = vpop.f32.mrf.mxu0
  %1335 = vmatprep.mubr.bf16.mxu0 %v792
  %1336 = vmatmul.mubr.bf16.gmra.mxu0 %v791
  %v1337 = vpop.f32.mrf.mxu0
  %v1338 = vadd.f32 0.0, %v1337
  %v1339 = vpop.f32.mrf.mxu0
  %v1340 = vpop.f32.mrf.mxu0
  %v1341 = vadd.f32 0.0, %v1340
  %v1342 = vpop.f32.mrf.mxu0
  %1343 = vmatprep.mubr.bf16.mxu0 %v800
  %1344 = vmatmul.mubr.bf16.gmra.mxu0 %v799
  %v1345 = vpop.f32.mrf.mxu0
  %v1346 = vadd.f32 0.0, %v1345
  %v1347 = vpop.f32.mrf.mxu0
  %v1348 = vpop.f32.mrf.mxu0
  %v1349 = vadd.f32 0.0, %v1348
  %v1350 = vpop.f32.mrf.mxu0
  %1351 = vmatprep.mubr.bf16.mxu0 %v808
  %1352 = vmatmul.mubr.bf16.gmra.mxu0 %v807
  %v1353 = vpop.f32.mrf.mxu0
  %v1354 = vadd.f32 0.0, %v1353
  %v1355 = vpop.f32.mrf.mxu0
  %v1356 = vpop.f32.mrf.mxu0
  %v1357 = vadd.f32 0.0, %v1356
  %v1358 = vpop.f32.mrf.mxu0
  %1359 = vmatprep.mubr.bf16.mxu0 %v816
  %1360 = vmatmul.mubr.bf16.gmra.mxu0 %v815
  %v1361 = vpop.f32.mrf.mxu0
  %v1362 = vadd.f32 0.0, %v1361
  %v1363 = vpop.f32.mrf.mxu0
  %v1364 = vpop.f32.mrf.mxu0
  %v1365 = vadd.f32 0.0, %v1364
  %v1366 = vpop.f32.mrf.mxu0
  %1367 = vmatprep.mubr.bf16.mxu0 %v824
  %1368 = vmatmul.mubr.bf16.gmra.mxu0 %v823
  %v1369 = vpop.f32.mrf.mxu0
  %v1370 = vadd.f32 0.0, %v1369
  %v1371 = vpop.f32.mrf.mxu0
  %v1372 = vpop.f32.mrf.mxu0
  %v1373 = vadd.f32 0.0, %v1372
  %v1374 = vpop.f32.mrf.mxu0
  %1375 = vmatprep.mubr.bf16.mxu0 %v832
  %1376 = vmatmul.mubr.bf16.gmra.mxu0 %v831
  %v1377 = vpop.f32.mrf.mxu0
  %v1378 = vadd.f32 0.0, %v1377
  %v1379 = vpop.f32.mrf.mxu0
  %v1380 = vpop.f32.mrf.mxu0
  %v1381 = vadd.f32 0.0, %v1380
  %v1382 = vpop.f32.mrf.mxu0
  %1383 = vmatprep.mubr.bf16.mxu0 %v840
  %1384 = vmatmul.mubr.bf16.gmra.mxu0 %v839
  %v1385 = vpop.f32.mrf.mxu0
  %v1386 = vadd.f32 0.0, %v1385
  %v1387 = vpop.f32.mrf.mxu0
  %v1388 = vpop.f32.mrf.mxu0
  %v1389 = vadd.f32 0.0, %v1388
  %v1390 = vpop.f32.mrf.mxu0
  %1391 = vdwg.mxu0
  %1392 = vmatprep.subr.bf16.mxu0 0
  %1393 = vmatpush1.bf16.msra.mxu0 %v1190
  %1394 = vmatprep.subr.bf16.mxu0 0
  %1395 = vmatpush1.bf16.msra.mxu0 %v1189
  %1396 = vmatprep.subr.bf16.mxu0 0
  %1397 = vmatpush1.bf16.msra.mxu0 %v1188
  %1398 = vmatprep.subr.bf16.mxu0 0
  %1399 = vmatpush1.bf16.msra.mxu0 %v1187
  %1400 = vmatprep.subr.bf16.mxu0 0
  %1401 = vmatpush1.bf16.msra.mxu0 %v1186
  %1402 = vmatprep.subr.bf16.mxu0 0
  %1403 = vmatpush1.bf16.msra.mxu0 %v1185
  %1404 = vmatprep.subr.bf16.mxu0 0
  %1405 = vmatpush1.bf16.msra.mxu0 %v1184
  %1406 = vmatprep.subr.bf16.mxu0 0
  %1407 = vmatpush1.bf16.msra.mxu0 %v1183
  %1408 = vmatprep.subr.bf16.mxu0 0
  %1409 = vmatpush2.bf16.msra.mxu0 %v1198
  %1410 = vmatprep.subr.bf16.mxu0 0
  %1411 = vmatpush2.bf16.msra.mxu0 %v1197
  %1412 = vmatprep.subr.bf16.mxu0 0
  %1413 = vmatpush2.bf16.msra.mxu0 %v1196
  %1414 = vmatprep.subr.bf16.mxu0 0
  %1415 = vmatpush2.bf16.msra.mxu0 %v1195
  %1416 = vmatprep.subr.bf16.mxu0 0
  %1417 = vmatpush2.bf16.msra.mxu0 %v1194
  %1418 = vmatprep.subr.bf16.mxu0 0
  %1419 = vmatpush2.bf16.msra.mxu0 %v1193
  %1420 = vmatprep.subr.bf16.mxu0 0
  %1421 = vmatpush2.bf16.msra.mxu0 %v1192
  %1422 = vmatprep.subr.bf16.mxu0 0
  %1423 = vmatpush2.bf16.msra.mxu0 %v1191
  %1424 = vmatprep.mubr.bf16.mxu0 %v786
  %1425 = vmatmul.mubr.bf16.gmra.mxu0 %v785
  %v1426 = vpop.f32.mrf.mxu0
  %v1427 = vadd.f32 %v1330, %v1426
  %v1428 = vpop.f32.mrf.mxu0
  %v1429 = vpop.f32.mrf.mxu0
  %v1430 = vadd.f32 %v1333, %v1429
  %v1431 = vpop.f32.mrf.mxu0
  %1432 = vmatprep.mubr.bf16.mxu0 %v794
  %1433 = vmatmul.mubr.bf16.gmra.mxu0 %v793
  %v1434 = vpop.f32.mrf.mxu0
  %v1435 = vadd.f32 %v1338, %v1434
  %v1436 = vpop.f32.mrf.mxu0
  %v1437 = vpop.f32.mrf.mxu0
  %v1438 = vadd.f32 %v1341, %v1437
  %v1439 = vpop.f32.mrf.mxu0
  %1440 = vmatprep.mubr.bf16.mxu0 %v802
  %1441 = vmatmul.mubr.bf16.gmra.mxu0 %v801
  %v1442 = vpop.f32.mrf.mxu0
  %v1443 = vadd.f32 %v1346, %v1442
  %v1444 = vpop.f32.mrf.mxu0
  %v1445 = vpop.f32.mrf.mxu0
  %v1446 = vadd.f32 %v1349, %v1445
  %v1447 = vpop.f32.mrf.mxu0
  %1448 = vmatprep.mubr.bf16.mxu0 %v810
  %1449 = vmatmul.mubr.bf16.gmra.mxu0 %v809
  %v1450 = vpop.f32.mrf.mxu0
  %v1451 = vadd.f32 %v1354, %v1450
  %v1452 = vpop.f32.mrf.mxu0
  %v1453 = vpop.f32.mrf.mxu0
  %v1454 = vadd.f32 %v1357, %v1453
  %v1455 = vpop.f32.mrf.mxu0
  %1456 = vmatprep.mubr.bf16.mxu0 %v818
  %1457 = vmatmul.mubr.bf16.gmra.mxu0 %v817
  %v1458 = vpop.f32.mrf.mxu0
  %v1459 = vadd.f32 %v1362, %v1458
  %v1460 = vpop.f32.mrf.mxu0
  %v1461 = vpop.f32.mrf.mxu0
  %v1462 = vadd.f32 %v1365, %v1461
  %v1463 = vpop.f32.mrf.mxu0
  %1464 = vmatprep.mubr.bf16.mxu0 %v826
  %1465 = vmatmul.mubr.bf16.gmra.mxu0 %v825
  %v1466 = vpop.f32.mrf.mxu0
  %v1467 = vadd.f32 %v1370, %v1466
  %v1468 = vpop.f32.mrf.mxu0
  %v1469 = vpop.f32.mrf.mxu0
  %v1470 = vadd.f32 %v1373, %v1469
  %v1471 = vpop.f32.mrf.mxu0
  %1472 = vmatprep.mubr.bf16.mxu0 %v834
  %1473 = vmatmul.mubr.bf16.gmra.mxu0 %v833
  %v1474 = vpop.f32.mrf.mxu0
  %v1475 = vadd.f32 %v1378, %v1474
  %v1476 = vpop.f32.mrf.mxu0
  %v1477 = vpop.f32.mrf.mxu0
  %v1478 = vadd.f32 %v1381, %v1477
  %v1479 = vpop.f32.mrf.mxu0
  %1480 = vmatprep.mubr.bf16.mxu0 %v842
  %1481 = vmatmul.mubr.bf16.gmra.mxu0 %v841
  %v1482 = vpop.f32.mrf.mxu0
  %v1483 = vadd.f32 %v1386, %v1482
  %v1484 = vpop.f32.mrf.mxu0
  %v1485 = vpop.f32.mrf.mxu0
  %v1486 = vadd.f32 %v1389, %v1485
  %v1487 = vpop.f32.mrf.mxu0
  %1488 = vdwg.mxu0
  %1489 = vmatprep.subr.bf16.mxu0 0
  %1490 = vmatpush1.bf16.msra.mxu0 %v1206
  %1491 = vmatprep.subr.bf16.mxu0 0
  %1492 = vmatpush1.bf16.msra.mxu0 %v1205
  %1493 = vmatprep.subr.bf16.mxu0 0
  %1494 = vmatpush1.bf16.msra.mxu0 %v1204
  %1495 = vmatprep.subr.bf16.mxu0 0
  %1496 = vmatpush1.bf16.msra.mxu0 %v1203
  %1497 = vmatprep.subr.bf16.mxu0 0
  %1498 = vmatpush1.bf16.msra.mxu0 %v1202
  %1499 = vmatprep.subr.bf16.mxu0 0
  %1500 = vmatpush1.bf16.msra.mxu0 %v1201
  %1501 = vmatprep.subr.bf16.mxu0 0
  %1502 = vmatpush1.bf16.msra.mxu0 %v1200
  %1503 = vmatprep.subr.bf16.mxu0 0
  %1504 = vmatpush1.bf16.msra.mxu0 %v1199
  %1505 = vmatprep.subr.bf16.mxu0 0
  %1506 = vmatpush2.bf16.msra.mxu0 %v1214
  %1507 = vmatprep.subr.bf16.mxu0 0
  %1508 = vmatpush2.bf16.msra.mxu0 %v1213
  %1509 = vmatprep.subr.bf16.mxu0 0
  %1510 = vmatpush2.bf16.msra.mxu0 %v1212
  %1511 = vmatprep.subr.bf16.mxu0 0
  %1512 = vmatpush2.bf16.msra.mxu0 %v1211
  %1513 = vmatprep.subr.bf16.mxu0 0
  %1514 = vmatpush2.bf16.msra.mxu0 %v1210
  %1515 = vmatprep.subr.bf16.mxu0 0
  %1516 = vmatpush2.bf16.msra.mxu0 %v1209
  %1517 = vmatprep.subr.bf16.mxu0 0
  %1518 = vmatpush2.bf16.msra.mxu0 %v1208
  %1519 = vmatprep.subr.bf16.mxu0 0
  %1520 = vmatpush2.bf16.msra.mxu0 %v1207
  %1521 = vmatprep.mubr.bf16.mxu0 %v788
  %1522 = vmatmul.mubr.bf16.gmra.mxu0 %v787
  %v1523 = vpop.f32.mrf.mxu0
  %v1524 = vadd.f32 %v1427, %v1523
  %v1525 = vpop.f32.mrf.mxu0
  %v1526 = vpop.f32.mrf.mxu0
  %v1527 = vadd.f32 %v1430, %v1526
  %v1528 = vpop.f32.mrf.mxu0
  %1529 = vmatprep.mubr.bf16.mxu0 %v796
  %1530 = vmatmul.mubr.bf16.gmra.mxu0 %v795
  %v1531 = vpop.f32.mrf.mxu0
  %v1532 = vadd.f32 %v1435, %v1531
  %v1533 = vpop.f32.mrf.mxu0
  %v1534 = vpop.f32.mrf.mxu0
  %v1535 = vadd.f32 %v1438, %v1534
  %v1536 = vpop.f32.mrf.mxu0
  %1537 = vmatprep.mubr.bf16.mxu0 %v804
  %1538 = vmatmul.mubr.bf16.gmra.mxu0 %v803
  %v1539 = vpop.f32.mrf.mxu0
  %v1540 = vadd.f32 %v1443, %v1539
  %v1541 = vpop.f32.mrf.mxu0
  %v1542 = vpop.f32.mrf.mxu0
  %v1543 = vadd.f32 %v1446, %v1542
  %v1544 = vpop.f32.mrf.mxu0
  %1545 = vmatprep.mubr.bf16.mxu0 %v812
  %1546 = vmatmul.mubr.bf16.gmra.mxu0 %v811
  %v1547 = vpop.f32.mrf.mxu0
  %v1548 = vadd.f32 %v1451, %v1547
  %v1549 = vpop.f32.mrf.mxu0
  %v1550 = vpop.f32.mrf.mxu0
  %v1551 = vadd.f32 %v1454, %v1550
  %v1552 = vpop.f32.mrf.mxu0
  %1553 = vmatprep.mubr.bf16.mxu0 %v820
  %1554 = vmatmul.mubr.bf16.gmra.mxu0 %v819
  %v1555 = vpop.f32.mrf.mxu0
  %v1556 = vadd.f32 %v1459, %v1555
  %v1557 = vpop.f32.mrf.mxu0
  %v1558 = vpop.f32.mrf.mxu0
  %v1559 = vadd.f32 %v1462, %v1558
  %v1560 = vpop.f32.mrf.mxu0
  %1561 = vmatprep.mubr.bf16.mxu0 %v828
  %1562 = vmatmul.mubr.bf16.gmra.mxu0 %v827
  %v1563 = vpop.f32.mrf.mxu0
  %v1564 = vadd.f32 %v1467, %v1563
  %v1565 = vpop.f32.mrf.mxu0
  %v1566 = vpop.f32.mrf.mxu0
  %v1567 = vadd.f32 %v1470, %v1566
  %v1568 = vpop.f32.mrf.mxu0
  %1569 = vmatprep.mubr.bf16.mxu0 %v836
  %1570 = vmatmul.mubr.bf16.gmra.mxu0 %v835
  %v1571 = vpop.f32.mrf.mxu0
  %v1572 = vadd.f32 %v1475, %v1571
  %v1573 = vpop.f32.mrf.mxu0
  %v1574 = vpop.f32.mrf.mxu0
  %v1575 = vadd.f32 %v1478, %v1574
  %v1576 = vpop.f32.mrf.mxu0
  %1577 = vmatprep.mubr.bf16.mxu0 %v844
  %1578 = vmatmul.mubr.bf16.gmra.mxu0 %v843
  %v1579 = vpop.f32.mrf.mxu0
  %v1580 = vadd.f32 %v1483, %v1579
  %v1581 = vpop.f32.mrf.mxu0
  %v1582 = vpop.f32.mrf.mxu0
  %v1583 = vadd.f32 %v1486, %v1582
  %v1584 = vpop.f32.mrf.mxu0
  %1585 = vdwg.mxu0
  %1586 = vmatprep.subr.bf16.mxu0 0
  %1587 = vmatpush1.bf16.msra.mxu0 %v1222
  %1588 = vmatprep.subr.bf16.mxu0 0
  %1589 = vmatpush1.bf16.msra.mxu0 %v1221
  %1590 = vmatprep.subr.bf16.mxu0 0
  %1591 = vmatpush1.bf16.msra.mxu0 %v1220
  %1592 = vmatprep.subr.bf16.mxu0 0
  %1593 = vmatpush1.bf16.msra.mxu0 %v1219
  %1594 = vmatprep.subr.bf16.mxu0 0
  %1595 = vmatpush1.bf16.msra.mxu0 %v1218
  %1596 = vmatprep.subr.bf16.mxu0 0
  %1597 = vmatpush1.bf16.msra.mxu0 %v1217
  %1598 = vmatprep.subr.bf16.mxu0 0
  %1599 = vmatpush1.bf16.msra.mxu0 %v1216
  %1600 = vmatprep.subr.bf16.mxu0 0
  %1601 = vmatpush1.bf16.msra.mxu0 %v1215
  %1602 = vmatprep.subr.bf16.mxu0 0
  %1603 = vmatpush2.bf16.msra.mxu0 %v1230
  %1604 = vmatprep.subr.bf16.mxu0 0
  %1605 = vmatpush2.bf16.msra.mxu0 %v1229
  %1606 = vmatprep.subr.bf16.mxu0 0
  %1607 = vmatpush2.bf16.msra.mxu0 %v1228
  %1608 = vmatprep.subr.bf16.mxu0 0
  %1609 = vmatpush2.bf16.msra.mxu0 %v1227
  %1610 = vmatprep.subr.bf16.mxu0 0
  %1611 = vmatpush2.bf16.msra.mxu0 %v1226
  %1612 = vmatprep.subr.bf16.mxu0 0
  %1613 = vmatpush2.bf16.msra.mxu0 %v1225
  %1614 = vmatprep.subr.bf16.mxu0 0
  %1615 = vmatpush2.bf16.msra.mxu0 %v1224
  %1616 = vmatprep.subr.bf16.mxu0 0
  %1617 = vmatpush2.bf16.msra.mxu0 %v1223
  %1618 = vmatprep.mubr.bf16.mxu0 %v790
  %1619 = vmatmul.mubr.bf16.gmra.mxu0 %v789
  %v1620 = vpop.f32.mrf.mxu0
  %v1621 = vadd.f32 %v1524, %v1620
  %v1622 = vpop.f32.mrf.mxu0
  %v1623 = vpop.f32.mrf.mxu0
  %v1624 = vadd.f32 %v1527, %v1623
  %v1625 = vpop.f32.mrf.mxu0
  %1626 = vmatprep.mubr.bf16.mxu0 %v798
  %1627 = vmatmul.mubr.bf16.gmra.mxu0 %v797
  %v1628 = vpop.f32.mrf.mxu0
  %v1629 = vadd.f32 %v1532, %v1628
  %v1630 = vpop.f32.mrf.mxu0
  %v1631 = vpop.f32.mrf.mxu0
  %v1632 = vadd.f32 %v1535, %v1631
  %v1633 = vpop.f32.mrf.mxu0
  %1634 = vmatprep.mubr.bf16.mxu0 %v806
  %1635 = vmatmul.mubr.bf16.gmra.mxu0 %v805
  %v1636 = vpop.f32.mrf.mxu0
  %v1637 = vadd.f32 %v1540, %v1636
  %v1638 = vpop.f32.mrf.mxu0
  %v1639 = vpop.f32.mrf.mxu0
  %v1640 = vadd.f32 %v1543, %v1639
  %v1641 = vpop.f32.mrf.mxu0
  %1642 = vmatprep.mubr.bf16.mxu0 %v814
  %1643 = vmatmul.mubr.bf16.gmra.mxu0 %v813
  %v1644 = vpop.f32.mrf.mxu0
  %v1645 = vadd.f32 %v1548, %v1644
  %v1646 = vpop.f32.mrf.mxu0
  %v1647 = vpop.f32.mrf.mxu0
  %v1648 = vadd.f32 %v1551, %v1647
  %v1649 = vpop.f32.mrf.mxu0
  %1650 = vmatprep.mubr.bf16.mxu0 %v822
  %1651 = vmatmul.mubr.bf16.gmra.mxu0 %v821
  %v1652 = vpop.f32.mrf.mxu0
  %v1653 = vadd.f32 %v1556, %v1652
  %v1654 = vpop.f32.mrf.mxu0
  %v1655 = vpop.f32.mrf.mxu0
  %v1656 = vadd.f32 %v1559, %v1655
  %v1657 = vpop.f32.mrf.mxu0
  %1658 = vmatprep.mubr.bf16.mxu0 %v830
  %1659 = vmatmul.mubr.bf16.gmra.mxu0 %v829
  %v1660 = vpop.f32.mrf.mxu0
  %v1661 = vadd.f32 %v1564, %v1660
  %v1662 = vpop.f32.mrf.mxu0
  %v1663 = vpop.f32.mrf.mxu0
  %v1664 = vadd.f32 %v1567, %v1663
  %v1665 = vpop.f32.mrf.mxu0
  %1666 = vmatprep.mubr.bf16.mxu0 %v838
  %1667 = vmatmul.mubr.bf16.gmra.mxu0 %v837
  %v1668 = vpop.f32.mrf.mxu0
  %v1669 = vadd.f32 %v1572, %v1668
  %v1670 = vpop.f32.mrf.mxu0
  %v1671 = vpop.f32.mrf.mxu0
  %v1672 = vadd.f32 %v1575, %v1671
  %v1673 = vpop.f32.mrf.mxu0
  %1674 = vmatprep.mubr.bf16.mxu0 %v846
  %1675 = vmatmul.mubr.bf16.gmra.mxu0 %v845
  %v1676 = vpop.f32.mrf.mxu0
  %v1677 = vadd.f32 %v1580, %v1676
  %v1678 = vpop.f32.mrf.mxu0
  %v1679 = vpop.f32.mrf.mxu0
  %v1680 = vadd.f32 %v1583, %v1679
  %v1681 = vpop.f32.mrf.mxu0
  %1682 = vdwg.mxu0
  %vm1683 = vcmask 261120
  %v1684 = vsel %vm1683, %v1621, 0.0
  %1685 = vadd.xlane.f32.xlu0 %v1684
  %v1686 = vpop.xlane.xlu0 %1685
  %v1687 = vsel %vm1683, %v1624, 0.0
  %1688 = vadd.xlane.f32.xlu0 %v1687
  %v1689 = vpop.xlane.xlu0 %1688
  %v1690 = vsel %vm1683, %v1629, 0.0
  %1691 = vadd.xlane.f32.xlu0 %v1690
  %v1692 = vpop.xlane.xlu0 %1691
  %v1693 = vsel %vm1683, %v1632, 0.0
  %1694 = vadd.xlane.f32.xlu0 %v1693
  %v1695 = vpop.xlane.xlu0 %1694
  %v1696 = vsel %vm1683, %v1637, 0.0
  %1697 = vadd.xlane.f32.xlu0 %v1696
  %v1698 = vpop.xlane.xlu0 %1697
  %v1699 = vsel %vm1683, %v1640, 0.0
  %1700 = vadd.xlane.f32.xlu0 %v1699
  %v1701 = vpop.xlane.xlu0 %1700
  %v1702 = vsel %vm1683, %v1645, 0.0
  %1703 = vadd.xlane.f32.xlu0 %v1702
  %v1704 = vpop.xlane.xlu0 %1703
  %v1705 = vsel %vm1683, %v1648, 0.0
  %1706 = vadd.xlane.f32.xlu0 %v1705
  %v1707 = vpop.xlane.xlu0 %1706
  %v1708 = vsel %vm1683, %v1653, 0.0
  %1709 = vadd.xlane.f32.xlu0 %v1708
  %v1710 = vpop.xlane.xlu0 %1709
  %v1711 = vsel %vm1683, %v1656, 0.0
  %1712 = vadd.xlane.f32.xlu0 %v1711
  %v1713 = vpop.xlane.xlu0 %1712
  %v1714 = vsel %vm1683, %v1661, 0.0
  %1715 = vadd.xlane.f32.xlu0 %v1714
  %v1716 = vpop.xlane.xlu0 %1715
  %v1717 = vsel %vm1683, %v1664, 0.0
  %1718 = vadd.xlane.f32.xlu0 %v1717
  %v1719 = vpop.xlane.xlu0 %1718
  %v1720 = vsel %vm1683, %v1669, 0.0
  %1721 = vadd.xlane.f32.xlu0 %v1720
  %v1722 = vpop.xlane.xlu0 %1721
  %v1723 = vsel %vm1683, %v1672, 0.0
  %1724 = vadd.xlane.f32.xlu0 %v1723
  %v1725 = vpop.xlane.xlu0 %1724
  %v1726 = vsel %vm1683, %v1677, 0.0
  %1727 = vadd.xlane.f32.xlu0 %v1726
  %v1728 = vpop.xlane.xlu0 %1727
  %v1729 = vsel %vm1683, %v1680, 0.0
  %1730 = vadd.xlane.f32.xlu0 %v1729
  %v1731 = vpop.xlane.xlu0 %1730
  %v1732 = vmul.f32 %v1621, %v1621
  %v1733 = vmul.f32 %v1624, %v1624
  %v1734 = vmul.f32 %v1629, %v1629
  %v1735 = vmul.f32 %v1632, %v1632
  %v1736 = vmul.f32 %v1637, %v1637
  %v1737 = vmul.f32 %v1640, %v1640
  %v1738 = vmul.f32 %v1645, %v1645
  %v1739 = vmul.f32 %v1648, %v1648
  %v1740 = vmul.f32 %v1653, %v1653
  %v1741 = vmul.f32 %v1656, %v1656
  %v1742 = vmul.f32 %v1661, %v1661
  %v1743 = vmul.f32 %v1664, %v1664
  %v1744 = vmul.f32 %v1669, %v1669
  %v1745 = vmul.f32 %v1672, %v1672
  %v1746 = vmul.f32 %v1677, %v1677
  %v1747 = vmul.f32 %v1680, %v1680
  %v1748 = vsel %vm1683, %v1732, 0.0
  %1749 = vadd.xlane.f32.xlu0 %v1748
  %v1750 = vpop.xlane.xlu0 %1749
  %v1751 = vsel %vm1683, %v1733, 0.0
  %1752 = vadd.xlane.f32.xlu0 %v1751
  %v1753 = vpop.xlane.xlu0 %1752
  %v1754 = vsel %vm1683, %v1734, 0.0
  %1755 = vadd.xlane.f32.xlu0 %v1754
  %v1756 = vpop.xlane.xlu0 %1755
  %v1757 = vsel %vm1683, %v1735, 0.0
  %1758 = vadd.xlane.f32.xlu0 %v1757
  %v1759 = vpop.xlane.xlu0 %1758
  %v1760 = vsel %vm1683, %v1736, 0.0
  %1761 = vadd.xlane.f32.xlu0 %v1760
  %v1762 = vpop.xlane.xlu0 %1761
  %v1763 = vsel %vm1683, %v1737, 0.0
  %1764 = vadd.xlane.f32.xlu0 %v1763
  %v1765 = vpop.xlane.xlu0 %1764
  %v1766 = vsel %vm1683, %v1738, 0.0
  %1767 = vadd.xlane.f32.xlu0 %v1766
  %v1768 = vpop.xlane.xlu0 %1767
  %v1769 = vsel %vm1683, %v1739, 0.0
  %1770 = vadd.xlane.f32.xlu0 %v1769
  %v1771 = vpop.xlane.xlu0 %1770
  %v1772 = vsel %vm1683, %v1740, 0.0
  %1773 = vadd.xlane.f32.xlu0 %v1772
  %v1774 = vpop.xlane.xlu0 %1773
  %v1775 = vsel %vm1683, %v1741, 0.0
  %1776 = vadd.xlane.f32.xlu0 %v1775
  %v1777 = vpop.xlane.xlu0 %1776
  %v1778 = vsel %vm1683, %v1742, 0.0
  %1779 = vadd.xlane.f32.xlu0 %v1778
  %v1780 = vpop.xlane.xlu0 %1779
  %v1781 = vsel %vm1683, %v1743, 0.0
  %1782 = vadd.xlane.f32.xlu0 %v1781
  %v1783 = vpop.xlane.xlu0 %1782
  %v1784 = vsel %vm1683, %v1744, 0.0
  %1785 = vadd.xlane.f32.xlu0 %v1784
  %v1786 = vpop.xlane.xlu0 %1785
  %v1787 = vsel %vm1683, %v1745, 0.0
  %1788 = vadd.xlane.f32.xlu0 %v1787
  %v1789 = vpop.xlane.xlu0 %1788
  %v1790 = vsel %vm1683, %v1746, 0.0
  %1791 = vadd.xlane.f32.xlu0 %v1790
  %v1792 = vpop.xlane.xlu0 %1791
  %v1793 = vsel %vm1683, %v1747, 0.0
  %1794 = vadd.xlane.f32.xlu0 %v1793
  %v1795 = vpop.xlane.xlu0 %1794
  %vm1796 = vcmask 7168
  %v1797 = vsel %vm1796, %v1686, %v1750
  %v1798 = vsel %vm1796, %v1689, %v1753
  %v1799 = vsel %vm1796, %v1692, %v1756
  %v1800 = vsel %vm1796, %v1695, %v1759
  %v1801 = vsel %vm1796, %v1698, %v1762
  %v1802 = vsel %vm1796, %v1701, %v1765
  %v1803 = vsel %vm1796, %v1704, %v1768
  %v1804 = vsel %vm1796, %v1707, %v1771
  %v1805 = vsel %vm1796, %v1710, %v1774
  %v1806 = vsel %vm1796, %v1713, %v1777
  %v1807 = vsel %vm1796, %v1716, %v1780
  %v1808 = vsel %vm1796, %v1719, %v1783
  %v1809 = vsel %vm1796, %v1722, %v1786
  %v1810 = vsel %vm1796, %v1725, %v1789
  %v1811 = vsel %vm1796, %v1728, %v1792
  %v1812 = vsel %vm1796, %v1731, %v1795
  %vm1813 = vcmask 15360
  %1814 = vst.msk [vmem:[%s3] sm:$0xff] %vm1813, %v1797
  %1815 = vst.msk [vmem:[%s3 + $0x8] sm:$0xff] %vm1813, %v1798
  %1816 = vst.msk [vmem:[%s3 + $0x10] sm:$0xff] %vm1813, %v1799
  %1817 = vst.msk [vmem:[%s3 + $0x18] sm:$0xff] %vm1813, %v1800
  %1818 = vst.msk [vmem:[%s3 + $0x20] sm:$0xff] %vm1813, %v1801
  %1819 = vst.msk [vmem:[%s3 + $0x28] sm:$0xff] %vm1813, %v1802
  %1820 = vst.msk [vmem:[%s3 + $0x30] sm:$0xff] %vm1813, %v1803
  %1821 = vst.msk [vmem:[%s3 + $0x38] sm:$0xff] %vm1813, %v1804
  %1822 = vst.msk [vmem:[%s3 + $0x40] sm:$0xff] %vm1813, %v1805
  %1823 = vst.msk [vmem:[%s3 + $0x48] sm:$0xff] %vm1813, %v1806
  %1824 = vst.msk [vmem:[%s3 + $0x50] sm:$0xff] %vm1813, %v1807
  %1825 = vst.msk [vmem:[%s3 + $0x58] sm:$0xff] %vm1813, %v1808
  %1826 = vst.msk [vmem:[%s3 + $0x60] sm:$0xff] %vm1813, %v1809
  %1827 = vst.msk [vmem:[%s3 + $0x68] sm:$0xff] %vm1813, %v1810
  %1828 = vst.msk [vmem:[%s3 + $0x70] sm:$0xff] %vm1813, %v1811
  %1829 = vst.msk [vmem:[%s3 + $0x78] sm:$0xff] %vm1813, %v1812
  %v1830 = vpack.c.bf16 %v1624, %v1621
  %v1831 = vpack.c.bf16 %v1632, %v1629
  %v1832 = vpack.c.bf16 %v1640, %v1637
  %v1833 = vpack.c.bf16 %v1648, %v1645
  %v1834 = vpack.c.bf16 %v1656, %v1653
  %v1835 = vpack.c.bf16 %v1664, %v1661
  %v1836 = vpack.c.bf16 %v1672, %v1669
  %v1837 = vpack.c.bf16 %v1680, %v1677
  %v1846 = vunpack.c.l.b16 %v1830
  %v1847 = vunpack.c.h.b16 %v1830
  %v1848 = vunpack.c.l.b16 %v1831
  %v1849 = vunpack.c.h.b16 %v1831
  %v1850 = vunpack.c.l.b16 %v1832
  %v1851 = vunpack.c.h.b16 %v1832
  %v1852 = vunpack.c.l.b16 %v1833
  %v1853 = vunpack.c.h.b16 %v1833
  %v1854 = vunpack.c.l.b16 %v1834
  %v1855 = vunpack.c.h.b16 %v1834
  %v1856 = vunpack.c.l.b16 %v1835
  %v1857 = vunpack.c.h.b16 %v1835
  %v1858 = vunpack.c.l.b16 %v1836
  %v1859 = vunpack.c.h.b16 %v1836
  %v1860 = vunpack.c.l.b16 %v1837
  %v1861 = vunpack.c.h.b16 %v1837
  %v1862 = vpack.c.b16 %v1846, %v1846
  %v1863 = vpack.c.b16 %v1847, %v1847
  %v1864 = vpack.c.b16 %v1848, %v1848
  %v1865 = vpack.c.b16 %v1849, %v1849
  %v1866 = vpack.c.b16 %v1850, %v1850
  %v1867 = vpack.c.b16 %v1851, %v1851
  %v1868 = vpack.c.b16 %v1852, %v1852
  %v1869 = vpack.c.b16 %v1853, %v1853
  %v1870 = vpack.c.b16 %v1854, %v1854
  %v1871 = vpack.c.b16 %v1855, %v1855
  %v1872 = vpack.c.b16 %v1856, %v1856
  %v1873 = vpack.c.b16 %v1857, %v1857
  %v1874 = vpack.c.b16 %v1858, %v1858
  %v1875 = vpack.c.b16 %v1859, %v1859
  %v1876 = vpack.c.b16 %v1860, %v1860
  %v1877 = vpack.c.b16 %v1861, %v1861
  %vm1894 = vcmask 257024
  %1895 = vst.msk [vmem:[%s2] sm:$0xf] %vm1894, %v1862
  %1896 = vst.msk [vmem:[%s2 + $0x4] sm:$0xf] %vm1894, %v1863
  %1897 = vst.msk [vmem:[%s2 + $0x8] sm:$0xf] %vm1894, %v1864
  %1898 = vst.msk [vmem:[%s2 + $0xc] sm:$0xf] %vm1894, %v1865
  %1899 = vst.msk [vmem:[%s2 + $0x10] sm:$0xf] %vm1894, %v1866
  %1900 = vst.msk [vmem:[%s2 + $0x14] sm:$0xf] %vm1894, %v1867
  %1901 = vst.msk [vmem:[%s2 + $0x18] sm:$0xf] %vm1894, %v1868
  %1902 = vst.msk [vmem:[%s2 + $0x1c] sm:$0xf] %vm1894, %v1869
  %1903 = vst.msk [vmem:[%s2 + $0x20] sm:$0xf] %vm1894, %v1870
  %1904 = vst.msk [vmem:[%s2 + $0x24] sm:$0xf] %vm1894, %v1871
  %1905 = vst.msk [vmem:[%s2 + $0x28] sm:$0xf] %vm1894, %v1872
  %1906 = vst.msk [vmem:[%s2 + $0x2c] sm:$0xf] %vm1894, %v1873
  %1907 = vst.msk [vmem:[%s2 + $0x30] sm:$0xf] %vm1894, %v1874
  %1908 = vst.msk [vmem:[%s2 + $0x34] sm:$0xf] %vm1894, %v1875
  %1909 = vst.msk [vmem:[%s2 + $0x38] sm:$0xf] %vm1894, %v1876
  %1910 = vst.msk [vmem:[%s2 + $0x3c] sm:$0xf] %vm1894, %v1877
  // Predicated region
  $region10: #{image_discriminator.8} parent=0 // pred_check
    _
  $region11: #{image_discriminator.8} parent=0 // pred_check_branch
    %1912 = sbr.rel (0) target = $region13
  $region12: #{image_discriminator.8} parent=0 // pred_region
    _
  $region13: #{image_discriminator.8} parent=0 // pred_fallthru
    _
  // Predicated region
  $region14: #{image_discriminator.8} parent=0 // pred_check
    _
  $region15: #{image_discriminator.8} parent=0 // pred_check_branch
    %1914 = sbr.rel (0) target = $region17
  $region16: #{image_discriminator.8} parent=0 // pred_region
    _
  $region17: #{image_discriminator.8} parent=0 // pred_fallthru
    _
  // Predicated region
  $region18: #{image_discriminator.8} parent=0 // pred_check
    _
  $region19: #{image_discriminator.8} parent=0 // pred_check_branch
    %1916 = sbr.rel (0) target = $region21
  $region20: #{image_discriminator.8} parent=0 // pred_region
    _
  $region21: #{image_discriminator.8} parent=0 // pred_fallthru
    _
  // Predicated region
  $region22: #{image_discriminator.8} parent=0 // pred_check
    _
  $region23: #{image_discriminator.8} parent=0 // pred_check_branch
    %1918 = sbr.rel (0) target = $region25
  $region24: #{image_discriminator.8} parent=0 // pred_region
    _
  $region25: #{image_discriminator.8} parent=0 // pred_fallthru
    _

// kernel: image_discriminator.9
$region0: #{image_discriminator.9}
  #allocation0 [shape = 'u32[]', space=smem, size = 0x4, offset = 0x4, fixed_abs, tag = 'smem constant byte address 0x4 - core index']
  #allocation1 [shape = 'u32[144,128]{1,0:T(1,128)}', space=vmem, size = 0x12000, scoped, tag = 'internal scratch']
  %s0 = inlined_call_operand.vmem [shape: bf16[1,2048], index: 0, kind: input, shape index: {}]
  %s1 = inlined_call_operand.vmem [shape: bf16[2048,2], index: 1, kind: input, shape index: {}]
  %s2 = inlined_call_operand.hbm [shape: f32[1,2], index: 2, kind: output, shape index: {}]
  %s3 = sld [smem:[#allocation0]]
  $region18: #{image_discriminator.9} parent=0
    _
  %s5 = ssub.s32 1, %s3
  %s6 = scalar_select 0, %s5, %s3
  $region1: #{image_discriminator.9} parent=0
    #allocation2 [shape = 'u8[512]{0}', space=vmem, size = 0x400, scoped, tag = 'output window, operand 0, single buffered']
    #allocation3 [shape = 's32[1]{0}', space=sflag, size = 0x4, scoped, tag = 'scoped memory for image_discriminator.9']
    %7 = vsyncpa [#allocation3], 0
    // Predicated region
    $region2: #{image_discriminator.9} parent=1 // pred_check
      _
    $region3: #{image_discriminator.9} parent=1 // pred_check_branch
      %9 = sbr.rel (0) target = $region5
    $region4: #{image_discriminator.9} parent=1 // pred_region
      _
    $region5: #{image_discriminator.9} parent=1 // pred_fallthru
      _
    // Predicated region
    $region6: #{image_discriminator.9} parent=1 // pred_check
      _
    $region7: #{image_discriminator.9} parent=1 // pred_check_branch
      %11 = sbr.rel (0) target = $region9
    $region8: #{image_discriminator.9} parent=1 // pred_region
      _
    $region9: #{image_discriminator.9} parent=1 // pred_fallthru
      _
    %v14 = vld [vmem:[%s1] sm:$0xf]
    %v15 = vld [vmem:[%s1 + $0x4] sm:$0xf]
    %v16 = vld [vmem:[%s1 + $0x8] sm:$0xf]
    %v17 = vld [vmem:[%s1 + $0xc] sm:$0xf]
    %v18 = vld [vmem:[%s1 + $0x10] sm:$0xf]
    %v19 = vld [vmem:[%s1 + $0x14] sm:$0xf]
    %v20 = vld [vmem:[%s1 + $0x18] sm:$0xf]
    %v21 = vld [vmem:[%s1 + $0x1c] sm:$0xf]
    %v22 = vld [vmem:[%s1 + $0x20] sm:$0xf]
    %v23 = vld [vmem:[%s1 + $0x24] sm:$0xf]
    %v24 = vld [vmem:[%s1 + $0x28] sm:$0xf]
    %v25 = vld [vmem:[%s1 + $0x2c] sm:$0xf]
    %v26 = vld [vmem:[%s1 + $0x30] sm:$0xf]
    %v27 = vld [vmem:[%s1 + $0x34] sm:$0xf]
    %v28 = vld [vmem:[%s1 + $0x38] sm:$0xf]
    %v29 = vld [vmem:[%s1 + $0x3c] sm:$0xf]
    %v30 = vld [vmem:[%s1 + $0x40] sm:$0xf]
    %v31 = vld [vmem:[%s1 + $0x44] sm:$0xf]
    %v32 = vld [vmem:[%s1 + $0x48] sm:$0xf]
    %v33 = vld [vmem:[%s1 + $0x4c] sm:$0xf]
    %v34 = vld [vmem:[%s1 + $0x50] sm:$0xf]
    %v35 = vld [vmem:[%s1 + $0x54] sm:$0xf]
    %v36 = vld [vmem:[%s1 + $0x58] sm:$0xf]
    %v37 = vld [vmem:[%s1 + $0x5c] sm:$0xf]
    %v38 = vld [vmem:[%s1 + $0x60] sm:$0xf]
    %v39 = vld [vmem:[%s1 + $0x64] sm:$0xf]
    %v40 = vld [vmem:[%s1 + $0x68] sm:$0xf]
    %v41 = vld [vmem:[%s1 + $0x6c] sm:$0xf]
    %v42 = vld [vmem:[%s1 + $0x70] sm:$0xf]
    %v43 = vld [vmem:[%s1 + $0x74] sm:$0xf]
    %v44 = vld [vmem:[%s1 + $0x78] sm:$0xf]
    %v45 = vld [vmem:[%s1 + $0x7c] sm:$0xf]
    %v46 = vld [vmem:[%s1 + $0x80] sm:$0xf]
    %v47 = vld [vmem:[%s1 + $0x84] sm:$0xf]
    %v48 = vld [vmem:[%s1 + $0x88] sm:$0xf]
    %v49 = vld [vmem:[%s1 + $0x8c] sm:$0xf]
    %v50 = vld [vmem:[%s1 + $0x90] sm:$0xf]
    %v51 = vld [vmem:[%s1 + $0x94] sm:$0xf]
    %v52 = vld [vmem:[%s1 + $0x98] sm:$0xf]
    %v53 = vld [vmem:[%s1 + $0x9c] sm:$0xf]
    %v54 = vld [vmem:[%s1 + $0xa0] sm:$0xf]
    %v55 = vld [vmem:[%s1 + $0xa4] sm:$0xf]
    %v56 = vld [vmem:[%s1 + $0xa8] sm:$0xf]
    %v57 = vld [vmem:[%s1 + $0xac] sm:$0xf]
    %v58 = vld [vmem:[%s1 + $0xb0] sm:$0xf]
    %v59 = vld [vmem:[%s1 + $0xb4] sm:$0xf]
    %v60 = vld [vmem:[%s1 + $0xb8] sm:$0xf]
    %v61 = vld [vmem:[%s1 + $0xbc] sm:$0xf]
    %v62 = vld [vmem:[%s1 + $0xc0] sm:$0xf]
    %v63 = vld [vmem:[%s1 + $0xc4] sm:$0xf]
    %v64 = vld [vmem:[%s1 + $0xc8] sm:$0xf]
    %v65 = vld [vmem:[%s1 + $0xcc] sm:$0xf]
    %v66 = vld [vmem:[%s1 + $0xd0] sm:$0xf]
    %v67 = vld [vmem:[%s1 + $0xd4] sm:$0xf]
    %v68 = vld [vmem:[%s1 + $0xd8] sm:$0xf]
    %v69 = vld [vmem:[%s1 + $0xdc] sm:$0xf]
    %v70 = vld [vmem:[%s1 + $0xe0] sm:$0xf]
    %v71 = vld [vmem:[%s1 + $0xe4] sm:$0xf]
    %v72 = vld [vmem:[%s1 + $0xe8] sm:$0xf]
    %v73 = vld [vmem:[%s1 + $0xec] sm:$0xf]
    %v74 = vld [vmem:[%s1 + $0xf0] sm:$0xf]
    %v75 = vld [vmem:[%s1 + $0xf4] sm:$0xf]
    %v76 = vld [vmem:[%s1 + $0xf8] sm:$0xf]
    %v77 = vld [vmem:[%s1 + $0xfc] sm:$0xf]
    %v78 = vld [vmem:[%s1 + $0x100] sm:$0xf]
    %v79 = vld [vmem:[%s1 + $0x104] sm:$0xf]
    %v80 = vld [vmem:[%s1 + $0x108] sm:$0xf]
    %v81 = vld [vmem:[%s1 + $0x10c] sm:$0xf]
    %v82 = vld [vmem:[%s1 + $0x110] sm:$0xf]
    %v83 = vld [vmem:[%s1 + $0x114] sm:$0xf]
    %v84 = vld [vmem:[%s1 + $0x118] sm:$0xf]
    %v85 = vld [vmem:[%s1 + $0x11c] sm:$0xf]
    %v86 = vld [vmem:[%s1 + $0x120] sm:$0xf]
    %v87 = vld [vmem:[%s1 + $0x124] sm:$0xf]
    %v88 = vld [vmem:[%s1 + $0x128] sm:$0xf]
    %v89 = vld [vmem:[%s1 + $0x12c] sm:$0xf]
    %v90 = vld [vmem:[%s1 + $0x130] sm:$0xf]
    %v91 = vld [vmem:[%s1 + $0x134] sm:$0xf]
    %v92 = vld [vmem:[%s1 + $0x138] sm:$0xf]
    %v93 = vld [vmem:[%s1 + $0x13c] sm:$0xf]
    %v94 = vld [vmem:[%s1 + $0x140] sm:$0xf]
    %v95 = vld [vmem:[%s1 + $0x144] sm:$0xf]
    %v96 = vld [vmem:[%s1 + $0x148] sm:$0xf]
    %v97 = vld [vmem:[%s1 + $0x14c] sm:$0xf]
    %v98 = vld [vmem:[%s1 + $0x150] sm:$0xf]
    %v99 = vld [vmem:[%s1 + $0x154] sm:$0xf]
    %v100 = vld [vmem:[%s1 + $0x158] sm:$0xf]
    %v101 = vld [vmem:[%s1 + $0x15c] sm:$0xf]
    %v102 = vld [vmem:[%s1 + $0x160] sm:$0xf]
    %v103 = vld [vmem:[%s1 + $0x164] sm:$0xf]
    %v104 = vld [vmem:[%s1 + $0x168] sm:$0xf]
    %v105 = vld [vmem:[%s1 + $0x16c] sm:$0xf]
    %v106 = vld [vmem:[%s1 + $0x170] sm:$0xf]
    %v107 = vld [vmem:[%s1 + $0x174] sm:$0xf]
    %v108 = vld [vmem:[%s1 + $0x178] sm:$0xf]
    %v109 = vld [vmem:[%s1 + $0x17c] sm:$0xf]
    %v110 = vld [vmem:[%s1 + $0x180] sm:$0xf]
    %v111 = vld [vmem:[%s1 + $0x184] sm:$0xf]
    %v112 = vld [vmem:[%s1 + $0x188] sm:$0xf]
    %v113 = vld [vmem:[%s1 + $0x18c] sm:$0xf]
    %v114 = vld [vmem:[%s1 + $0x190] sm:$0xf]
    %v115 = vld [vmem:[%s1 + $0x194] sm:$0xf]
    %v116 = vld [vmem:[%s1 + $0x198] sm:$0xf]
    %v117 = vld [vmem:[%s1 + $0x19c] sm:$0xf]
    %v118 = vld [vmem:[%s1 + $0x1a0] sm:$0xf]
    %v119 = vld [vmem:[%s1 + $0x1a4] sm:$0xf]
    %v120 = vld [vmem:[%s1 + $0x1a8] sm:$0xf]
    %v121 = vld [vmem:[%s1 + $0x1ac] sm:$0xf]
    %v122 = vld [vmem:[%s1 + $0x1b0] sm:$0xf]
    %v123 = vld [vmem:[%s1 + $0x1b4] sm:$0xf]
    %v124 = vld [vmem:[%s1 + $0x1b8] sm:$0xf]
    %v125 = vld [vmem:[%s1 + $0x1bc] sm:$0xf]
    %v126 = vld [vmem:[%s1 + $0x1c0] sm:$0xf]
    %v127 = vld [vmem:[%s1 + $0x1c4] sm:$0xf]
    %v128 = vld [vmem:[%s1 + $0x1c8] sm:$0xf]
    %v129 = vld [vmem:[%s1 + $0x1cc] sm:$0xf]
    %v130 = vld [vmem:[%s1 + $0x1d0] sm:$0xf]
    %v131 = vld [vmem:[%s1 + $0x1d4] sm:$0xf]
    %v132 = vld [vmem:[%s1 + $0x1d8] sm:$0xf]
    %v133 = vld [vmem:[%s1 + $0x1dc] sm:$0xf]
    %v134 = vld [vmem:[%s1 + $0x1e0] sm:$0xf]
    %v135 = vld [vmem:[%s1 + $0x1e4] sm:$0xf]
    %v136 = vld [vmem:[%s1 + $0x1e8] sm:$0xf]
    %v137 = vld [vmem:[%s1 + $0x1ec] sm:$0xf]
    %v138 = vld [vmem:[%s1 + $0x1f0] sm:$0xf]
    %v139 = vld [vmem:[%s1 + $0x1f4] sm:$0xf]
    %v140 = vld [vmem:[%s1 + $0x1f8] sm:$0xf]
    %v141 = vld [vmem:[%s1 + $0x1fc] sm:$0xf]
    %v142 = vld [vmem:[%s1 + $0x200] sm:$0xf]
    %v143 = vld [vmem:[%s1 + $0x204] sm:$0xf]
    %v144 = vld [vmem:[%s1 + $0x208] sm:$0xf]
    %v145 = vld [vmem:[%s1 + $0x20c] sm:$0xf]
    %v146 = vld [vmem:[%s1 + $0x210] sm:$0xf]
    %v147 = vld [vmem:[%s1 + $0x214] sm:$0xf]
    %v148 = vld [vmem:[%s1 + $0x218] sm:$0xf]
    %v149 = vld [vmem:[%s1 + $0x21c] sm:$0xf]
    %v150 = vld [vmem:[%s1 + $0x220] sm:$0xf]
    %v151 = vld [vmem:[%s1 + $0x224] sm:$0xf]
    %v152 = vld [vmem:[%s1 + $0x228] sm:$0xf]
    %v153 = vld [vmem:[%s1 + $0x22c] sm:$0xf]
    %v154 = vld [vmem:[%s1 + $0x230] sm:$0xf]
    %v155 = vld [vmem:[%s1 + $0x234] sm:$0xf]
    %v156 = vld [vmem:[%s1 + $0x238] sm:$0xf]
    %v157 = vld [vmem:[%s1 + $0x23c] sm:$0xf]
    %v158 = vld [vmem:[%s1 + $0x240] sm:$0xf]
    %v159 = vld [vmem:[%s1 + $0x244] sm:$0xf]
    %v160 = vld [vmem:[%s1 + $0x248] sm:$0xf]
    %v161 = vld [vmem:[%s1 + $0x24c] sm:$0xf]
    %v162 = vld [vmem:[%s1 + $0x250] sm:$0xf]
    %v163 = vld [vmem:[%s1 + $0x254] sm:$0xf]
    %v164 = vld [vmem:[%s1 + $0x258] sm:$0xf]
    %v165 = vld [vmem:[%s1 + $0x25c] sm:$0xf]
    %v166 = vld [vmem:[%s1 + $0x260] sm:$0xf]
    %v167 = vld [vmem:[%s1 + $0x264] sm:$0xf]
    %v168 = vld [vmem:[%s1 + $0x268] sm:$0xf]
    %v169 = vld [vmem:[%s1 + $0x26c] sm:$0xf]
    %v170 = vld [vmem:[%s1 + $0x270] sm:$0xf]
    %v171 = vld [vmem:[%s1 + $0x274] sm:$0xf]
    %v172 = vld [vmem:[%s1 + $0x278] sm:$0xf]
    %v173 = vld [vmem:[%s1 + $0x27c] sm:$0xf]
    %v174 = vld [vmem:[%s1 + $0x280] sm:$0xf]
    %v175 = vld [vmem:[%s1 + $0x284] sm:$0xf]
    %v176 = vld [vmem:[%s1 + $0x288] sm:$0xf]
    %v177 = vld [vmem:[%s1 + $0x28c] sm:$0xf]
    %v178 = vld [vmem:[%s1 + $0x290] sm:$0xf]
    %v179 = vld [vmem:[%s1 + $0x294] sm:$0xf]
    %v180 = vld [vmem:[%s1 + $0x298] sm:$0xf]
    %v181 = vld [vmem:[%s1 + $0x29c] sm:$0xf]
    %v182 = vld [vmem:[%s1 + $0x2a0] sm:$0xf]
    %v183 = vld [vmem:[%s1 + $0x2a4] sm:$0xf]
    %v184 = vld [vmem:[%s1 + $0x2a8] sm:$0xf]
    %v185 = vld [vmem:[%s1 + $0x2ac] sm:$0xf]
    %v186 = vld [vmem:[%s1 + $0x2b0] sm:$0xf]
    %v187 = vld [vmem:[%s1 + $0x2b4] sm:$0xf]
    %v188 = vld [vmem:[%s1 + $0x2b8] sm:$0xf]
    %v189 = vld [vmem:[%s1 + $0x2bc] sm:$0xf]
    %v190 = vld [vmem:[%s1 + $0x2c0] sm:$0xf]
    %v191 = vld [vmem:[%s1 + $0x2c4] sm:$0xf]
    %v192 = vld [vmem:[%s1 + $0x2c8] sm:$0xf]
    %v193 = vld [vmem:[%s1 + $0x2cc] sm:$0xf]
    %v194 = vld [vmem:[%s1 + $0x2d0] sm:$0xf]
    %v195 = vld [vmem:[%s1 + $0x2d4] sm:$0xf]
    %v196 = vld [vmem:[%s1 + $0x2d8] sm:$0xf]
    %v197 = vld [vmem:[%s1 + $0x2dc] sm:$0xf]
    %v198 = vld [vmem:[%s1 + $0x2e0] sm:$0xf]
    %v199 = vld [vmem:[%s1 + $0x2e4] sm:$0xf]
    %v200 = vld [vmem:[%s1 + $0x2e8] sm:$0xf]
    %v201 = vld [vmem:[%s1 + $0x2ec] sm:$0xf]
    %v202 = vld [vmem:[%s1 + $0x2f0] sm:$0xf]
    %v203 = vld [vmem:[%s1 + $0x2f4] sm:$0xf]
    %v204 = vld [vmem:[%s1 + $0x2f8] sm:$0xf]
    %v205 = vld [vmem:[%s1 + $0x2fc] sm:$0xf]
    %v206 = vld [vmem:[%s1 + $0x300] sm:$0xf]
    %v207 = vld [vmem:[%s1 + $0x304] sm:$0xf]
    %v208 = vld [vmem:[%s1 + $0x308] sm:$0xf]
    %v209 = vld [vmem:[%s1 + $0x30c] sm:$0xf]
    %v210 = vld [vmem:[%s1 + $0x310] sm:$0xf]
    %v211 = vld [vmem:[%s1 + $0x314] sm:$0xf]
    %v212 = vld [vmem:[%s1 + $0x318] sm:$0xf]
    %v213 = vld [vmem:[%s1 + $0x31c] sm:$0xf]
    %v214 = vld [vmem:[%s1 + $0x320] sm:$0xf]
    %v215 = vld [vmem:[%s1 + $0x324] sm:$0xf]
    %v216 = vld [vmem:[%s1 + $0x328] sm:$0xf]
    %v217 = vld [vmem:[%s1 + $0x32c] sm:$0xf]
    %v218 = vld [vmem:[%s1 + $0x330] sm:$0xf]
    %v219 = vld [vmem:[%s1 + $0x334] sm:$0xf]
    %v220 = vld [vmem:[%s1 + $0x338] sm:$0xf]
    %v221 = vld [vmem:[%s1 + $0x33c] sm:$0xf]
    %v222 = vld [vmem:[%s1 + $0x340] sm:$0xf]
    %v223 = vld [vmem:[%s1 + $0x344] sm:$0xf]
    %v224 = vld [vmem:[%s1 + $0x348] sm:$0xf]
    %v225 = vld [vmem:[%s1 + $0x34c] sm:$0xf]
    %v226 = vld [vmem:[%s1 + $0x350] sm:$0xf]
    %v227 = vld [vmem:[%s1 + $0x354] sm:$0xf]
    %v228 = vld [vmem:[%s1 + $0x358] sm:$0xf]
    %v229 = vld [vmem:[%s1 + $0x35c] sm:$0xf]
    %v230 = vld [vmem:[%s1 + $0x360] sm:$0xf]
    %v231 = vld [vmem:[%s1 + $0x364] sm:$0xf]
    %v232 = vld [vmem:[%s1 + $0x368] sm:$0xf]
    %v233 = vld [vmem:[%s1 + $0x36c] sm:$0xf]
    %v234 = vld [vmem:[%s1 + $0x370] sm:$0xf]
    %v235 = vld [vmem:[%s1 + $0x374] sm:$0xf]
    %v236 = vld [vmem:[%s1 + $0x378] sm:$0xf]
    %v237 = vld [vmem:[%s1 + $0x37c] sm:$0xf]
    %v238 = vld [vmem:[%s1 + $0x380] sm:$0xf]
    %v239 = vld [vmem:[%s1 + $0x384] sm:$0xf]
    %v240 = vld [vmem:[%s1 + $0x388] sm:$0xf]
    %v241 = vld [vmem:[%s1 + $0x38c] sm:$0xf]
    %v242 = vld [vmem:[%s1 + $0x390] sm:$0xf]
    %v243 = vld [vmem:[%s1 + $0x394] sm:$0xf]
    %v244 = vld [vmem:[%s1 + $0x398] sm:$0xf]
    %v245 = vld [vmem:[%s1 + $0x39c] sm:$0xf]
    %v246 = vld [vmem:[%s1 + $0x3a0] sm:$0xf]
    %v247 = vld [vmem:[%s1 + $0x3a4] sm:$0xf]
    %v248 = vld [vmem:[%s1 + $0x3a8] sm:$0xf]
    %v249 = vld [vmem:[%s1 + $0x3ac] sm:$0xf]
    %v250 = vld [vmem:[%s1 + $0x3b0] sm:$0xf]
    %v251 = vld [vmem:[%s1 + $0x3b4] sm:$0xf]
    %v252 = vld [vmem:[%s1 + $0x3b8] sm:$0xf]
    %v253 = vld [vmem:[%s1 + $0x3bc] sm:$0xf]
    %v254 = vld [vmem:[%s1 + $0x3c0] sm:$0xf]
    %v255 = vld [vmem:[%s1 + $0x3c4] sm:$0xf]
    %v256 = vld [vmem:[%s1 + $0x3c8] sm:$0xf]
    %v257 = vld [vmem:[%s1 + $0x3cc] sm:$0xf]
    %v258 = vld [vmem:[%s1 + $0x3d0] sm:$0xf]
    %v259 = vld [vmem:[%s1 + $0x3d4] sm:$0xf]
    %v260 = vld [vmem:[%s1 + $0x3d8] sm:$0xf]
    %v261 = vld [vmem:[%s1 + $0x3dc] sm:$0xf]
    %v262 = vld [vmem:[%s1 + $0x3e0] sm:$0xf]
    %v263 = vld [vmem:[%s1 + $0x3e4] sm:$0xf]
    %v264 = vld [vmem:[%s1 + $0x3e8] sm:$0xf]
    %v265 = vld [vmem:[%s1 + $0x3ec] sm:$0xf]
    %v266 = vld [vmem:[%s1 + $0x3f0] sm:$0xf]
    %v267 = vld [vmem:[%s1 + $0x3f4] sm:$0xf]
    %v268 = vld [vmem:[%s1 + $0x3f8] sm:$0xf]
    %v269 = vld [vmem:[%s1 + $0x3fc] sm:$0xf]
    %vm270 = vcmp.gt.bf16.partialorder %v14, 0
    %vm271 = vcmp.gt.bf16.partialorder %v15, 0
    %vm272 = vcmp.gt.bf16.partialorder %v16, 0
    %vm273 = vcmp.gt.bf16.partialorder %v17, 0
    %vm274 = vcmp.gt.bf16.partialorder %v18, 0
    %vm275 = vcmp.gt.bf16.partialorder %v19, 0
    %vm276 = vcmp.gt.bf16.partialorder %v20, 0
    %vm277 = vcmp.gt.bf16.partialorder %v21, 0
    %vm278 = vcmp.gt.bf16.partialorder %v22, 0
    %vm279 = vcmp.gt.bf16.partialorder %v23, 0
    %vm280 = vcmp.gt.bf16.partialorder %v24, 0
    %vm281 = vcmp.gt.bf16.partialorder %v25, 0
    %vm282 = vcmp.gt.bf16.partialorder %v26, 0
    %vm283 = vcmp.gt.bf16.partialorder %v27, 0
    %vm284 = vcmp.gt.bf16.partialorder %v28, 0
    %vm285 = vcmp.gt.bf16.partialorder %v29, 0
    %vm286 = vcmp.gt.bf16.partialorder %v30, 0
    %vm287 = vcmp.gt.bf16.partialorder %v31, 0
    %vm288 = vcmp.gt.bf16.partialorder %v32, 0
    %vm289 = vcmp.gt.bf16.partialorder %v33, 0
    %vm290 = vcmp.gt.bf16.partialorder %v34, 0
    %vm291 = vcmp.gt.bf16.partialorder %v35, 0
    %vm292 = vcmp.gt.bf16.partialorder %v36, 0
    %vm293 = vcmp.gt.bf16.partialorder %v37, 0
    %vm294 = vcmp.gt.bf16.partialorder %v38, 0
    %vm295 = vcmp.gt.bf16.partialorder %v39, 0
    %vm296 = vcmp.gt.bf16.partialorder %v40, 0
    %vm297 = vcmp.gt.bf16.partialorder %v41, 0
    %vm298 = vcmp.gt.bf16.partialorder %v42, 0
    %vm299 = vcmp.gt.bf16.partialorder %v43, 0
    %vm300 = vcmp.gt.bf16.partialorder %v44, 0
    %vm301 = vcmp.gt.bf16.partialorder %v45, 0
    %vm302 = vcmp.gt.bf16.partialorder %v46, 0
    %vm303 = vcmp.gt.bf16.partialorder %v47, 0
    %vm304 = vcmp.gt.bf16.partialorder %v48, 0
    %vm305 = vcmp.gt.bf16.partialorder %v49, 0
    %vm306 = vcmp.gt.bf16.partialorder %v50, 0
    %vm307 = vcmp.gt.bf16.partialorder %v51, 0
    %vm308 = vcmp.gt.bf16.partialorder %v52, 0
    %vm309 = vcmp.gt.bf16.partialorder %v53, 0
    %vm310 = vcmp.gt.bf16.partialorder %v54, 0
    %vm311 = vcmp.gt.bf16.partialorder %v55, 0
    %vm312 = vcmp.gt.bf16.partialorder %v56, 0
    %vm313 = vcmp.gt.bf16.partialorder %v57, 0
    %vm314 = vcmp.gt.bf16.partialorder %v58, 0
    %vm315 = vcmp.gt.bf16.partialorder %v59, 0
    %vm316 = vcmp.gt.bf16.partialorder %v60, 0
    %vm317 = vcmp.gt.bf16.partialorder %v61, 0
    %vm318 = vcmp.gt.bf16.partialorder %v62, 0
    %vm319 = vcmp.gt.bf16.partialorder %v63, 0
    %vm320 = vcmp.gt.bf16.partialorder %v64, 0
    %vm321 = vcmp.gt.bf16.partialorder %v65, 0
    %vm322 = vcmp.gt.bf16.partialorder %v66, 0
    %vm323 = vcmp.gt.bf16.partialorder %v67, 0
    %vm324 = vcmp.gt.bf16.partialorder %v68, 0
    %vm325 = vcmp.gt.bf16.partialorder %v69, 0
    %vm326 = vcmp.gt.bf16.partialorder %v70, 0
    %vm327 = vcmp.gt.bf16.partialorder %v71, 0
    %vm328 = vcmp.gt.bf16.partialorder %v72, 0
    %vm329 = vcmp.gt.bf16.partialorder %v73, 0
    %vm330 = vcmp.gt.bf16.partialorder %v74, 0
    %vm331 = vcmp.gt.bf16.partialorder %v75, 0
    %vm332 = vcmp.gt.bf16.partialorder %v76, 0
    %vm333 = vcmp.gt.bf16.partialorder %v77, 0
    %vm334 = vcmp.gt.bf16.partialorder %v78, 0
    %vm335 = vcmp.gt.bf16.partialorder %v79, 0
    %vm336 = vcmp.gt.bf16.partialorder %v80, 0
    %vm337 = vcmp.gt.bf16.partialorder %v81, 0
    %vm338 = vcmp.gt.bf16.partialorder %v82, 0
    %vm339 = vcmp.gt.bf16.partialorder %v83, 0
    %vm340 = vcmp.gt.bf16.partialorder %v84, 0
    %vm341 = vcmp.gt.bf16.partialorder %v85, 0
    %vm342 = vcmp.gt.bf16.partialorder %v86, 0
    %vm343 = vcmp.gt.bf16.partialorder %v87, 0
    %vm344 = vcmp.gt.bf16.partialorder %v88, 0
    %vm345 = vcmp.gt.bf16.partialorder %v89, 0
    %vm346 = vcmp.gt.bf16.partialorder %v90, 0
    %vm347 = vcmp.gt.bf16.partialorder %v91, 0
    %vm348 = vcmp.gt.bf16.partialorder %v92, 0
    %vm349 = vcmp.gt.bf16.partialorder %v93, 0
    %vm350 = vcmp.gt.bf16.partialorder %v94, 0
    %vm351 = vcmp.gt.bf16.partialorder %v95, 0
    %vm352 = vcmp.gt.bf16.partialorder %v96, 0
    %vm353 = vcmp.gt.bf16.partialorder %v97, 0
    %vm354 = vcmp.gt.bf16.partialorder %v98, 0
    %vm355 = vcmp.gt.bf16.partialorder %v99, 0
    %vm356 = vcmp.gt.bf16.partialorder %v100, 0
    %vm357 = vcmp.gt.bf16.partialorder %v101, 0
    %vm358 = vcmp.gt.bf16.partialorder %v102, 0
    %vm359 = vcmp.gt.bf16.partialorder %v103, 0
    %vm360 = vcmp.gt.bf16.partialorder %v104, 0
    %vm361 = vcmp.gt.bf16.partialorder %v105, 0
    %vm362 = vcmp.gt.bf16.partialorder %v106, 0
    %vm363 = vcmp.gt.bf16.partialorder %v107, 0
    %vm364 = vcmp.gt.bf16.partialorder %v108, 0
    %vm365 = vcmp.gt.bf16.partialorder %v109, 0
    %vm366 = vcmp.gt.bf16.partialorder %v110, 0
    %vm367 = vcmp.gt.bf16.partialorder %v111, 0
    %vm368 = vcmp.gt.bf16.partialorder %v112, 0
    %vm369 = vcmp.gt.bf16.partialorder %v113, 0
    %vm370 = vcmp.gt.bf16.partialorder %v114, 0
    %vm371 = vcmp.gt.bf16.partialorder %v115, 0
    %vm372 = vcmp.gt.bf16.partialorder %v116, 0
    %vm373 = vcmp.gt.bf16.partialorder %v117, 0
    %vm374 = vcmp.gt.bf16.partialorder %v118, 0
    %vm375 = vcmp.gt.bf16.partialorder %v119, 0
    %vm376 = vcmp.gt.bf16.partialorder %v120, 0
    %vm377 = vcmp.gt.bf16.partialorder %v121, 0
    %vm378 = vcmp.gt.bf16.partialorder %v122, 0
    %vm379 = vcmp.gt.bf16.partialorder %v123, 0
    %vm380 = vcmp.gt.bf16.partialorder %v124, 0
    %vm381 = vcmp.gt.bf16.partialorder %v125, 0
    %vm382 = vcmp.gt.bf16.partialorder %v126, 0
    %vm383 = vcmp.gt.bf16.partialorder %v127, 0
    %vm384 = vcmp.gt.bf16.partialorder %v128, 0
    %vm385 = vcmp.gt.bf16.partialorder %v129, 0
    %vm386 = vcmp.gt.bf16.partialorder %v130, 0
    %vm387 = vcmp.gt.bf16.partialorder %v131, 0
    %vm388 = vcmp.gt.bf16.partialorder %v132, 0
    %vm389 = vcmp.gt.bf16.partialorder %v133, 0
    %vm390 = vcmp.gt.bf16.partialorder %v134, 0
    %vm391 = vcmp.gt.bf16.partialorder %v135, 0
    %vm392 = vcmp.gt.bf16.partialorder %v136, 0
    %vm393 = vcmp.gt.bf16.partialorder %v137, 0
    %vm394 = vcmp.gt.bf16.partialorder %v138, 0
    %vm395 = vcmp.gt.bf16.partialorder %v139, 0
    %vm396 = vcmp.gt.bf16.partialorder %v140, 0
    %vm397 = vcmp.gt.bf16.partialorder %v141, 0
    %vm398 = vcmp.gt.bf16.partialorder %v142, 0
    %vm399 = vcmp.gt.bf16.partialorder %v143, 0
    %vm400 = vcmp.gt.bf16.partialorder %v144, 0
    %vm401 = vcmp.gt.bf16.partialorder %v145, 0
    %vm402 = vcmp.gt.bf16.partialorder %v146, 0
    %vm403 = vcmp.gt.bf16.partialorder %v147, 0
    %vm404 = vcmp.gt.bf16.partialorder %v148, 0
    %vm405 = vcmp.gt.bf16.partialorder %v149, 0
    %vm406 = vcmp.gt.bf16.partialorder %v150, 0
    %vm407 = vcmp.gt.bf16.partialorder %v151, 0
    %vm408 = vcmp.gt.bf16.partialorder %v152, 0
    %vm409 = vcmp.gt.bf16.partialorder %v153, 0
    %vm410 = vcmp.gt.bf16.partialorder %v154, 0
    %vm411 = vcmp.gt.bf16.partialorder %v155, 0
    %vm412 = vcmp.gt.bf16.partialorder %v156, 0
    %vm413 = vcmp.gt.bf16.partialorder %v157, 0
    %vm414 = vcmp.gt.bf16.partialorder %v158, 0
    %vm415 = vcmp.gt.bf16.partialorder %v159, 0
    %vm416 = vcmp.gt.bf16.partialorder %v160, 0
    %vm417 = vcmp.gt.bf16.partialorder %v161, 0
    %vm418 = vcmp.gt.bf16.partialorder %v162, 0
    %vm419 = vcmp.gt.bf16.partialorder %v163, 0
    %vm420 = vcmp.gt.bf16.partialorder %v164, 0
    %vm421 = vcmp.gt.bf16.partialorder %v165, 0
    %vm422 = vcmp.gt.bf16.partialorder %v166, 0
    %vm423 = vcmp.gt.bf16.partialorder %v167, 0
    %vm424 = vcmp.gt.bf16.partialorder %v168, 0
    %vm425 = vcmp.gt.bf16.partialorder %v169, 0
    %vm426 = vcmp.gt.bf16.partialorder %v170, 0
    %vm427 = vcmp.gt.bf16.partialorder %v171, 0
    %vm428 = vcmp.gt.bf16.partialorder %v172, 0
    %vm429 = vcmp.gt.bf16.partialorder %v173, 0
    %vm430 = vcmp.gt.bf16.partialorder %v174, 0
    %vm431 = vcmp.gt.bf16.partialorder %v175, 0
    %vm432 = vcmp.gt.bf16.partialorder %v176, 0
    %vm433 = vcmp.gt.bf16.partialorder %v177, 0
    %vm434 = vcmp.gt.bf16.partialorder %v178, 0
    %vm435 = vcmp.gt.bf16.partialorder %v179, 0
    %vm436 = vcmp.gt.bf16.partialorder %v180, 0
    %vm437 = vcmp.gt.bf16.partialorder %v181, 0
    %vm438 = vcmp.gt.bf16.partialorder %v182, 0
    %vm439 = vcmp.gt.bf16.partialorder %v183, 0
    %vm440 = vcmp.gt.bf16.partialorder %v184, 0
    %vm441 = vcmp.gt.bf16.partialorder %v185, 0
    %vm442 = vcmp.gt.bf16.partialorder %v186, 0
    %vm443 = vcmp.gt.bf16.partialorder %v187, 0
    %vm444 = vcmp.gt.bf16.partialorder %v188, 0
    %vm445 = vcmp.gt.bf16.partialorder %v189, 0
    %vm446 = vcmp.gt.bf16.partialorder %v190, 0
    %vm447 = vcmp.gt.bf16.partialorder %v191, 0
    %vm448 = vcmp.gt.bf16.partialorder %v192, 0
    %vm449 = vcmp.gt.bf16.partialorder %v193, 0
    %vm450 = vcmp.gt.bf16.partialorder %v194, 0
    %vm451 = vcmp.gt.bf16.partialorder %v195, 0
    %vm452 = vcmp.gt.bf16.partialorder %v196, 0
    %vm453 = vcmp.gt.bf16.partialorder %v197, 0
    %vm454 = vcmp.gt.bf16.partialorder %v198, 0
    %vm455 = vcmp.gt.bf16.partialorder %v199, 0
    %vm456 = vcmp.gt.bf16.partialorder %v200, 0
    %vm457 = vcmp.gt.bf16.partialorder %v201, 0
    %vm458 = vcmp.gt.bf16.partialorder %v202, 0
    %vm459 = vcmp.gt.bf16.partialorder %v203, 0
    %vm460 = vcmp.gt.bf16.partialorder %v204, 0
    %vm461 = vcmp.gt.bf16.partialorder %v205, 0
    %vm462 = vcmp.gt.bf16.partialorder %v206, 0
    %vm463 = vcmp.gt.bf16.partialorder %v207, 0
    %vm464 = vcmp.gt.bf16.partialorder %v208, 0
    %vm465 = vcmp.gt.bf16.partialorder %v209, 0
    %vm466 = vcmp.gt.bf16.partialorder %v210, 0
    %vm467 = vcmp.gt.bf16.partialorder %v211, 0
    %vm468 = vcmp.gt.bf16.partialorder %v212, 0
    %vm469 = vcmp.gt.bf16.partialorder %v213, 0
    %vm470 = vcmp.gt.bf16.partialorder %v214, 0
    %vm471 = vcmp.gt.bf16.partialorder %v215, 0
    %vm472 = vcmp.gt.bf16.partialorder %v216, 0
    %vm473 = vcmp.gt.bf16.partialorder %v217, 0
    %vm474 = vcmp.gt.bf16.partialorder %v218, 0
    %vm475 = vcmp.gt.bf16.partialorder %v219, 0
    %vm476 = vcmp.gt.bf16.partialorder %v220, 0
    %vm477 = vcmp.gt.bf16.partialorder %v221, 0
    %vm478 = vcmp.gt.bf16.partialorder %v222, 0
    %vm479 = vcmp.gt.bf16.partialorder %v223, 0
    %vm480 = vcmp.gt.bf16.partialorder %v224, 0
    %vm481 = vcmp.gt.bf16.partialorder %v225, 0
    %vm482 = vcmp.gt.bf16.partialorder %v226, 0
    %vm483 = vcmp.gt.bf16.partialorder %v227, 0
    %vm484 = vcmp.gt.bf16.partialorder %v228, 0
    %vm485 = vcmp.gt.bf16.partialorder %v229, 0
    %vm486 = vcmp.gt.bf16.partialorder %v230, 0
    %vm487 = vcmp.gt.bf16.partialorder %v231, 0
    %vm488 = vcmp.gt.bf16.partialorder %v232, 0
    %vm489 = vcmp.gt.bf16.partialorder %v233, 0
    %vm490 = vcmp.gt.bf16.partialorder %v234, 0
    %vm491 = vcmp.gt.bf16.partialorder %v235, 0
    %vm492 = vcmp.gt.bf16.partialorder %v236, 0
    %vm493 = vcmp.gt.bf16.partialorder %v237, 0
    %vm494 = vcmp.gt.bf16.partialorder %v238, 0
    %vm495 = vcmp.gt.bf16.partialorder %v239, 0
    %vm496 = vcmp.gt.bf16.partialorder %v240, 0
    %vm497 = vcmp.gt.bf16.partialorder %v241, 0
    %vm498 = vcmp.gt.bf16.partialorder %v242, 0
    %vm499 = vcmp.gt.bf16.partialorder %v243, 0
    %vm500 = vcmp.gt.bf16.partialorder %v244, 0
    %vm501 = vcmp.gt.bf16.partialorder %v245, 0
    %vm502 = vcmp.gt.bf16.partialorder %v246, 0
    %vm503 = vcmp.gt.bf16.partialorder %v247, 0
    %vm504 = vcmp.gt.bf16.partialorder %v248, 0
    %vm505 = vcmp.gt.bf16.partialorder %v249, 0
    %vm506 = vcmp.gt.bf16.partialorder %v250, 0
    %vm507 = vcmp.gt.bf16.partialorder %v251, 0
    %vm508 = vcmp.gt.bf16.partialorder %v252, 0
    %vm509 = vcmp.gt.bf16.partialorder %v253, 0
    %vm510 = vcmp.gt.bf16.partialorder %v254, 0
    %vm511 = vcmp.gt.bf16.partialorder %v255, 0
    %vm512 = vcmp.gt.bf16.partialorder %v256, 0
    %vm513 = vcmp.gt.bf16.partialorder %v257, 0
    %vm514 = vcmp.gt.bf16.partialorder %v258, 0
    %vm515 = vcmp.gt.bf16.partialorder %v259, 0
    %vm516 = vcmp.gt.bf16.partialorder %v260, 0
    %vm517 = vcmp.gt.bf16.partialorder %v261, 0
    %vm518 = vcmp.gt.bf16.partialorder %v262, 0
    %vm519 = vcmp.gt.bf16.partialorder %v263, 0
    %vm520 = vcmp.gt.bf16.partialorder %v264, 0
    %vm521 = vcmp.gt.bf16.partialorder %v265, 0
    %vm522 = vcmp.gt.bf16.partialorder %v266, 0
    %vm523 = vcmp.gt.bf16.partialorder %v267, 0
    %vm524 = vcmp.gt.bf16.partialorder %v268, 0
    %vm525 = vcmp.gt.bf16.partialorder %v269, 0
    %v526 = vmul.bf16 %v14, 1045249613
    %v527 = vmul.bf16 %v15, 1045249613
    %v528 = vmul.bf16 %v16, 1045249613
    %v529 = vmul.bf16 %v17, 1045249613
    %v530 = vmul.bf16 %v18, 1045249613
    %v531 = vmul.bf16 %v19, 1045249613
    %v532 = vmul.bf16 %v20, 1045249613
    %v533 = vmul.bf16 %v21, 1045249613
    %v534 = vmul.bf16 %v22, 1045249613
    %v535 = vmul.bf16 %v23, 1045249613
    %v536 = vmul.bf16 %v24, 1045249613
    %v537 = vmul.bf16 %v25, 1045249613
    %v538 = vmul.bf16 %v26, 1045249613
    %v539 = vmul.bf16 %v27, 1045249613
    %v540 = vmul.bf16 %v28, 1045249613
    %v541 = vmul.bf16 %v29, 1045249613
    %v542 = vmul.bf16 %v30, 1045249613
    %v543 = vmul.bf16 %v31, 1045249613
    %v544 = vmul.bf16 %v32, 1045249613
    %v545 = vmul.bf16 %v33, 1045249613
    %v546 = vmul.bf16 %v34, 1045249613
    %v547 = vmul.bf16 %v35, 1045249613
    %v548 = vmul.bf16 %v36, 1045249613
    %v549 = vmul.bf16 %v37, 1045249613
    %v550 = vmul.bf16 %v38, 1045249613
    %v551 = vmul.bf16 %v39, 1045249613
    %v552 = vmul.bf16 %v40, 1045249613
    %v553 = vmul.bf16 %v41, 1045249613
    %v554 = vmul.bf16 %v42, 1045249613
    %v555 = vmul.bf16 %v43, 1045249613
    %v556 = vmul.bf16 %v44, 1045249613
    %v557 = vmul.bf16 %v45, 1045249613
    %v558 = vmul.bf16 %v46, 1045249613
    %v559 = vmul.bf16 %v47, 1045249613
    %v560 = vmul.bf16 %v48, 1045249613
    %v561 = vmul.bf16 %v49, 1045249613
    %v562 = vmul.bf16 %v50, 1045249613
    %v563 = vmul.bf16 %v51, 1045249613
    %v564 = vmul.bf16 %v52, 1045249613
    %v565 = vmul.bf16 %v53, 1045249613
    %v566 = vmul.bf16 %v54, 1045249613
    %v567 = vmul.bf16 %v55, 1045249613
    %v568 = vmul.bf16 %v56, 1045249613
    %v569 = vmul.bf16 %v57, 1045249613
    %v570 = vmul.bf16 %v58, 1045249613
    %v571 = vmul.bf16 %v59, 1045249613
    %v572 = vmul.bf16 %v60, 1045249613
    %v573 = vmul.bf16 %v61, 1045249613
    %v574 = vmul.bf16 %v62, 1045249613
    %v575 = vmul.bf16 %v63, 1045249613
    %v576 = vmul.bf16 %v64, 1045249613
    %v577 = vmul.bf16 %v65, 1045249613
    %v578 = vmul.bf16 %v66, 1045249613
    %v579 = vmul.bf16 %v67, 1045249613
    %v580 = vmul.bf16 %v68, 1045249613
    %v581 = vmul.bf16 %v69, 1045249613
    %v582 = vmul.bf16 %v70, 1045249613
    %v583 = vmul.bf16 %v71, 1045249613
    %v584 = vmul.bf16 %v72, 1045249613
    %v585 = vmul.bf16 %v73, 1045249613
    %v586 = vmul.bf16 %v74, 1045249613
    %v587 = vmul.bf16 %v75, 1045249613
    %v588 = vmul.bf16 %v76, 1045249613
    %v589 = vmul.bf16 %v77, 1045249613
    %v590 = vmul.bf16 %v78, 1045249613
    %v591 = vmul.bf16 %v79, 1045249613
    %v592 = vmul.bf16 %v80, 1045249613
    %v593 = vmul.bf16 %v81, 1045249613
    %v594 = vmul.bf16 %v82, 1045249613
    %v595 = vmul.bf16 %v83, 1045249613
    %v596 = vmul.bf16 %v84, 1045249613
    %v597 = vmul.bf16 %v85, 1045249613
    %v598 = vmul.bf16 %v86, 1045249613
    %v599 = vmul.bf16 %v87, 1045249613
    %v600 = vmul.bf16 %v88, 1045249613
    %v601 = vmul.bf16 %v89, 1045249613
    %v602 = vmul.bf16 %v90, 1045249613
    %v603 = vmul.bf16 %v91, 1045249613
    %v604 = vmul.bf16 %v92, 1045249613
    %v605 = vmul.bf16 %v93, 1045249613
    %v606 = vmul.bf16 %v94, 1045249613
    %v607 = vmul.bf16 %v95, 1045249613
    %v608 = vmul.bf16 %v96, 1045249613
    %v609 = vmul.bf16 %v97, 1045249613
    %v610 = vmul.bf16 %v98, 1045249613
    %v611 = vmul.bf16 %v99, 1045249613
    %v612 = vmul.bf16 %v100, 1045249613
    %v613 = vmul.bf16 %v101, 1045249613
    %v614 = vmul.bf16 %v102, 1045249613
    %v615 = vmul.bf16 %v103, 1045249613
    %v616 = vmul.bf16 %v104, 1045249613
    %v617 = vmul.bf16 %v105, 1045249613
    %v618 = vmul.bf16 %v106, 1045249613
    %v619 = vmul.bf16 %v107, 1045249613
    %v620 = vmul.bf16 %v108, 1045249613
    %v621 = vmul.bf16 %v109, 1045249613
    %v622 = vmul.bf16 %v110, 1045249613
    %v623 = vmul.bf16 %v111, 1045249613
    %v624 = vmul.bf16 %v112, 1045249613
    %v625 = vmul.bf16 %v113, 1045249613
    %v626 = vmul.bf16 %v114, 1045249613
    %v627 = vmul.bf16 %v115, 1045249613
    %v628 = vmul.bf16 %v116, 1045249613
    %v629 = vmul.bf16 %v117, 1045249613
    %v630 = vmul.bf16 %v118, 1045249613
    %v631 = vmul.bf16 %v119, 1045249613
    %v632 = vmul.bf16 %v120, 1045249613
    %v633 = vmul.bf16 %v121, 1045249613
    %v634 = vmul.bf16 %v122, 1045249613
    %v635 = vmul.bf16 %v123, 1045249613
    %v636 = vmul.bf16 %v124, 1045249613
    %v637 = vmul.bf16 %v125, 1045249613
    %v638 = vmul.bf16 %v126, 1045249613
    %v639 = vmul.bf16 %v127, 1045249613
    %v640 = vmul.bf16 %v128, 1045249613
    %v641 = vmul.bf16 %v129, 1045249613
    %v642 = vmul.bf16 %v130, 1045249613
    %v643 = vmul.bf16 %v131, 1045249613
    %v644 = vmul.bf16 %v132, 1045249613
    %v645 = vmul.bf16 %v133, 1045249613
    %v646 = vmul.bf16 %v134, 1045249613
    %v647 = vmul.bf16 %v135, 1045249613
    %v648 = vmul.bf16 %v136, 1045249613
    %v649 = vmul.bf16 %v137, 1045249613
    %v650 = vmul.bf16 %v138, 1045249613
    %v651 = vmul.bf16 %v139, 1045249613
    %v652 = vmul.bf16 %v140, 1045249613
    %v653 = vmul.bf16 %v141, 1045249613
    %v654 = vmul.bf16 %v142, 1045249613
    %v655 = vmul.bf16 %v143, 1045249613
    %v656 = vmul.bf16 %v144, 1045249613
    %v657 = vmul.bf16 %v145, 1045249613
    %v658 = vmul.bf16 %v146, 1045249613
    %v659 = vmul.bf16 %v147, 1045249613
    %v660 = vmul.bf16 %v148, 1045249613
    %v661 = vmul.bf16 %v149, 1045249613
    %v662 = vmul.bf16 %v150, 1045249613
    %v663 = vmul.bf16 %v151, 1045249613
    %v664 = vmul.bf16 %v152, 1045249613
    %v665 = vmul.bf16 %v153, 1045249613
    %v666 = vmul.bf16 %v154, 1045249613
    %v667 = vmul.bf16 %v155, 1045249613
    %v668 = vmul.bf16 %v156, 1045249613
    %v669 = vmul.bf16 %v157, 1045249613
    %v670 = vmul.bf16 %v158, 1045249613
    %v671 = vmul.bf16 %v159, 1045249613
    %v672 = vmul.bf16 %v160, 1045249613
    %v673 = vmul.bf16 %v161, 1045249613
    %v674 = vmul.bf16 %v162, 1045249613
    %v675 = vmul.bf16 %v163, 1045249613
    %v676 = vmul.bf16 %v164, 1045249613
    %v677 = vmul.bf16 %v165, 1045249613
    %v678 = vmul.bf16 %v166, 1045249613
    %v679 = vmul.bf16 %v167, 1045249613
    %v680 = vmul.bf16 %v168, 1045249613
    %v681 = vmul.bf16 %v169, 1045249613
    %v682 = vmul.bf16 %v170, 1045249613
    %v683 = vmul.bf16 %v171, 1045249613
    %v684 = vmul.bf16 %v172, 1045249613
    %v685 = vmul.bf16 %v173, 1045249613
    %v686 = vmul.bf16 %v174, 1045249613
    %v687 = vmul.bf16 %v175, 1045249613
    %v688 = vmul.bf16 %v176, 1045249613
    %v689 = vmul.bf16 %v177, 1045249613
    %v690 = vmul.bf16 %v178, 1045249613
    %v691 = vmul.bf16 %v179, 1045249613
    %v692 = vmul.bf16 %v180, 1045249613
    %v693 = vmul.bf16 %v181, 1045249613
    %v694 = vmul.bf16 %v182, 1045249613
    %v695 = vmul.bf16 %v183, 1045249613
    %v696 = vmul.bf16 %v184, 1045249613
    %v697 = vmul.bf16 %v185, 1045249613
    %v698 = vmul.bf16 %v186, 1045249613
    %v699 = vmul.bf16 %v187, 1045249613
    %v700 = vmul.bf16 %v188, 1045249613
    %v701 = vmul.bf16 %v189, 1045249613
    %v702 = vmul.bf16 %v190, 1045249613
    %v703 = vmul.bf16 %v191, 1045249613
    %v704 = vmul.bf16 %v192, 1045249613
    %v705 = vmul.bf16 %v193, 1045249613
    %v706 = vmul.bf16 %v194, 1045249613
    %v707 = vmul.bf16 %v195, 1045249613
    %v708 = vmul.bf16 %v196, 1045249613
    %v709 = vmul.bf16 %v197, 1045249613
    %v710 = vmul.bf16 %v198, 1045249613
    %v711 = vmul.bf16 %v199, 1045249613
    %v712 = vmul.bf16 %v200, 1045249613
    %v713 = vmul.bf16 %v201, 1045249613
    %v714 = vmul.bf16 %v202, 1045249613
    %v715 = vmul.bf16 %v203, 1045249613
    %v716 = vmul.bf16 %v204, 1045249613
    %v717 = vmul.bf16 %v205, 1045249613
    %v718 = vmul.bf16 %v206, 1045249613
    %v719 = vmul.bf16 %v207, 1045249613
    %v720 = vmul.bf16 %v208, 1045249613
    %v721 = vmul.bf16 %v209, 1045249613
    %v722 = vmul.bf16 %v210, 1045249613
    %v723 = vmul.bf16 %v211, 1045249613
    %v724 = vmul.bf16 %v212, 1045249613
    %v725 = vmul.bf16 %v213, 1045249613
    %v726 = vmul.bf16 %v214, 1045249613
    %v727 = vmul.bf16 %v215, 1045249613
    %v728 = vmul.bf16 %v216, 1045249613
    %v729 = vmul.bf16 %v217, 1045249613
    %v730 = vmul.bf16 %v218, 1045249613
    %v731 = vmul.bf16 %v219, 1045249613
    %v732 = vmul.bf16 %v220, 1045249613
    %v733 = vmul.bf16 %v221, 1045249613
    %v734 = vmul.bf16 %v222, 1045249613
    %v735 = vmul.bf16 %v223, 1045249613
    %v736 = vmul.bf16 %v224, 1045249613
    %v737 = vmul.bf16 %v225, 1045249613
    %v738 = vmul.bf16 %v226, 1045249613
    %v739 = vmul.bf16 %v227, 1045249613
    %v740 = vmul.bf16 %v228, 1045249613
    %v741 = vmul.bf16 %v229, 1045249613
    %v742 = vmul.bf16 %v230, 1045249613
    %v743 = vmul.bf16 %v231, 1045249613
    %v744 = vmul.bf16 %v232, 1045249613
    %v745 = vmul.bf16 %v233, 1045249613
    %v746 = vmul.bf16 %v234, 1045249613
    %v747 = vmul.bf16 %v235, 1045249613
    %v748 = vmul.bf16 %v236, 1045249613
    %v749 = vmul.bf16 %v237, 1045249613
    %v750 = vmul.bf16 %v238, 1045249613
    %v751 = vmul.bf16 %v239, 1045249613
    %v752 = vmul.bf16 %v240, 1045249613
    %v753 = vmul.bf16 %v241, 1045249613
    %v754 = vmul.bf16 %v242, 1045249613
    %v755 = vmul.bf16 %v243, 1045249613
    %v756 = vmul.bf16 %v244, 1045249613
    %v757 = vmul.bf16 %v245, 1045249613
    %v758 = vmul.bf16 %v246, 1045249613
    %v759 = vmul.bf16 %v247, 1045249613
    %v760 = vmul.bf16 %v248, 1045249613
    %v761 = vmul.bf16 %v249, 1045249613
    %v762 = vmul.bf16 %v250, 1045249613
    %v763 = vmul.bf16 %v251, 1045249613
    %v764 = vmul.bf16 %v252, 1045249613
    %v765 = vmul.bf16 %v253, 1045249613
    %v766 = vmul.bf16 %v254, 1045249613
    %v767 = vmul.bf16 %v255, 1045249613
    %v768 = vmul.bf16 %v256, 1045249613
    %v769 = vmul.bf16 %v257, 1045249613
    %v770 = vmul.bf16 %v258, 1045249613
    %v771 = vmul.bf16 %v259, 1045249613
    %v772 = vmul.bf16 %v260, 1045249613
    %v773 = vmul.bf16 %v261, 1045249613
    %v774 = vmul.bf16 %v262, 1045249613
    %v775 = vmul.bf16 %v263, 1045249613
    %v776 = vmul.bf16 %v264, 1045249613
    %v777 = vmul.bf16 %v265, 1045249613
    %v778 = vmul.bf16 %v266, 1045249613
    %v779 = vmul.bf16 %v267, 1045249613
    %v780 = vmul.bf16 %v268, 1045249613
    %v781 = vmul.bf16 %v269, 1045249613
    %v782 = vsel %vm270, %v14, %v526
    %v783 = vsel %vm271, %v15, %v527
    %v784 = vsel %vm272, %v16, %v528
    %v785 = vsel %vm273, %v17, %v529
    %v786 = vsel %vm274, %v18, %v530
    %v787 = vsel %vm275, %v19, %v531
    %v788 = vsel %vm276, %v20, %v532
    %v789 = vsel %vm277, %v21, %v533
    %v790 = vsel %vm278, %v22, %v534
    %v791 = vsel %vm279, %v23, %v535
    %v792 = vsel %vm280, %v24, %v536
    %v793 = vsel %vm281, %v25, %v537
    %v794 = vsel %vm282, %v26, %v538
    %v795 = vsel %vm283, %v27, %v539
    %v796 = vsel %vm284, %v28, %v540
    %v797 = vsel %vm285, %v29, %v541
    %v798 = vsel %vm286, %v30, %v542
    %v799 = vsel %vm287, %v31, %v543
    %v800 = vsel %vm288, %v32, %v544
    %v801 = vsel %vm289, %v33, %v545
    %v802 = vsel %vm290, %v34, %v546
    %v803 = vsel %vm291, %v35, %v547
    %v804 = vsel %vm292, %v36, %v548
    %v805 = vsel %vm293, %v37, %v549
    %v806 = vsel %vm294, %v38, %v550
    %v807 = vsel %vm295, %v39, %v551
    %v808 = vsel %vm296, %v40, %v552
    %v809 = vsel %vm297, %v41, %v553
    %v810 = vsel %vm298, %v42, %v554
    %v811 = vsel %vm299, %v43, %v555
    %v812 = vsel %vm300, %v44, %v556
    %v813 = vsel %vm301, %v45, %v557
    %v814 = vsel %vm302, %v46, %v558
    %v815 = vsel %vm303, %v47, %v559
    %v816 = vsel %vm304, %v48, %v560
    %v817 = vsel %vm305, %v49, %v561
    %v818 = vsel %vm306, %v50, %v562
    %v819 = vsel %vm307, %v51, %v563
    %v820 = vsel %vm308, %v52, %v564
    %v821 = vsel %vm309, %v53, %v565
    %v822 = vsel %vm310, %v54, %v566
    %v823 = vsel %vm311, %v55, %v567
    %v824 = vsel %vm312, %v56, %v568
    %v825 = vsel %vm313, %v57, %v569
    %v826 = vsel %vm314, %v58, %v570
    %v827 = vsel %vm315, %v59, %v571
    %v828 = vsel %vm316, %v60, %v572
    %v829 = vsel %vm317, %v61, %v573
    %v830 = vsel %vm318, %v62, %v574
    %v831 = vsel %vm319, %v63, %v575
    %v832 = vsel %vm320, %v64, %v576
    %v833 = vsel %vm321, %v65, %v577
    %v834 = vsel %vm322, %v66, %v578
    %v835 = vsel %vm323, %v67, %v579
    %v836 = vsel %vm324, %v68, %v580
    %v837 = vsel %vm325, %v69, %v581
    %v838 = vsel %vm326, %v70, %v582
    %v839 = vsel %vm327, %v71, %v583
    %v840 = vsel %vm328, %v72, %v584
    %v841 = vsel %vm329, %v73, %v585
    %v842 = vsel %vm330, %v74, %v586
    %v843 = vsel %vm331, %v75, %v587
    %v844 = vsel %vm332, %v76, %v588
    %v845 = vsel %vm333, %v77, %v589
    %v846 = vsel %vm334, %v78, %v590
    %v847 = vsel %vm335, %v79, %v591
    %v848 = vsel %vm336, %v80, %v592
    %v849 = vsel %vm337, %v81, %v593
    %v850 = vsel %vm338, %v82, %v594
    %v851 = vsel %vm339, %v83, %v595
    %v852 = vsel %vm340, %v84, %v596
    %v853 = vsel %vm341, %v85, %v597
    %v854 = vsel %vm342, %v86, %v598
    %v855 = vsel %vm343, %v87, %v599
    %v856 = vsel %vm344, %v88, %v600
    %v857 = vsel %vm345, %v89, %v601
    %v858 = vsel %vm346, %v90, %v602
    %v859 = vsel %vm347, %v91, %v603
    %v860 = vsel %vm348, %v92, %v604
    %v861 = vsel %vm349, %v93, %v605
    %v862 = vsel %vm350, %v94, %v606
    %v863 = vsel %vm351, %v95, %v607
    %v864 = vsel %vm352, %v96, %v608
    %v865 = vsel %vm353, %v97, %v609
    %v866 = vsel %vm354, %v98, %v610
    %v867 = vsel %vm355, %v99, %v611
    %v868 = vsel %vm356, %v100, %v612
    %v869 = vsel %vm357, %v101, %v613
    %v870 = vsel %vm358, %v102, %v614
    %v871 = vsel %vm359, %v103, %v615
    %v872 = vsel %vm360, %v104, %v616
    %v873 = vsel %vm361, %v105, %v617
    %v874 = vsel %vm362, %v106, %v618
    %v875 = vsel %vm363, %v107, %v619
    %v876 = vsel %vm364, %v108, %v620
    %v877 = vsel %vm365, %v109, %v621
    %v878 = vsel %vm366, %v110, %v622
    %v879 = vsel %vm367, %v111, %v623
    %v880 = vsel %vm368, %v112, %v624
    %v881 = vsel %vm369, %v113, %v625
    %v882 = vsel %vm370, %v114, %v626
    %v883 = vsel %vm371, %v115, %v627
    %v884 = vsel %vm372, %v116, %v628
    %v885 = vsel %vm373, %v117, %v629
    %v886 = vsel %vm374, %v118, %v630
    %v887 = vsel %vm375, %v119, %v631
    %v888 = vsel %vm376, %v120, %v632
    %v889 = vsel %vm377, %v121, %v633
    %v890 = vsel %vm378, %v122, %v634
    %v891 = vsel %vm379, %v123, %v635
    %v892 = vsel %vm380, %v124, %v636
    %v893 = vsel %vm381, %v125, %v637
    %v894 = vsel %vm382, %v126, %v638
    %v895 = vsel %vm383, %v127, %v639
    %v896 = vsel %vm384, %v128, %v640
    %v897 = vsel %vm385, %v129, %v641
    %v898 = vsel %vm386, %v130, %v642
    %v899 = vsel %vm387, %v131, %v643
    %v900 = vsel %vm388, %v132, %v644
    %v901 = vsel %vm389, %v133, %v645
    %v902 = vsel %vm390, %v134, %v646
    %v903 = vsel %vm391, %v135, %v647
    %v904 = vsel %vm392, %v136, %v648
    %v905 = vsel %vm393, %v137, %v649
    %v906 = vsel %vm394, %v138, %v650
    %v907 = vsel %vm395, %v139, %v651
    %v908 = vsel %vm396, %v140, %v652
    %v909 = vsel %vm397, %v141, %v653
    %v910 = vsel %vm398, %v142, %v654
    %v911 = vsel %vm399, %v143, %v655
    %v912 = vsel %vm400, %v144, %v656
    %v913 = vsel %vm401, %v145, %v657
    %v914 = vsel %vm402, %v146, %v658
    %v915 = vsel %vm403, %v147, %v659
    %v916 = vsel %vm404, %v148, %v660
    %v917 = vsel %vm405, %v149, %v661
    %v918 = vsel %vm406, %v150, %v662
    %v919 = vsel %vm407, %v151, %v663
    %v920 = vsel %vm408, %v152, %v664
    %v921 = vsel %vm409, %v153, %v665
    %v922 = vsel %vm410, %v154, %v666
    %v923 = vsel %vm411, %v155, %v667
    %v924 = vsel %vm412, %v156, %v668
    %v925 = vsel %vm413, %v157, %v669
    %v926 = vsel %vm414, %v158, %v670
    %v927 = vsel %vm415, %v159, %v671
    %v928 = vsel %vm416, %v160, %v672
    %v929 = vsel %vm417, %v161, %v673
    %v930 = vsel %vm418, %v162, %v674
    %v931 = vsel %vm419, %v163, %v675
    %v932 = vsel %vm420, %v164, %v676
    %v933 = vsel %vm421, %v165, %v677
    %v934 = vsel %vm422, %v166, %v678
    %v935 = vsel %vm423, %v167, %v679
    %v936 = vsel %vm424, %v168, %v680
    %v937 = vsel %vm425, %v169, %v681
    %v938 = vsel %vm426, %v170, %v682
    %v939 = vsel %vm427, %v171, %v683
    %v940 = vsel %vm428, %v172, %v684
    %v941 = vsel %vm429, %v173, %v685
    %v942 = vsel %vm430, %v174, %v686
    %v943 = vsel %vm431, %v175, %v687
    %v944 = vsel %vm432, %v176, %v688
    %v945 = vsel %vm433, %v177, %v689
    %v946 = vsel %vm434, %v178, %v690
    %v947 = vsel %vm435, %v179, %v691
    %v948 = vsel %vm436, %v180, %v692
    %v949 = vsel %vm437, %v181, %v693
    %v950 = vsel %vm438, %v182, %v694
    %v951 = vsel %vm439, %v183, %v695
    %v952 = vsel %vm440, %v184, %v696
    %v953 = vsel %vm441, %v185, %v697
    %v954 = vsel %vm442, %v186, %v698
    %v955 = vsel %vm443, %v187, %v699
    %v956 = vsel %vm444, %v188, %v700
    %v957 = vsel %vm445, %v189, %v701
    %v958 = vsel %vm446, %v190, %v702
    %v959 = vsel %vm447, %v191, %v703
    %v960 = vsel %vm448, %v192, %v704
    %v961 = vsel %vm449, %v193, %v705
    %v962 = vsel %vm450, %v194, %v706
    %v963 = vsel %vm451, %v195, %v707
    %v964 = vsel %vm452, %v196, %v708
    %v965 = vsel %vm453, %v197, %v709
    %v966 = vsel %vm454, %v198, %v710
    %v967 = vsel %vm455, %v199, %v711
    %v968 = vsel %vm456, %v200, %v712
    %v969 = vsel %vm457, %v201, %v713
    %v970 = vsel %vm458, %v202, %v714
    %v971 = vsel %vm459, %v203, %v715
    %v972 = vsel %vm460, %v204, %v716
    %v973 = vsel %vm461, %v205, %v717
    %v974 = vsel %vm462, %v206, %v718
    %v975 = vsel %vm463, %v207, %v719
    %v976 = vsel %vm464, %v208, %v720
    %v977 = vsel %vm465, %v209, %v721
    %v978 = vsel %vm466, %v210, %v722
    %v979 = vsel %vm467, %v211, %v723
    %v980 = vsel %vm468, %v212, %v724
    %v981 = vsel %vm469, %v213, %v725
    %v982 = vsel %vm470, %v214, %v726
    %v983 = vsel %vm471, %v215, %v727
    %v984 = vsel %vm472, %v216, %v728
    %v985 = vsel %vm473, %v217, %v729
    %v986 = vsel %vm474, %v218, %v730
    %v987 = vsel %vm475, %v219, %v731
    %v988 = vsel %vm476, %v220, %v732
    %v989 = vsel %vm477, %v221, %v733
    %v990 = vsel %vm478, %v222, %v734
    %v991 = vsel %vm479, %v223, %v735
    %v992 = vsel %vm480, %v224, %v736
    %v993 = vsel %vm481, %v225, %v737
    %v994 = vsel %vm482, %v226, %v738
    %v995 = vsel %vm483, %v227, %v739
    %v996 = vsel %vm484, %v228, %v740
    %v997 = vsel %vm485, %v229, %v741
    %v998 = vsel %vm486, %v230, %v742
    %v999 = vsel %vm487, %v231, %v743
    %v1000 = vsel %vm488, %v232, %v744
    %v1001 = vsel %vm489, %v233, %v745
    %v1002 = vsel %vm490, %v234, %v746
    %v1003 = vsel %vm491, %v235, %v747
    %v1004 = vsel %vm492, %v236, %v748
    %v1005 = vsel %vm493, %v237, %v749
    %v1006 = vsel %vm494, %v238, %v750
    %v1007 = vsel %vm495, %v239, %v751
    %v1008 = vsel %vm496, %v240, %v752
    %v1009 = vsel %vm497, %v241, %v753
    %v1010 = vsel %vm498, %v242, %v754
    %v1011 = vsel %vm499, %v243, %v755
    %v1012 = vsel %vm500, %v244, %v756
    %v1013 = vsel %vm501, %v245, %v757
    %v1014 = vsel %vm502, %v246, %v758
    %v1015 = vsel %vm503, %v247, %v759
    %v1016 = vsel %vm504, %v248, %v760
    %v1017 = vsel %vm505, %v249, %v761
    %v1018 = vsel %vm506, %v250, %v762
    %v1019 = vsel %vm507, %v251, %v763
    %v1020 = vsel %vm508, %v252, %v764
    %v1021 = vsel %vm509, %v253, %v765
    %v1022 = vsel %vm510, %v254, %v766
    %v1023 = vsel %vm511, %v255, %v767
    %v1024 = vsel %vm512, %v256, %v768
    %v1025 = vsel %vm513, %v257, %v769
    %v1026 = vsel %vm514, %v258, %v770
    %v1027 = vsel %vm515, %v259, %v771
    %v1028 = vsel %vm516, %v260, %v772
    %v1029 = vsel %vm517, %v261, %v773
    %v1030 = vsel %vm518, %v262, %v774
    %v1031 = vsel %vm519, %v263, %v775
    %v1032 = vsel %vm520, %v264, %v776
    %v1033 = vsel %vm521, %v265, %v777
    %v1034 = vsel %vm522, %v266, %v778
    %v1035 = vsel %vm523, %v267, %v779
    %v1036 = vsel %vm524, %v268, %v780
    %v1037 = vsel %vm525, %v269, %v781
    %v1038 = vld [vmem:[%s0] sm:$0xff]
    %v1039 = vld [vmem:[%s0 + $0x8] sm:$0xff]
    %v1042 = vcombine.high %v1038, %v1038
    %v1044 = vunpack.c.l.s4 1966171168
    %v1045 = vunpack.c.0.s8 %v1044
    %v1046 = vlaneseq
    %v1047 = vshrl.u32 %v1046, 7
    %v1048 = vsub.s32 %v1045, %v1047
    %v1049 = vrot.slane %v1038, %v1048
    %v1051 = vunpack.c.l.s4 1966171168
    %v1052 = vunpack.c.0.s8 %v1051
    %v1053 = vlaneseq
    %v1054 = vshrl.u32 %v1053, 7
    %v1055 = vsub.s32 %v1052, %v1054
    %v1056 = vrot.slane %v1042, %v1055
    %v1057 = vcombine.high %v1049, %v1049
    %v1058 = vcombine.high %v1056, %v1056
    %v1060 = vunpack.c.l.s4 1966171168
    %v1061 = vunpack.c.0.s8 %v1060
    %v1062 = vlaneseq
    %v1063 = vshrl.u32 %v1062, 7
    %v1064 = vsub.s32 %v1061, %v1063
    %v1065 = vrot.slane %v1049, %v1064
    %v1067 = vunpack.c.l.s4 1966171168
    %v1068 = vunpack.c.0.s8 %v1067
    %v1069 = vlaneseq
    %v1070 = vshrl.u32 %v1069, 7
    %v1071 = vsub.s32 %v1068, %v1070
    %v1072 = vrot.slane %v1056, %v1071
    %v1074 = vunpack.c.l.s4 1966171168
    %v1075 = vunpack.c.0.s8 %v1074
    %v1076 = vlaneseq
    %v1077 = vshrl.u32 %v1076, 7
    %v1078 = vsub.s32 %v1075, %v1077
    %v1079 = vrot.slane %v1057, %v1078
    %v1081 = vunpack.c.l.s4 1966171168
    %v1082 = vunpack.c.0.s8 %v1081
    %v1083 = vlaneseq
    %v1084 = vshrl.u32 %v1083, 7
    %v1085 = vsub.s32 %v1082, %v1084
    %v1086 = vrot.slane %v1058, %v1085
    %v1087 = vcombine.high %v1065, %v1065
    %v1088 = vcombine.high %v1072, %v1072
    %v1089 = vcombine.high %v1079, %v1079
    %v1090 = vcombine.high %v1086, %v1086
    %v1091 = vcombine.high %v1039, %v1039
    %v1093 = vunpack.c.l.s4 1966171168
    %v1094 = vunpack.c.0.s8 %v1093
    %v1095 = vlaneseq
    %v1096 = vshrl.u32 %v1095, 7
    %v1097 = vsub.s32 %v1094, %v1096
    %v1098 = vrot.slane %v1039, %v1097
    %v1100 = vunpack.c.l.s4 1966171168
    %v1101 = vunpack.c.0.s8 %v1100
    %v1102 = vlaneseq
    %v1103 = vshrl.u32 %v1102, 7
    %v1104 = vsub.s32 %v1101, %v1103
    %v1105 = vrot.slane %v1091, %v1104
    %v1106 = vcombine.high %v1098, %v1098
    %v1107 = vcombine.high %v1105, %v1105
    %v1109 = vunpack.c.l.s4 1966171168
    %v1110 = vunpack.c.0.s8 %v1109
    %v1111 = vlaneseq
    %v1112 = vshrl.u32 %v1111, 7
    %v1113 = vsub.s32 %v1110, %v1112
    %v1114 = vrot.slane %v1098, %v1113
    %v1116 = vunpack.c.l.s4 1966171168
    %v1117 = vunpack.c.0.s8 %v1116
    %v1118 = vlaneseq
    %v1119 = vshrl.u32 %v1118, 7
    %v1120 = vsub.s32 %v1117, %v1119
    %v1121 = vrot.slane %v1105, %v1120
    %v1123 = vunpack.c.l.s4 1966171168
    %v1124 = vunpack.c.0.s8 %v1123
    %v1125 = vlaneseq
    %v1126 = vshrl.u32 %v1125, 7
    %v1127 = vsub.s32 %v1124, %v1126
    %v1128 = vrot.slane %v1106, %v1127
    %v1130 = vunpack.c.l.s4 1966171168
    %v1131 = vunpack.c.0.s8 %v1130
    %v1132 = vlaneseq
    %v1133 = vshrl.u32 %v1132, 7
    %v1134 = vsub.s32 %v1131, %v1133
    %v1135 = vrot.slane %v1107, %v1134
    %v1136 = vcombine.high %v1114, %v1114
    %v1137 = vcombine.high %v1121, %v1121
    %v1138 = vcombine.high %v1128, %v1128
    %v1139 = vcombine.high %v1135, %v1135
    %v1412 = vunpack.c.l.b16 %v782
    %v1413 = vunpack.c.l.b16 %v783
    %v1414 = vunpack.c.l.b16 %v784
    %v1415 = vunpack.c.l.b16 %v785
    %v1416 = vunpack.c.l.b16 %v786
    %v1417 = vunpack.c.l.b16 %v787
    %v1418 = vunpack.c.l.b16 %v788
    %v1419 = vunpack.c.l.b16 %v789
    %v1420 = vunpack.c.l.b16 %v790
    %v1421 = vunpack.c.l.b16 %v791
    %v1422 = vunpack.c.l.b16 %v792
    %v1423 = vunpack.c.l.b16 %v793
    %v1424 = vunpack.c.l.b16 %v794
    %v1425 = vunpack.c.l.b16 %v795
    %v1426 = vunpack.c.l.b16 %v796
    %v1427 = vunpack.c.l.b16 %v797
    %v1428 = vunpack.c.l.b16 %v798
    %v1429 = vunpack.c.l.b16 %v799
    %v1430 = vunpack.c.l.b16 %v800
    %v1431 = vunpack.c.l.b16 %v801
    %v1432 = vunpack.c.l.b16 %v802
    %v1433 = vunpack.c.l.b16 %v803
    %v1434 = vunpack.c.l.b16 %v804
    %v1435 = vunpack.c.l.b16 %v805
    %v1436 = vunpack.c.l.b16 %v806
    %v1437 = vunpack.c.l.b16 %v807
    %v1438 = vunpack.c.l.b16 %v808
    %v1439 = vunpack.c.l.b16 %v809
    %v1440 = vunpack.c.l.b16 %v810
    %v1441 = vunpack.c.l.b16 %v811
    %v1442 = vunpack.c.l.b16 %v812
    %v1443 = vunpack.c.l.b16 %v813
    %v1444 = vunpack.c.l.b16 %v814
    %v1445 = vunpack.c.l.b16 %v815
    %v1446 = vunpack.c.l.b16 %v816
    %v1447 = vunpack.c.l.b16 %v817
    %v1448 = vunpack.c.l.b16 %v818
    %v1449 = vunpack.c.l.b16 %v819
    %v1450 = vunpack.c.l.b16 %v820
    %v1451 = vunpack.c.l.b16 %v821
    %v1452 = vunpack.c.l.b16 %v822
    %v1453 = vunpack.c.l.b16 %v823
    %v1454 = vunpack.c.l.b16 %v824
    %v1455 = vunpack.c.l.b16 %v825
    %v1456 = vunpack.c.l.b16 %v826
    %v1457 = vunpack.c.l.b16 %v827
    %v1458 = vunpack.c.l.b16 %v828
    %v1459 = vunpack.c.l.b16 %v829
    %v1460 = vunpack.c.l.b16 %v830
    %v1461 = vunpack.c.l.b16 %v831
    %v1462 = vunpack.c.l.b16 %v832
    %v1463 = vunpack.c.l.b16 %v833
    %v1464 = vunpack.c.l.b16 %v834
    %v1465 = vunpack.c.l.b16 %v835
    %v1466 = vunpack.c.l.b16 %v836
    %v1467 = vunpack.c.l.b16 %v837
    %v1468 = vunpack.c.l.b16 %v838
    %v1469 = vunpack.c.l.b16 %v839
    %v1470 = vunpack.c.l.b16 %v840
    %v1471 = vunpack.c.l.b16 %v841
    %v1472 = vunpack.c.l.b16 %v842
    %v1473 = vunpack.c.l.b16 %v843
    %v1474 = vunpack.c.l.b16 %v844
    %v1475 = vunpack.c.l.b16 %v845
    %v1476 = vunpack.c.l.b16 %v846
    %v1477 = vunpack.c.l.b16 %v847
    %v1478 = vunpack.c.l.b16 %v848
    %v1479 = vunpack.c.l.b16 %v849
    %v1480 = vunpack.c.l.b16 %v850
    %v1481 = vunpack.c.l.b16 %v851
    %v1482 = vunpack.c.l.b16 %v852
    %v1483 = vunpack.c.l.b16 %v853
    %v1484 = vunpack.c.l.b16 %v854
    %v1485 = vunpack.c.l.b16 %v855
    %v1486 = vunpack.c.l.b16 %v856
    %v1487 = vunpack.c.l.b16 %v857
    %v1488 = vunpack.c.l.b16 %v858
    %v1489 = vunpack.c.l.b16 %v859
    %v1490 = vunpack.c.l.b16 %v860
    %v1491 = vunpack.c.l.b16 %v861
    %v1492 = vunpack.c.l.b16 %v862
    %v1493 = vunpack.c.l.b16 %v863
    %v1494 = vunpack.c.l.b16 %v864
    %v1495 = vunpack.c.l.b16 %v865
    %v1496 = vunpack.c.l.b16 %v866
    %v1497 = vunpack.c.l.b16 %v867
    %v1498 = vunpack.c.l.b16 %v868
    %v1499 = vunpack.c.l.b16 %v869
    %v1500 = vunpack.c.l.b16 %v870
    %v1501 = vunpack.c.l.b16 %v871
    %v1502 = vunpack.c.l.b16 %v872
    %v1503 = vunpack.c.l.b16 %v873
    %v1504 = vunpack.c.l.b16 %v874
    %v1505 = vunpack.c.l.b16 %v875
    %v1506 = vunpack.c.l.b16 %v876
    %v1507 = vunpack.c.l.b16 %v877
    %v1508 = vunpack.c.l.b16 %v878
    %v1509 = vunpack.c.l.b16 %v879
    %v1510 = vunpack.c.l.b16 %v880
    %v1511 = vunpack.c.l.b16 %v881
    %v1512 = vunpack.c.l.b16 %v882
    %v1513 = vunpack.c.l.b16 %v883
    %v1514 = vunpack.c.l.b16 %v884
    %v1515 = vunpack.c.l.b16 %v885
    %v1516 = vunpack.c.l.b16 %v886
    %v1517 = vunpack.c.l.b16 %v887
    %v1518 = vunpack.c.l.b16 %v888
    %v1519 = vunpack.c.l.b16 %v889
    %v1520 = vunpack.c.l.b16 %v890
    %v1521 = vunpack.c.l.b16 %v891
    %v1522 = vunpack.c.l.b16 %v892
    %v1523 = vunpack.c.l.b16 %v893
    %v1524 = vunpack.c.l.b16 %v894
    %v1525 = vunpack.c.l.b16 %v895
    %v1526 = vunpack.c.l.b16 %v896
    %v1527 = vunpack.c.l.b16 %v897
    %v1528 = vunpack.c.l.b16 %v898
    %v1529 = vunpack.c.l.b16 %v899
    %v1530 = vunpack.c.l.b16 %v900
    %v1531 = vunpack.c.l.b16 %v901
    %v1532 = vunpack.c.l.b16 %v902
    %v1533 = vunpack.c.l.b16 %v903
    %v1534 = vunpack.c.l.b16 %v904
    %v1535 = vunpack.c.l.b16 %v905
    %v1536 = vunpack.c.l.b16 %v906
    %v1537 = vunpack.c.l.b16 %v907
    %v1538 = vunpack.c.l.b16 %v908
    %v1539 = vunpack.c.l.b16 %v909
    %v1540 = vunpack.c.l.b16 %v910
    %v1541 = vunpack.c.l.b16 %v911
    %v1542 = vunpack.c.l.b16 %v912
    %v1543 = vunpack.c.l.b16 %v913
    %v1544 = vunpack.c.l.b16 %v914
    %v1545 = vunpack.c.l.b16 %v915
    %v1546 = vunpack.c.l.b16 %v916
    %v1547 = vunpack.c.l.b16 %v917
    %v1548 = vunpack.c.l.b16 %v918
    %v1549 = vunpack.c.l.b16 %v919
    %v1550 = vunpack.c.l.b16 %v920
    %v1551 = vunpack.c.l.b16 %v921
    %v1552 = vunpack.c.l.b16 %v922
    %v1553 = vunpack.c.l.b16 %v923
    %v1554 = vunpack.c.l.b16 %v924
    %v1555 = vunpack.c.l.b16 %v925
    %v1556 = vunpack.c.l.b16 %v926
    %v1557 = vunpack.c.l.b16 %v927
    %v1558 = vunpack.c.l.b16 %v928
    %v1559 = vunpack.c.l.b16 %v929
    %v1560 = vunpack.c.l.b16 %v930
    %v1561 = vunpack.c.l.b16 %v931
    %v1562 = vunpack.c.l.b16 %v932
    %v1563 = vunpack.c.l.b16 %v933
    %v1564 = vunpack.c.l.b16 %v934
    %v1565 = vunpack.c.l.b16 %v935
    %v1566 = vunpack.c.l.b16 %v936
    %v1567 = vunpack.c.l.b16 %v937
    %v1568 = vunpack.c.l.b16 %v938
    %v1569 = vunpack.c.l.b16 %v939
    %v1570 = vunpack.c.l.b16 %v940
    %v1571 = vunpack.c.l.b16 %v941
    %v1572 = vunpack.c.l.b16 %v942
    %v1573 = vunpack.c.l.b16 %v943
    %v1574 = vunpack.c.l.b16 %v944
    %v1575 = vunpack.c.l.b16 %v945
    %v1576 = vunpack.c.l.b16 %v946
    %v1577 = vunpack.c.l.b16 %v947
    %v1578 = vunpack.c.l.b16 %v948
    %v1579 = vunpack.c.l.b16 %v949
    %v1580 = vunpack.c.l.b16 %v950
    %v1581 = vunpack.c.l.b16 %v951
    %v1582 = vunpack.c.l.b16 %v952
    %v1583 = vunpack.c.l.b16 %v953
    %v1584 = vunpack.c.l.b16 %v954
    %v1585 = vunpack.c.l.b16 %v955
    %v1586 = vunpack.c.l.b16 %v956
    %v1587 = vunpack.c.l.b16 %v957
    %v1588 = vunpack.c.l.b16 %v958
    %v1589 = vunpack.c.l.b16 %v959
    %v1590 = vunpack.c.l.b16 %v960
    %v1591 = vunpack.c.l.b16 %v961
    %v1592 = vunpack.c.l.b16 %v962
    %v1593 = vunpack.c.l.b16 %v963
    %v1594 = vunpack.c.l.b16 %v964
    %v1595 = vunpack.c.l.b16 %v965
    %v1596 = vunpack.c.l.b16 %v966
    %v1597 = vunpack.c.l.b16 %v967
    %v1598 = vunpack.c.l.b16 %v968
    %v1599 = vunpack.c.l.b16 %v969
    %v1600 = vunpack.c.l.b16 %v970
    %v1601 = vunpack.c.l.b16 %v971
    %v1602 = vunpack.c.l.b16 %v972
    %v1603 = vunpack.c.l.b16 %v973
    %v1604 = vunpack.c.l.b16 %v974
    %v1605 = vunpack.c.l.b16 %v975
    %v1606 = vunpack.c.l.b16 %v976
    %v1607 = vunpack.c.l.b16 %v977
    %v1608 = vunpack.c.l.b16 %v978
    %v1609 = vunpack.c.l.b16 %v979
    %v1610 = vunpack.c.l.b16 %v980
    %v1611 = vunpack.c.l.b16 %v981
    %v1612 = vunpack.c.l.b16 %v982
    %v1613 = vunpack.c.l.b16 %v983
    %v1614 = vunpack.c.l.b16 %v984
    %v1615 = vunpack.c.l.b16 %v985
    %v1616 = vunpack.c.l.b16 %v986
    %v1617 = vunpack.c.l.b16 %v987
    %v1618 = vunpack.c.l.b16 %v988
    %v1619 = vunpack.c.l.b16 %v989
    %v1620 = vunpack.c.l.b16 %v990
    %v1621 = vunpack.c.l.b16 %v991
    %v1622 = vunpack.c.l.b16 %v992
    %v1623 = vunpack.c.l.b16 %v993
    %v1624 = vunpack.c.l.b16 %v994
    %v1625 = vunpack.c.l.b16 %v995
    %v1626 = vunpack.c.l.b16 %v996
    %v1627 = vunpack.c.l.b16 %v997
    %v1628 = vunpack.c.l.b16 %v998
    %v1629 = vunpack.c.l.b16 %v999
    %v1630 = vunpack.c.l.b16 %v1000
    %v1631 = vunpack.c.l.b16 %v1001
    %v1632 = vunpack.c.l.b16 %v1002
    %v1633 = vunpack.c.l.b16 %v1003
    %v1634 = vunpack.c.l.b16 %v1004
    %v1635 = vunpack.c.l.b16 %v1005
    %v1636 = vunpack.c.l.b16 %v1006
    %v1637 = vunpack.c.l.b16 %v1007
    %v1638 = vunpack.c.l.b16 %v1008
    %v1639 = vunpack.c.l.b16 %v1009
    %v1640 = vunpack.c.l.b16 %v1010
    %v1641 = vunpack.c.l.b16 %v1011
    %v1642 = vunpack.c.l.b16 %v1012
    %v1643 = vunpack.c.l.b16 %v1013
    %v1644 = vunpack.c.l.b16 %v1014
    %v1645 = vunpack.c.l.b16 %v1015
    %v1646 = vunpack.c.l.b16 %v1016
    %v1647 = vunpack.c.l.b16 %v1017
    %v1648 = vunpack.c.l.b16 %v1018
    %v1649 = vunpack.c.l.b16 %v1019
    %v1650 = vunpack.c.l.b16 %v1020
    %v1651 = vunpack.c.l.b16 %v1021
    %v1652 = vunpack.c.l.b16 %v1022
    %v1653 = vunpack.c.l.b16 %v1023
    %v1654 = vunpack.c.l.b16 %v1024
    %v1655 = vunpack.c.l.b16 %v1025
    %v1656 = vunpack.c.l.b16 %v1026
    %v1657 = vunpack.c.l.b16 %v1027
    %v1658 = vunpack.c.l.b16 %v1028
    %v1659 = vunpack.c.l.b16 %v1029
    %v1660 = vunpack.c.l.b16 %v1030
    %v1661 = vunpack.c.l.b16 %v1031
    %v1662 = vunpack.c.l.b16 %v1032
    %v1663 = vunpack.c.l.b16 %v1033
    %v1664 = vunpack.c.l.b16 %v1034
    %v1665 = vunpack.c.l.b16 %v1035
    %v1666 = vunpack.c.l.b16 %v1036
    %v1667 = vunpack.c.l.b16 %v1037
    %v1668 = vpack.c.b16 %v1413, %v1412
    %v1669 = vpack.c.b16 %v1415, %v1414
    %v1670 = vpack.c.b16 %v1417, %v1416
    %v1671 = vpack.c.b16 %v1419, %v1418
    %v1672 = vpack.c.b16 %v1421, %v1420
    %v1673 = vpack.c.b16 %v1423, %v1422
    %v1674 = vpack.c.b16 %v1425, %v1424
    %v1675 = vpack.c.b16 %v1427, %v1426
    %v1676 = vpack.c.b16 %v1429, %v1428
    %v1677 = vpack.c.b16 %v1431, %v1430
    %v1678 = vpack.c.b16 %v1433, %v1432
    %v1679 = vpack.c.b16 %v1435, %v1434
    %v1680 = vpack.c.b16 %v1437, %v1436
    %v1681 = vpack.c.b16 %v1439, %v1438
    %v1682 = vpack.c.b16 %v1441, %v1440
    %v1683 = vpack.c.b16 %v1443, %v1442
    %v1684 = vpack.c.b16 %v1445, %v1444
    %v1685 = vpack.c.b16 %v1447, %v1446
    %v1686 = vpack.c.b16 %v1449, %v1448
    %v1687 = vpack.c.b16 %v1451, %v1450
    %v1688 = vpack.c.b16 %v1453, %v1452
    %v1689 = vpack.c.b16 %v1455, %v1454
    %v1690 = vpack.c.b16 %v1457, %v1456
    %v1691 = vpack.c.b16 %v1459, %v1458
    %v1692 = vpack.c.b16 %v1461, %v1460
    %v1693 = vpack.c.b16 %v1463, %v1462
    %v1694 = vpack.c.b16 %v1465, %v1464
    %v1695 = vpack.c.b16 %v1467, %v1466
    %v1696 = vpack.c.b16 %v1469, %v1468
    %v1697 = vpack.c.b16 %v1471, %v1470
    %v1698 = vpack.c.b16 %v1473, %v1472
    %v1699 = vpack.c.b16 %v1475, %v1474
    %v1700 = vpack.c.b16 %v1477, %v1476
    %v1701 = vpack.c.b16 %v1479, %v1478
    %v1702 = vpack.c.b16 %v1481, %v1480
    %v1703 = vpack.c.b16 %v1483, %v1482
    %v1704 = vpack.c.b16 %v1485, %v1484
    %v1705 = vpack.c.b16 %v1487, %v1486
    %v1706 = vpack.c.b16 %v1489, %v1488
    %v1707 = vpack.c.b16 %v1491, %v1490
    %v1708 = vpack.c.b16 %v1493, %v1492
    %v1709 = vpack.c.b16 %v1495, %v1494
    %v1710 = vpack.c.b16 %v1497, %v1496
    %v1711 = vpack.c.b16 %v1499, %v1498
    %v1712 = vpack.c.b16 %v1501, %v1500
    %v1713 = vpack.c.b16 %v1503, %v1502
    %v1714 = vpack.c.b16 %v1505, %v1504
    %v1715 = vpack.c.b16 %v1507, %v1506
    %v1716 = vpack.c.b16 %v1509, %v1508
    %v1717 = vpack.c.b16 %v1511, %v1510
    %v1718 = vpack.c.b16 %v1513, %v1512
    %v1719 = vpack.c.b16 %v1515, %v1514
    %v1720 = vpack.c.b16 %v1517, %v1516
    %v1721 = vpack.c.b16 %v1519, %v1518
    %v1722 = vpack.c.b16 %v1521, %v1520
    %v1723 = vpack.c.b16 %v1523, %v1522
    %v1724 = vpack.c.b16 %v1525, %v1524
    %v1725 = vpack.c.b16 %v1527, %v1526
    %v1726 = vpack.c.b16 %v1529, %v1528
    %v1727 = vpack.c.b16 %v1531, %v1530
    %v1728 = vpack.c.b16 %v1533, %v1532
    %v1729 = vpack.c.b16 %v1535, %v1534
    %v1730 = vpack.c.b16 %v1537, %v1536
    %v1731 = vpack.c.b16 %v1539, %v1538
    %v1732 = vpack.c.b16 %v1541, %v1540
    %v1733 = vpack.c.b16 %v1543, %v1542
    %v1734 = vpack.c.b16 %v1545, %v1544
    %v1735 = vpack.c.b16 %v1547, %v1546
    %v1736 = vpack.c.b16 %v1549, %v1548
    %v1737 = vpack.c.b16 %v1551, %v1550
    %v1738 = vpack.c.b16 %v1553, %v1552
    %v1739 = vpack.c.b16 %v1555, %v1554
    %v1740 = vpack.c.b16 %v1557, %v1556
    %v1741 = vpack.c.b16 %v1559, %v1558
    %v1742 = vpack.c.b16 %v1561, %v1560
    %v1743 = vpack.c.b16 %v1563, %v1562
    %v1744 = vpack.c.b16 %v1565, %v1564
    %v1745 = vpack.c.b16 %v1567, %v1566
    %v1746 = vpack.c.b16 %v1569, %v1568
    %v1747 = vpack.c.b16 %v1571, %v1570
    %v1748 = vpack.c.b16 %v1573, %v1572
    %v1749 = vpack.c.b16 %v1575, %v1574
    %v1750 = vpack.c.b16 %v1577, %v1576
    %v1751 = vpack.c.b16 %v1579, %v1578
    %v1752 = vpack.c.b16 %v1581, %v1580
    %v1753 = vpack.c.b16 %v1583, %v1582
    %v1754 = vpack.c.b16 %v1585, %v1584
    %v1755 = vpack.c.b16 %v1587, %v1586
    %v1756 = vpack.c.b16 %v1589, %v1588
    %v1757 = vpack.c.b16 %v1591, %v1590
    %v1758 = vpack.c.b16 %v1593, %v1592
    %v1759 = vpack.c.b16 %v1595, %v1594
    %v1760 = vpack.c.b16 %v1597, %v1596
    %v1761 = vpack.c.b16 %v1599, %v1598
    %v1762 = vpack.c.b16 %v1601, %v1600
    %v1763 = vpack.c.b16 %v1603, %v1602
    %v1764 = vpack.c.b16 %v1605, %v1604
    %v1765 = vpack.c.b16 %v1607, %v1606
    %v1766 = vpack.c.b16 %v1609, %v1608
    %v1767 = vpack.c.b16 %v1611, %v1610
    %v1768 = vpack.c.b16 %v1613, %v1612
    %v1769 = vpack.c.b16 %v1615, %v1614
    %v1770 = vpack.c.b16 %v1617, %v1616
    %v1771 = vpack.c.b16 %v1619, %v1618
    %v1772 = vpack.c.b16 %v1621, %v1620
    %v1773 = vpack.c.b16 %v1623, %v1622
    %v1774 = vpack.c.b16 %v1625, %v1624
    %v1775 = vpack.c.b16 %v1627, %v1626
    %v1776 = vpack.c.b16 %v1629, %v1628
    %v1777 = vpack.c.b16 %v1631, %v1630
    %v1778 = vpack.c.b16 %v1633, %v1632
    %v1779 = vpack.c.b16 %v1635, %v1634
    %v1780 = vpack.c.b16 %v1637, %v1636
    %v1781 = vpack.c.b16 %v1639, %v1638
    %v1782 = vpack.c.b16 %v1641, %v1640
    %v1783 = vpack.c.b16 %v1643, %v1642
    %v1784 = vpack.c.b16 %v1645, %v1644
    %v1785 = vpack.c.b16 %v1647, %v1646
    %v1786 = vpack.c.b16 %v1649, %v1648
    %v1787 = vpack.c.b16 %v1651, %v1650
    %v1788 = vpack.c.b16 %v1653, %v1652
    %v1789 = vpack.c.b16 %v1655, %v1654
    %v1790 = vpack.c.b16 %v1657, %v1656
    %v1791 = vpack.c.b16 %v1659, %v1658
    %v1792 = vpack.c.b16 %v1661, %v1660
    %v1793 = vpack.c.b16 %v1663, %v1662
    %v1794 = vpack.c.b16 %v1665, %v1664
    %v1795 = vpack.c.b16 %v1667, %v1666
    %1924 = vmatprep.subr.bf16.mxu0 0
    %1925 = vmatpush1.bf16.msra.mxu0 %v1675
    %1926 = vmatprep.subr.bf16.mxu0 0
    %1927 = vmatpush1.bf16.msra.mxu0 %v1674
    %1928 = vmatprep.subr.bf16.mxu0 0
    %1929 = vmatpush1.bf16.msra.mxu0 %v1673
    %1930 = vmatprep.subr.bf16.mxu0 0
    %1931 = vmatpush1.bf16.msra.mxu0 %v1672
    %1932 = vmatprep.subr.bf16.mxu0 0
    %1933 = vmatpush1.bf16.msra.mxu0 %v1671
    %1934 = vmatprep.subr.bf16.mxu0 0
    %1935 = vmatpush1.bf16.msra.mxu0 %v1670
    %1936 = vmatprep.subr.bf16.mxu0 0
    %1937 = vmatpush1.bf16.msra.mxu0 %v1669
    %1938 = vmatprep.subr.bf16.mxu0 0
    %1939 = vmatpush1.bf16.msra.mxu0 %v1668
    %1940 = vmatprep.subr.bf16.mxu0 0
    %1941 = vmatpush2.bf16.msra.mxu0 %v1683
    %1942 = vmatprep.subr.bf16.mxu0 0
    %1943 = vmatpush2.bf16.msra.mxu0 %v1682
    %1944 = vmatprep.subr.bf16.mxu0 0
    %1945 = vmatpush2.bf16.msra.mxu0 %v1681
    %1946 = vmatprep.subr.bf16.mxu0 0
    %1947 = vmatpush2.bf16.msra.mxu0 %v1680
    %1948 = vmatprep.subr.bf16.mxu0 0
    %1949 = vmatpush2.bf16.msra.mxu0 %v1679
    %1950 = vmatprep.subr.bf16.mxu0 0
    %1951 = vmatpush2.bf16.msra.mxu0 %v1678
    %1952 = vmatprep.subr.bf16.mxu0 0
    %1953 = vmatpush2.bf16.msra.mxu0 %v1677
    %1954 = vmatprep.subr.bf16.mxu0 0
    %1955 = vmatpush2.bf16.msra.mxu0 %v1676
    %1956 = vmatprep.mubr.bf16.mxu0 %v1079
    %1957 = vmatmul.mubr.bf16.gmra.mxu0 %v1065
    %v1958 = vpop.f32.mrf.mxu0
    %v1959 = vadd.f32 0.0, %v1958
    %v1960 = vpop.f32.mrf.mxu0
    %v1961 = vpop.f32.mrf.mxu0
    %v1962 = vpop.f32.mrf.mxu0
    %1963 = vdwg.mxu0
    %1964 = vmatprep.subr.bf16.mxu0 0
    %1965 = vmatpush1.bf16.msra.mxu0 %v1691
    %1966 = vmatprep.subr.bf16.mxu0 0
    %1967 = vmatpush1.bf16.msra.mxu0 %v1690
    %1968 = vmatprep.subr.bf16.mxu0 0
    %1969 = vmatpush1.bf16.msra.mxu0 %v1689
    %1970 = vmatprep.subr.bf16.mxu0 0
    %1971 = vmatpush1.bf16.msra.mxu0 %v1688
    %1972 = vmatprep.subr.bf16.mxu0 0
    %1973 = vmatpush1.bf16.msra.mxu0 %v1687
    %1974 = vmatprep.subr.bf16.mxu0 0
    %1975 = vmatpush1.bf16.msra.mxu0 %v1686
    %1976 = vmatprep.subr.bf16.mxu0 0
    %1977 = vmatpush1.bf16.msra.mxu0 %v1685
    %1978 = vmatprep.subr.bf16.mxu0 0
    %1979 = vmatpush1.bf16.msra.mxu0 %v1684
    %1980 = vmatprep.subr.bf16.mxu0 0
    %1981 = vmatpush2.bf16.msra.mxu0 %v1699
    %1982 = vmatprep.subr.bf16.mxu0 0
    %1983 = vmatpush2.bf16.msra.mxu0 %v1698
    %1984 = vmatprep.subr.bf16.mxu0 0
    %1985 = vmatpush2.bf16.msra.mxu0 %v1697
    %1986 = vmatprep.subr.bf16.mxu0 0
    %1987 = vmatpush2.bf16.msra.mxu0 %v1696
    %1988 = vmatprep.subr.bf16.mxu0 0
    %1989 = vmatpush2.bf16.msra.mxu0 %v1695
    %1990 = vmatprep.subr.bf16.mxu0 0
    %1991 = vmatpush2.bf16.msra.mxu0 %v1694
    %1992 = vmatprep.subr.bf16.mxu0 0
    %1993 = vmatpush2.bf16.msra.mxu0 %v1693
    %1994 = vmatprep.subr.bf16.mxu0 0
    %1995 = vmatpush2.bf16.msra.mxu0 %v1692
    %1996 = vmatprep.mubr.bf16.mxu0 %v1089
    %1997 = vmatmul.mubr.bf16.gmra.mxu0 %v1087
    %v1998 = vpop.f32.mrf.mxu0
    %v1999 = vadd.f32 %v1959, %v1998
    %v2000 = vpop.f32.mrf.mxu0
    %v2001 = vpop.f32.mrf.mxu0
    %v2002 = vpop.f32.mrf.mxu0
    %2003 = vdwg.mxu0
    %2004 = vmatprep.subr.bf16.mxu0 0
    %2005 = vmatpush1.bf16.msra.mxu0 %v1707
    %2006 = vmatprep.subr.bf16.mxu0 0
    %2007 = vmatpush1.bf16.msra.mxu0 %v1706
    %2008 = vmatprep.subr.bf16.mxu0 0
    %2009 = vmatpush1.bf16.msra.mxu0 %v1705
    %2010 = vmatprep.subr.bf16.mxu0 0
    %2011 = vmatpush1.bf16.msra.mxu0 %v1704
    %2012 = vmatprep.subr.bf16.mxu0 0
    %2013 = vmatpush1.bf16.msra.mxu0 %v1703
    %2014 = vmatprep.subr.bf16.mxu0 0
    %2015 = vmatpush1.bf16.msra.mxu0 %v1702
    %2016 = vmatprep.subr.bf16.mxu0 0
    %2017 = vmatpush1.bf16.msra.mxu0 %v1701
    %2018 = vmatprep.subr.bf16.mxu0 0
    %2019 = vmatpush1.bf16.msra.mxu0 %v1700
    %2020 = vmatprep.subr.bf16.mxu0 0
    %2021 = vmatpush2.bf16.msra.mxu0 %v1715
    %2022 = vmatprep.subr.bf16.mxu0 0
    %2023 = vmatpush2.bf16.msra.mxu0 %v1714
    %2024 = vmatprep.subr.bf16.mxu0 0
    %2025 = vmatpush2.bf16.msra.mxu0 %v1713
    %2026 = vmatprep.subr.bf16.mxu0 0
    %2027 = vmatpush2.bf16.msra.mxu0 %v1712
    %2028 = vmatprep.subr.bf16.mxu0 0
    %2029 = vmatpush2.bf16.msra.mxu0 %v1711
    %2030 = vmatprep.subr.bf16.mxu0 0
    %2031 = vmatpush2.bf16.msra.mxu0 %v1710
    %2032 = vmatprep.subr.bf16.mxu0 0
    %2033 = vmatpush2.bf16.msra.mxu0 %v1709
    %2034 = vmatprep.subr.bf16.mxu0 0
    %2035 = vmatpush2.bf16.msra.mxu0 %v1708
    %2036 = vmatprep.mubr.bf16.mxu0 %v1086
    %2037 = vmatmul.mubr.bf16.gmra.mxu0 %v1072
    %v2038 = vpop.f32.mrf.mxu0
    %v2039 = vadd.f32 %v1999, %v2038
    %v2040 = vpop.f32.mrf.mxu0
    %v2041 = vpop.f32.mrf.mxu0
    %v2042 = vpop.f32.mrf.mxu0
    %2043 = vdwg.mxu0
    %2044 = vmatprep.subr.bf16.mxu0 0
    %2045 = vmatpush1.bf16.msra.mxu0 %v1723
    %2046 = vmatprep.subr.bf16.mxu0 0
    %2047 = vmatpush1.bf16.msra.mxu0 %v1722
    %2048 = vmatprep.subr.bf16.mxu0 0
    %2049 = vmatpush1.bf16.msra.mxu0 %v1721
    %2050 = vmatprep.subr.bf16.mxu0 0
    %2051 = vmatpush1.bf16.msra.mxu0 %v1720
    %2052 = vmatprep.subr.bf16.mxu0 0
    %2053 = vmatpush1.bf16.msra.mxu0 %v1719
    %2054 = vmatprep.subr.bf16.mxu0 0
    %2055 = vmatpush1.bf16.msra.mxu0 %v1718
    %2056 = vmatprep.subr.bf16.mxu0 0
    %2057 = vmatpush1.bf16.msra.mxu0 %v1717
    %2058 = vmatprep.subr.bf16.mxu0 0
    %2059 = vmatpush1.bf16.msra.mxu0 %v1716
    %2060 = vmatprep.subr.bf16.mxu0 0
    %2061 = vmatpush2.bf16.msra.mxu0 %v1731
    %2062 = vmatprep.subr.bf16.mxu0 0
    %2063 = vmatpush2.bf16.msra.mxu0 %v1730
    %2064 = vmatprep.subr.bf16.mxu0 0
    %2065 = vmatpush2.bf16.msra.mxu0 %v1729
    %2066 = vmatprep.subr.bf16.mxu0 0
    %2067 = vmatpush2.bf16.msra.mxu0 %v1728
    %2068 = vmatprep.subr.bf16.mxu0 0
    %2069 = vmatpush2.bf16.msra.mxu0 %v1727
    %2070 = vmatprep.subr.bf16.mxu0 0
    %2071 = vmatpush2.bf16.msra.mxu0 %v1726
    %2072 = vmatprep.subr.bf16.mxu0 0
    %2073 = vmatpush2.bf16.msra.mxu0 %v1725
    %2074 = vmatprep.subr.bf16.mxu0 0
    %2075 = vmatpush2.bf16.msra.mxu0 %v1724
    %2076 = vmatprep.mubr.bf16.mxu0 %v1090
    %2077 = vmatmul.mubr.bf16.gmra.mxu0 %v1088
    %v2078 = vpop.f32.mrf.mxu0
    %v2079 = vadd.f32 %v2039, %v2078
    %v2080 = vpop.f32.mrf.mxu0
    %v2081 = vpop.f32.mrf.mxu0
    %v2082 = vpop.f32.mrf.mxu0
    %2083 = vdwg.mxu0
    %2084 = vmatprep.subr.bf16.mxu0 0
    %2085 = vmatpush1.bf16.msra.mxu0 %v1739
    %2086 = vmatprep.subr.bf16.mxu0 0
    %2087 = vmatpush1.bf16.msra.mxu0 %v1738
    %2088 = vmatprep.subr.bf16.mxu0 0
    %2089 = vmatpush1.bf16.msra.mxu0 %v1737
    %2090 = vmatprep.subr.bf16.mxu0 0
    %2091 = vmatpush1.bf16.msra.mxu0 %v1736
    %2092 = vmatprep.subr.bf16.mxu0 0
    %2093 = vmatpush1.bf16.msra.mxu0 %v1735
    %2094 = vmatprep.subr.bf16.mxu0 0
    %2095 = vmatpush1.bf16.msra.mxu0 %v1734
    %2096 = vmatprep.subr.bf16.mxu0 0
    %2097 = vmatpush1.bf16.msra.mxu0 %v1733
    %2098 = vmatprep.subr.bf16.mxu0 0
    %2099 = vmatpush1.bf16.msra.mxu0 %v1732
    %2100 = vmatprep.subr.bf16.mxu0 0
    %2101 = vmatpush2.bf16.msra.mxu0 %v1747
    %2102 = vmatprep.subr.bf16.mxu0 0
    %2103 = vmatpush2.bf16.msra.mxu0 %v1746
    %2104 = vmatprep.subr.bf16.mxu0 0
    %2105 = vmatpush2.bf16.msra.mxu0 %v1745
    %2106 = vmatprep.subr.bf16.mxu0 0
    %2107 = vmatpush2.bf16.msra.mxu0 %v1744
    %2108 = vmatprep.subr.bf16.mxu0 0
    %2109 = vmatpush2.bf16.msra.mxu0 %v1743
    %2110 = vmatprep.subr.bf16.mxu0 0
    %2111 = vmatpush2.bf16.msra.mxu0 %v1742
    %2112 = vmatprep.subr.bf16.mxu0 0
    %2113 = vmatpush2.bf16.msra.mxu0 %v1741
    %2114 = vmatprep.subr.bf16.mxu0 0
    %2115 = vmatpush2.bf16.msra.mxu0 %v1740
    %2116 = vmatprep.mubr.bf16.mxu0 %v1128
    %2117 = vmatmul.mubr.bf16.gmra.mxu0 %v1114
    %v2118 = vpop.f32.mrf.mxu0
    %v2119 = vadd.f32 %v2079, %v2118
    %v2120 = vpop.f32.mrf.mxu0
    %v2121 = vpop.f32.mrf.mxu0
    %v2122 = vpop.f32.mrf.mxu0
    %2123 = vdwg.mxu0
    %2124 = vmatprep.subr.bf16.mxu0 0
    %2125 = vmatpush1.bf16.msra.mxu0 %v1755
    %2126 = vmatprep.subr.bf16.mxu0 0
    %2127 = vmatpush1.bf16.msra.mxu0 %v1754
    %2128 = vmatprep.subr.bf16.mxu0 0
    %2129 = vmatpush1.bf16.msra.mxu0 %v1753
    %2130 = vmatprep.subr.bf16.mxu0 0
    %2131 = vmatpush1.bf16.msra.mxu0 %v1752
    %2132 = vmatprep.subr.bf16.mxu0 0
    %2133 = vmatpush1.bf16.msra.mxu0 %v1751
    %2134 = vmatprep.subr.bf16.mxu0 0
    %2135 = vmatpush1.bf16.msra.mxu0 %v1750
    %2136 = vmatprep.subr.bf16.mxu0 0
    %2137 = vmatpush1.bf16.msra.mxu0 %v1749
    %2138 = vmatprep.subr.bf16.mxu0 0
    %2139 = vmatpush1.bf16.msra.mxu0 %v1748
    %2140 = vmatprep.subr.bf16.mxu0 0
    %2141 = vmatpush2.bf16.msra.mxu0 %v1763
    %2142 = vmatprep.subr.bf16.mxu0 0
    %2143 = vmatpush2.bf16.msra.mxu0 %v1762
    %2144 = vmatprep.subr.bf16.mxu0 0
    %2145 = vmatpush2.bf16.msra.mxu0 %v1761
    %2146 = vmatprep.subr.bf16.mxu0 0
    %2147 = vmatpush2.bf16.msra.mxu0 %v1760
    %2148 = vmatprep.subr.bf16.mxu0 0
    %2149 = vmatpush2.bf16.msra.mxu0 %v1759
    %2150 = vmatprep.subr.bf16.mxu0 0
    %2151 = vmatpush2.bf16.msra.mxu0 %v1758
    %2152 = vmatprep.subr.bf16.mxu0 0
    %2153 = vmatpush2.bf16.msra.mxu0 %v1757
    %2154 = vmatprep.subr.bf16.mxu0 0
    %2155 = vmatpush2.bf16.msra.mxu0 %v1756
    %2156 = vmatprep.mubr.bf16.mxu0 %v1138
    %2157 = vmatmul.mubr.bf16.gmra.mxu0 %v1136
    %v2158 = vpop.f32.mrf.mxu0
    %v2159 = vadd.f32 %v2119, %v2158
    %v2160 = vpop.f32.mrf.mxu0
    %v2161 = vpop.f32.mrf.mxu0
    %v2162 = vpop.f32.mrf.mxu0
    %2163 = vdwg.mxu0
    %2164 = vmatprep.subr.bf16.mxu0 0
    %2165 = vmatpush1.bf16.msra.mxu0 %v1771
    %2166 = vmatprep.subr.bf16.mxu0 0
    %2167 = vmatpush1.bf16.msra.mxu0 %v1770
    %2168 = vmatprep.subr.bf16.mxu0 0
    %2169 = vmatpush1.bf16.msra.mxu0 %v1769
    %2170 = vmatprep.subr.bf16.mxu0 0
    %2171 = vmatpush1.bf16.msra.mxu0 %v1768
    %2172 = vmatprep.subr.bf16.mxu0 0
    %2173 = vmatpush1.bf16.msra.mxu0 %v1767
    %2174 = vmatprep.subr.bf16.mxu0 0
    %2175 = vmatpush1.bf16.msra.mxu0 %v1766
    %2176 = vmatprep.subr.bf16.mxu0 0
    %2177 = vmatpush1.bf16.msra.mxu0 %v1765
    %2178 = vmatprep.subr.bf16.mxu0 0
    %2179 = vmatpush1.bf16.msra.mxu0 %v1764
    %2180 = vmatprep.subr.bf16.mxu0 0
    %2181 = vmatpush2.bf16.msra.mxu0 %v1779
    %2182 = vmatprep.subr.bf16.mxu0 0
    %2183 = vmatpush2.bf16.msra.mxu0 %v1778
    %2184 = vmatprep.subr.bf16.mxu0 0
    %2185 = vmatpush2.bf16.msra.mxu0 %v1777
    %2186 = vmatprep.subr.bf16.mxu0 0
    %2187 = vmatpush2.bf16.msra.mxu0 %v1776
    %2188 = vmatprep.subr.bf16.mxu0 0
    %2189 = vmatpush2.bf16.msra.mxu0 %v1775
    %2190 = vmatprep.subr.bf16.mxu0 0
    %2191 = vmatpush2.bf16.msra.mxu0 %v1774
    %2192 = vmatprep.subr.bf16.mxu0 0
    %2193 = vmatpush2.bf16.msra.mxu0 %v1773
    %2194 = vmatprep.subr.bf16.mxu0 0
    %2195 = vmatpush2.bf16.msra.mxu0 %v1772
    %2196 = vmatprep.mubr.bf16.mxu0 %v1135
    %2197 = vmatmul.mubr.bf16.gmra.mxu0 %v1121
    %v2198 = vpop.f32.mrf.mxu0
    %v2199 = vadd.f32 %v2159, %v2198
    %v2200 = vpop.f32.mrf.mxu0
    %v2201 = vpop.f32.mrf.mxu0
    %v2202 = vpop.f32.mrf.mxu0
    %2203 = vdwg.mxu0
    %2204 = vmatprep.subr.bf16.mxu0 0
    %2205 = vmatpush1.bf16.msra.mxu0 %v1787
    %2206 = vmatprep.subr.bf16.mxu0 0
    %2207 = vmatpush1.bf16.msra.mxu0 %v1786
    %2208 = vmatprep.subr.bf16.mxu0 0
    %2209 = vmatpush1.bf16.msra.mxu0 %v1785
    %2210 = vmatprep.subr.bf16.mxu0 0
    %2211 = vmatpush1.bf16.msra.mxu0 %v1784
    %2212 = vmatprep.subr.bf16.mxu0 0
    %2213 = vmatpush1.bf16.msra.mxu0 %v1783
    %2214 = vmatprep.subr.bf16.mxu0 0
    %2215 = vmatpush1.bf16.msra.mxu0 %v1782
    %2216 = vmatprep.subr.bf16.mxu0 0
    %2217 = vmatpush1.bf16.msra.mxu0 %v1781
    %2218 = vmatprep.subr.bf16.mxu0 0
    %2219 = vmatpush1.bf16.msra.mxu0 %v1780
    %2220 = vmatprep.subr.bf16.mxu0 0
    %2221 = vmatpush2.bf16.msra.mxu0 %v1795
    %2222 = vmatprep.subr.bf16.mxu0 0
    %2223 = vmatpush2.bf16.msra.mxu0 %v1794
    %2224 = vmatprep.subr.bf16.mxu0 0
    %2225 = vmatpush2.bf16.msra.mxu0 %v1793
    %2226 = vmatprep.subr.bf16.mxu0 0
    %2227 = vmatpush2.bf16.msra.mxu0 %v1792
    %2228 = vmatprep.subr.bf16.mxu0 0
    %2229 = vmatpush2.bf16.msra.mxu0 %v1791
    %2230 = vmatprep.subr.bf16.mxu0 0
    %2231 = vmatpush2.bf16.msra.mxu0 %v1790
    %2232 = vmatprep.subr.bf16.mxu0 0
    %2233 = vmatpush2.bf16.msra.mxu0 %v1789
    %2234 = vmatprep.subr.bf16.mxu0 0
    %2235 = vmatpush2.bf16.msra.mxu0 %v1788
    %2236 = vmatprep.mubr.bf16.mxu0 %v1139
    %2237 = vmatmul.mubr.bf16.gmra.mxu0 %v1137
    %v2238 = vpop.f32.mrf.mxu0
    %v2239 = vadd.f32 %v2199, %v2238
    %v2240 = vpop.f32.mrf.mxu0
    %v2241 = vpop.f32.mrf.mxu0
    %v2242 = vpop.f32.mrf.mxu0
    %2243 = vdwg.mxu0
    %vm2244 = vcmask 8192
    %2245 = vst.msk [vmem:[#allocation2] sm:$0x1] %vm2244, %v2239
    // Predicated region
    $region10: #{image_discriminator.9} parent=1 // pred_check
      _
    $region11: #{image_discriminator.9} parent=1 // pred_check_branch
      %2247 = sbr.rel (0) target = $region13
    $region12: #{image_discriminator.9} parent=1 // pred_region
      %s2249 = ssub.s32 16, 16
      %2250 = vsyncadd [#allocation3], %s2249
      %s2252 = sshll.u32 [#allocation2], 4
      %s2253 = int_to_ptr.vmem [resolvable:$true] %s2252
      %2255 = dma.vmem_to_hbm [thread:$0]  %s2253, 16, %s2, [#allocation3]
    $region13: #{image_discriminator.9} parent=1 // pred_fallthru
      _
    // Predicated region
    $region14: #{image_discriminator.9} parent=1 // pred_check
      _
    $region15: #{image_discriminator.9} parent=1 // pred_check_branch
      %2257 = sbr.rel (0) target = $region17
    $region16: #{image_discriminator.9} parent=1 // pred_region
      %2258 = dma.done [#allocation3], 16
    $region17: #{image_discriminator.9} parent=1 // pred_fallthru
      _
    %2259 = vsyncpa [#allocation3], 1

</llo_original>
